<compile_context>
chip_gen: v7x
topology: tpu7x:2x2x1
jax: 0.10.0
libtpu: 0.0.40
codegen_flags: <defaults>
</compile_context>

<pallas_src>
import math
from functools import partial

import jax
import jax.numpy as jnp
from jax.experimental import pallas as pl

# ---- tiny BERT config (synthetic stand-in for bert-base-uncased) ----
VOCAB = 100
MAX_POS = 16
TYPE_VOCAB = 2
HIDDEN = 32
N_HEADS = 2
HEAD_DIM = HIDDEN // N_HEADS
HEAD_PAD = 128           # per-head Q/K/V lane-padded width (whole-vreg slices)
N_LAYERS = 2
INTERMEDIATE = 64
N_CLASSES = 3
CLS_PAD = 128            # lane-dense padded classifier output width
LN_EPS = 1e-12


# ---------------- kernel helpers ----------------
def _layernorm(v, g, b, eps):
    mu = jnp.mean(v, axis=-1, keepdims=True)
    var = jnp.mean((v - mu) ** 2, axis=-1, keepdims=True)
    return (v - mu) * jax.lax.rsqrt(var + eps) * g + b


def _gelu(y):
    # TODO(synk): HF BERT uses erf-based GELU; tanh approximation used here.
    return 0.5 * y * (1.0 + jnp.tanh(0.7978845608028654 * (y + 0.044715 * y * y * y)))


# ---------------- single fused Pallas kernel ----------------
def _model_kernel(NH, DP, eps, n_layers,
                  x_ref, mask_ref, embg_ref, embb_ref,
                  wqkv_ref, bqkv_ref, wo_ref, bo_ref,
                  ln1g_ref, ln1b_ref, w1_ref, b1_ref, w2_ref, b2_ref,
                  ln2g_ref, ln2b_ref,
                  pw_ref, pb_ref, ow_ref, ob_ref,
                  o_ref):
    """Embedding LN -> N_LAYERS encoder layers -> pooler -> classifier, all fused."""
    x = _layernorm(x_ref[...], embg_ref[...], embb_ref[...], eps)   # (M, H)
    mask2d = mask_ref[...]                                          # (M, M) additive, block-diag

    for l in range(n_layers):
        # fused, head-aligned, pre-scaled QKV projection: one MXU pass
        qkv = (jnp.dot(x, wqkv_ref[l], preferred_element_type=jnp.float32)
               + bqkv_ref[l])                                       # (M, NH*3*DP)

        attn = None
        for h in range(NH):
            base = h * 3 * DP                                       # 128-lane aligned offsets
            q = qkv[:, base:base + DP]                              # (M, DP)
            k = qkv[:, base + DP:base + 2 * DP]                     # (M, DP)
            v = qkv[:, base + 2 * DP:base + 3 * DP]                 # (M, DP)
            s = jax.lax.dot_general(q, k, (((1,), (1,)), ((), ())),
                                    preferred_element_type=jnp.float32) + mask2d  # (M, M)
            s = s - jnp.max(s, axis=-1, keepdims=True)
            p = jnp.exp(s)
            p = p * pl.reciprocal(jnp.sum(p, axis=-1, keepdims=True))
            ctx = jnp.dot(p, v, preferred_element_type=jnp.float32)              # (M, DP)
            # head merge folded into per-head output projection (no concatenates)
            contrib = jnp.dot(ctx, wo_ref[l, h], preferred_element_type=jnp.float32)  # (M, H)
            attn = contrib if attn is None else attn + contrib

        x1 = _layernorm(attn + bo_ref[l] + x, ln1g_ref[l], ln1b_ref[l], eps)

        # feed-forward + GELU + residual + layernorm
        ff = _gelu(jnp.dot(x1, w1_ref[l], preferred_element_type=jnp.float32) + b1_ref[l])
        ff2 = jnp.dot(ff, w2_ref[l], preferred_element_type=jnp.float32) + b2_ref[l]
        x = _layernorm(ff2 + x1, ln2g_ref[l], ln2b_ref[l], eps)

    # pooler (linear + tanh) and classifier on ALL rows; CLS rows sliced outside.
    pooled = jnp.tanh(jnp.dot(x, pw_ref[...], preferred_element_type=jnp.float32)
                      + pb_ref[...])
    # TODO(synk): nn.Dropout(p=0.3) is stochastic; modeled in eval/inference mode (identity).
    logits = jnp.dot(pooled, ow_ref[...], preferred_element_type=jnp.float32) + ob_ref[...]
    o_ref[...] = logits.astype(o_ref.dtype)                         # (M, CLS_PAD) full-block store


def model_call(x, mask2d, f):
    M, _ = x.shape
    kernel = partial(_model_kernel, N_HEADS, HEAD_PAD, LN_EPS, N_LAYERS)

    args = (x, mask2d, f["emb_ln_g"], f["emb_ln_b"],
            f["wqkv"], f["bqkv"], f["wo"], f["bo"],
            f["ln1_g"], f["ln1_b"], f["w1"], f["b1"], f["w2"], f["b2"],
            f["ln2_g"], f["ln2_b"],
            f["pooler_w"], f["pooler_b"], f["out_w_pad"], f["out_b_pad"])

    def full_spec(shape):
        return pl.BlockSpec(shape, lambda: (0,) * len(shape))

    return pl.pallas_call(
        kernel,
        out_shape=jax.ShapeDtypeStruct((M, CLS_PAD), jnp.float32),
        in_specs=[full_spec(a.shape) for a in args],
        out_specs=full_spec((M, CLS_PAD)),
    )(*args)


# ---------------- model glue ----------------
def forward(fused, input_ids, attention_mask):
    B, S = input_ids.shape
    M = B * S
    # embeddings (gather is glue; everything downstream is one Pallas kernel)
    word = fused["word_emb"][input_ids]                      # (B, S, H)
    pos = fused["pos_emb"][:S][None, :, :]                   # (1, S, H)
    tok = fused["type_emb"][0][None, None, :]                # token_type_ids = 0
    x = (word + pos + tok).reshape(M, HIDDEN)

    # block-diagonal additive mask: (M, M); 0 where same batch & key valid, -1e4 otherwise
    valid = attention_mask.astype(jnp.float32)               # (B, S)
    same_batch = jnp.kron(jnp.eye(B, dtype=jnp.float32),
                          jnp.ones((S, S), jnp.float32))     # (M, M)
    mask2d = jnp.where(same_batch * valid.reshape(1, M) > 0.5, 0.0, -10000.0)

    logits_all = model_call(x, mask2d, fused)                 # 1 pallas_call, (M, CLS_PAD)
    return logits_all[0::S, :N_CLASSES]                       # CLS rows, real classes


def init_params(key):
    ks = jax.random.split(key, 5)

    def w(k, shape):
        return jax.random.normal(k, shape, jnp.float32) * 0.02

    params = {
        "word_emb": w(ks[0], (VOCAB, HIDDEN)),
        "pos_emb": w(ks[1], (MAX_POS, HIDDEN)),
        "type_emb": w(ks[2], (TYPE_VOCAB, HIDDEN)),
        "emb_ln_g": jnp.ones((HIDDEN,), jnp.float32),
        "emb_ln_b": jnp.zeros((HIDDEN,), jnp.float32),
        "pooler_w": w(ks[3], (HIDDEN, HIDDEN)),
        "pooler_b": jnp.zeros((HIDDEN,), jnp.float32),
        "out_w": w(ks[4], (HIDDEN, N_CLASSES)),
        "out_b": jnp.zeros((N_CLASSES,), jnp.float32),
        "layers": [],
    }
    for i in range(N_LAYERS):
        lk = jax.random.split(jax.random.fold_in(key, 100 + i), 6)
        params["layers"].append({
            "wq": w(lk[0], (HIDDEN, HIDDEN)), "bq": jnp.zeros((HIDDEN,), jnp.float32),
            "wk": w(lk[1], (HIDDEN, HIDDEN)), "bk": jnp.zeros((HIDDEN,), jnp.float32),
            "wv": w(lk[2], (HIDDEN, HIDDEN)), "bv": jnp.zeros((HIDDEN,), jnp.float32),
            "wo": w(lk[3], (HIDDEN, HIDDEN)), "bo": jnp.zeros((HIDDEN,), jnp.float32),
            "ln1_g": jnp.ones((HIDDEN,), jnp.float32),
            "ln1_b": jnp.zeros((HIDDEN,), jnp.float32),
            "w1": w(lk[4], (HIDDEN, INTERMEDIATE)),
            "b1": jnp.zeros((INTERMEDIATE,), jnp.float32),
            "w2": w(lk[5], (INTERMEDIATE, HIDDEN)),
            "b2": jnp.zeros((HIDDEN,), jnp.float32),
            "ln2_g": jnp.ones((HIDDEN,), jnp.float32),
            "ln2_b": jnp.zeros((HIDDEN,), jnp.float32),
        })
    return params


def fuse_params(params):
    """One-time weight packing.

    - Per-head Q/K/V columns are placed at 128-lane-aligned offsets of one
      fused (H, NH*3*HEAD_PAD) QKV matrix (head_dim padded 16 -> 128 with
      zero columns), so head extraction inside the kernel is whole-vreg.
    - 1/sqrt(head_dim) is folded into the Q weights & bias.
    - The attention output projection is stored per head as (HEAD_PAD, H)
      (zero rows beyond head_dim), so the head merge is a matmul accumulate.
    - Classifier output padded to 128 lanes.
    """
    scale = 1.0 / math.sqrt(HEAD_DIM)
    layers = params["layers"]
    L, H, D, DP = N_LAYERS, HIDDEN, HEAD_DIM, HEAD_PAD

    wqkv = jnp.zeros((L, H, N_HEADS * 3 * DP), jnp.float32)
    bqkv = jnp.zeros((L, 1, N_HEADS * 3 * DP), jnp.float32)
    wo = jnp.zeros((L, N_HEADS, DP, H), jnp.float32)
    for li, ly in enumerate(layers):
        for h in range(N_HEADS):
            cs = slice(h * D, (h + 1) * D)
            base = h * 3 * DP
            wqkv = wqkv.at[li, :, base:base + D].set(ly["wq"][:, cs] * scale)
            wqkv = wqkv.at[li, :, base + DP:base + DP + D].set(ly["wk"][:, cs])
            wqkv = wqkv.at[li, :, base + 2 * DP:base + 2 * DP + D].set(ly["wv"][:, cs])
            bqkv = bqkv.at[li, 0, base:base + D].set(ly["bq"][cs] * scale)
            bqkv = bqkv.at[li, 0, base + DP:base + DP + D].set(ly["bk"][cs])
            bqkv = bqkv.at[li, 0, base + 2 * DP:base + 2 * DP + D].set(ly["bv"][cs])
            wo = wo.at[li, h, :D, :].set(ly["wo"][cs, :])

    f = {
        "word_emb": params["word_emb"],
        "pos_emb": params["pos_emb"],
        "type_emb": params["type_emb"],
        "emb_ln_g": params["emb_ln_g"].reshape(1, H),
        "emb_ln_b": params["emb_ln_b"].reshape(1, H),
        "wqkv": wqkv, "bqkv": bqkv, "wo": wo,
        "bo": jnp.stack([ly["bo"][None, :] for ly in layers]),
        "ln1_g": jnp.stack([ly["ln1_g"][None, :] for ly in layers]),
        "ln1_b": jnp.stack([ly["ln1_b"][None, :] for ly in layers]),
        "w1": jnp.stack([ly["w1"] for ly in layers]),
        "b1": jnp.stack([ly["b1"][None, :] for ly in layers]),
        "w2": jnp.stack([ly["w2"] for ly in layers]),
        "b2": jnp.stack([ly["b2"][None, :] for ly in layers]),
        "ln2_g": jnp.stack([ly["ln2_g"][None, :] for ly in layers]),
        "ln2_b": jnp.stack([ly["ln2_b"][None, :] for ly in layers]),
        "pooler_w": params["pooler_w"],
        "pooler_b": params["pooler_b"].reshape(1, H),
        "out_w_pad": jnp.zeros((H, CLS_PAD), jnp.float32)
                        .at[:, :N_CLASSES].set(params["out_w"]),
        "out_b_pad": jnp.zeros((1, CLS_PAD), jnp.float32)
                        .at[0, :N_CLASSES].set(params["out_b"]),
    }
    return f


if __name__ == "__main__":
    key = jax.random.PRNGKey(0)
    pkey, ikey = jax.random.split(key)
    params = init_params(pkey)
    fused = fuse_params(params)

    B, S = 2, 8
    input_ids = jax.random.randint(ikey, (B, S), 0, VOCAB, dtype=jnp.int32)
    attention_mask = jnp.array(
        [[1, 1, 1, 1, 1, 1, 1, 1],
         [1, 1, 1, 1, 1, 1, 0, 0]], dtype=jnp.int32)

    logits = forward(fused, input_ids, attention_mask)
    jax.block_until_ready(logits)
    assert logits.shape == (B, N_CLASSES)
    assert bool(jnp.all(jnp.isfinite(logits)))
    print("KERNEL_OK")
</pallas_src>

<mosaic_0001>
module attributes {stable_mosaic.version = 11 : i64} {
  func.func @_model_kernel(%arg0: memref<16x32xf32, #tpu.memory_space<vmem>>, %arg1: memref<16x16xf32, #tpu.memory_space<vmem>>, %arg2: memref<1x32xf32, #tpu.memory_space<vmem>>, %arg3: memref<1x32xf32, #tpu.memory_space<vmem>>, %arg4: memref<2x32x768xf32, #tpu.memory_space<vmem>>, %arg5: memref<2x1x768xf32, #tpu.memory_space<vmem>>, %arg6: memref<2x2x128x32xf32, #tpu.memory_space<vmem>>, %arg7: memref<2x1x32xf32, #tpu.memory_space<vmem>>, %arg8: memref<2x1x32xf32, #tpu.memory_space<vmem>>, %arg9: memref<2x1x32xf32, #tpu.memory_space<vmem>>, %arg10: memref<2x32x64xf32, #tpu.memory_space<vmem>>, %arg11: memref<2x1x64xf32, #tpu.memory_space<vmem>>, %arg12: memref<2x64x32xf32, #tpu.memory_space<vmem>>, %arg13: memref<2x1x32xf32, #tpu.memory_space<vmem>>, %arg14: memref<2x1x32xf32, #tpu.memory_space<vmem>>, %arg15: memref<2x1x32xf32, #tpu.memory_space<vmem>>, %arg16: memref<32x32xf32, #tpu.memory_space<vmem>>, %arg17: memref<1x32xf32, #tpu.memory_space<vmem>>, %arg18: memref<32x128xf32, #tpu.memory_space<vmem>>, %arg19: memref<1x128xf32, #tpu.memory_space<vmem>>, %arg20: memref<16x128xf32, #tpu.memory_space<vmem>>) attributes {dimension_semantics = [], scalar_prefetch = 0 : i64, scratch_operands = 0 : i64, tpu.core_type = #tpu.core_type<tc>} {
    %c0 = arith.constant 0 : index
    %c0_0 = arith.constant 0 : index
    %0 = vector.load %arg0[%c0, %c0_0] : memref<16x32xf32, #tpu.memory_space<vmem>>, vector<16x32xf32>
    %c0_1 = arith.constant 0 : index
    %c0_2 = arith.constant 0 : index
    %1 = vector.load %arg2[%c0_1, %c0_2] : memref<1x32xf32, #tpu.memory_space<vmem>>, vector<1x32xf32>
    %c0_3 = arith.constant 0 : index
    %c0_4 = arith.constant 0 : index
    %2 = vector.load %arg3[%c0_3, %c0_4] : memref<1x32xf32, #tpu.memory_space<vmem>>, vector<1x32xf32>
    %cst = arith.constant dense<0.000000e+00> : vector<16xf32>
    %3 = vector.multi_reduction <add>, %0, %cst [1] : vector<16x32xf32> to vector<16xf32>
    %4 = vector.shape_cast %3 : vector<16xf32> to vector<16x1xf32>
    %cst_5 = arith.constant 3.200000e+01 : f32
    %5 = vector.broadcast %cst_5 : f32 to vector<16x1xf32>
    %6 = arith.divf %4, %5 : vector<16x1xf32>
    %7 = vector.broadcast %6 : vector<16x1xf32> to vector<16x32xf32>
    %8 = arith.subf %0, %7 : vector<16x32xf32>
    %9 = arith.mulf %8, %8 : vector<16x32xf32>
    %cst_6 = arith.constant dense<0.000000e+00> : vector<16xf32>
    %10 = vector.multi_reduction <add>, %9, %cst_6 [1] : vector<16x32xf32> to vector<16xf32>
    %11 = vector.shape_cast %10 : vector<16xf32> to vector<16x1xf32>
    %cst_7 = arith.constant 3.200000e+01 : f32
    %12 = vector.broadcast %cst_7 : f32 to vector<16x1xf32>
    %13 = arith.divf %11, %12 : vector<16x1xf32>
    %14 = vector.broadcast %6 : vector<16x1xf32> to vector<16x32xf32>
    %15 = arith.subf %0, %14 : vector<16x32xf32>
    %cst_8 = arith.constant 9.99999996E-13 : f32
    %16 = vector.broadcast %cst_8 : f32 to vector<16x1xf32>
    %17 = arith.addf %13, %16 : vector<16x1xf32>
    %18 = math.rsqrt %17 : vector<16x1xf32>
    %19 = vector.broadcast %18 : vector<16x1xf32> to vector<16x32xf32>
    %20 = arith.mulf %15, %19 : vector<16x32xf32>
    %21 = vector.broadcast %1 : vector<1x32xf32> to vector<16x32xf32>
    %22 = arith.mulf %20, %21 : vector<16x32xf32>
    %23 = vector.broadcast %2 : vector<1x32xf32> to vector<16x32xf32>
    %24 = arith.addf %22, %23 : vector<16x32xf32>
    %c0_9 = arith.constant 0 : index
    %c0_10 = arith.constant 0 : index
    %25 = vector.load %arg1[%c0_9, %c0_10] : memref<16x16xf32, #tpu.memory_space<vmem>>, vector<16x16xf32>
    %c0_11 = arith.constant 0 : index
    %c0_12 = arith.constant 0 : index
    %c0_13 = arith.constant 0 : index
    %26 = vector.load %arg4[%c0_11, %c0_12, %c0_13] : memref<2x32x768xf32, #tpu.memory_space<vmem>>, vector<1x32x768xf32>
    %27 = vector.shape_cast %26 : vector<1x32x768xf32> to vector<32x768xf32>
    %cst_14 = arith.constant dense<0.000000e+00> : vector<16x768xf32>
    %28 = tpu.matmul %24, %27, %cst_14 {dimension_numbers = #tpu.dot_dimension_numbers<[1], [0], [0], [1], [0, 0, 1, 1], [], []>} : vector<16x32xf32>, vector<32x768xf32>, vector<16x768xf32> -> vector<16x768xf32>
    %c0_15 = arith.constant 0 : index
    %c0_16 = arith.constant 0 : index
    %c0_17 = arith.constant 0 : index
    %29 = vector.load %arg5[%c0_15, %c0_16, %c0_17] : memref<2x1x768xf32, #tpu.memory_space<vmem>>, vector<1x1x768xf32>
    %30 = vector.shape_cast %29 : vector<1x1x768xf32> to vector<1x768xf32>
    %31 = vector.broadcast %30 : vector<1x768xf32> to vector<16x768xf32>
    %32 = arith.addf %28, %31 : vector<16x768xf32>
    %33 = vector.extract_strided_slice %32 {offsets = [0, 0], sizes = [16, 128], strides = [1, 1]} : vector<16x768xf32> to vector<16x128xf32>
    %34 = vector.extract_strided_slice %32 {offsets = [0, 128], sizes = [16, 128], strides = [1, 1]} : vector<16x768xf32> to vector<16x128xf32>
    %35 = vector.extract_strided_slice %32 {offsets = [0, 256], sizes = [16, 128], strides = [1, 1]} : vector<16x768xf32> to vector<16x128xf32>
    %cst_18 = arith.constant dense<0.000000e+00> : vector<16x16xf32>
    %36 = tpu.matmul %33, %34, %cst_18 {dimension_numbers = #tpu.dot_dimension_numbers<[1], [1], [0], [0], [0, 0, 1, 0], [], []>} : vector<16x128xf32>, vector<16x128xf32>, vector<16x16xf32> -> vector<16x16xf32>
    %37 = arith.addf %36, %25 : vector<16x16xf32>
    %cst_19 = arith.constant dense<0xFF800000> : vector<16xf32>
    %38 = vector.multi_reduction <maximumf>, %37, %cst_19 [1] : vector<16x16xf32> to vector<16xf32>
    %39 = vector.shape_cast %38 : vector<16xf32> to vector<16x1xf32>
    %40 = vector.broadcast %39 : vector<16x1xf32> to vector<16x16xf32>
    %41 = arith.subf %37, %40 : vector<16x16xf32>
    %42 = math.exp %41 : vector<16x16xf32>
    %cst_20 = arith.constant dense<0.000000e+00> : vector<16xf32>
    %43 = vector.multi_reduction <add>, %42, %cst_20 [1] : vector<16x16xf32> to vector<16xf32>
    %44 = vector.shape_cast %43 : vector<16xf32> to vector<16x1xf32>
    %45 = tpu.reciprocal %44 : vector<16x1xf32> -> vector<16x1xf32>
    %46 = vector.broadcast %45 : vector<16x1xf32> to vector<16x16xf32>
    %47 = arith.mulf %42, %46 : vector<16x16xf32>
    %cst_21 = arith.constant dense<0.000000e+00> : vector<16x128xf32>
    %48 = tpu.matmul %47, %35, %cst_21 {dimension_numbers = #tpu.dot_dimension_numbers<[1], [0], [0], [1], [0, 0, 1, 1], [], []>} : vector<16x16xf32>, vector<16x128xf32>, vector<16x128xf32> -> vector<16x128xf32>
    %c0_22 = arith.constant 0 : index
    %c0_23 = arith.constant 0 : index
    %c0_24 = arith.constant 0 : index
    %c0_25 = arith.constant 0 : index
    %49 = vector.load %arg6[%c0_22, %c0_23, %c0_24, %c0_25] : memref<2x2x128x32xf32, #tpu.memory_space<vmem>>, vector<1x1x128x32xf32>
    %50 = vector.shape_cast %49 : vector<1x1x128x32xf32> to vector<128x32xf32>
    %cst_26 = arith.constant dense<0.000000e+00> : vector<16x32xf32>
    %51 = tpu.matmul %48, %50, %cst_26 {dimension_numbers = #tpu.dot_dimension_numbers<[1], [0], [0], [1], [0, 0, 1, 1], [], []>} : vector<16x128xf32>, vector<128x32xf32>, vector<16x32xf32> -> vector<16x32xf32>
    %52 = vector.extract_strided_slice %32 {offsets = [0, 384], sizes = [16, 128], strides = [1, 1]} : vector<16x768xf32> to vector<16x128xf32>
    %53 = vector.extract_strided_slice %32 {offsets = [0, 512], sizes = [16, 128], strides = [1, 1]} : vector<16x768xf32> to vector<16x128xf32>
    %54 = vector.extract_strided_slice %32 {offsets = [0, 640], sizes = [16, 128], strides = [1, 1]} : vector<16x768xf32> to vector<16x128xf32>
    %cst_27 = arith.constant dense<0.000000e+00> : vector<16x16xf32>
    %55 = tpu.matmul %52, %53, %cst_27 {dimension_numbers = #tpu.dot_dimension_numbers<[1], [1], [0], [0], [0, 0, 1, 0], [], []>} : vector<16x128xf32>, vector<16x128xf32>, vector<16x16xf32> -> vector<16x16xf32>
    %56 = arith.addf %55, %25 : vector<16x16xf32>
    %cst_28 = arith.constant dense<0xFF800000> : vector<16xf32>
    %57 = vector.multi_reduction <maximumf>, %56, %cst_28 [1] : vector<16x16xf32> to vector<16xf32>
    %58 = vector.shape_cast %57 : vector<16xf32> to vector<16x1xf32>
    %59 = vector.broadcast %58 : vector<16x1xf32> to vector<16x16xf32>
    %60 = arith.subf %56, %59 : vector<16x16xf32>
    %61 = math.exp %60 : vector<16x16xf32>
    %cst_29 = arith.constant dense<0.000000e+00> : vector<16xf32>
    %62 = vector.multi_reduction <add>, %61, %cst_29 [1] : vector<16x16xf32> to vector<16xf32>
    %63 = vector.shape_cast %62 : vector<16xf32> to vector<16x1xf32>
    %64 = tpu.reciprocal %63 : vector<16x1xf32> -> vector<16x1xf32>
    %65 = vector.broadcast %64 : vector<16x1xf32> to vector<16x16xf32>
    %66 = arith.mulf %61, %65 : vector<16x16xf32>
    %cst_30 = arith.constant dense<0.000000e+00> : vector<16x128xf32>
    %67 = tpu.matmul %66, %54, %cst_30 {dimension_numbers = #tpu.dot_dimension_numbers<[1], [0], [0], [1], [0, 0, 1, 1], [], []>} : vector<16x16xf32>, vector<16x128xf32>, vector<16x128xf32> -> vector<16x128xf32>
    %c0_31 = arith.constant 0 : index
    %c1 = arith.constant 1 : index
    %c0_32 = arith.constant 0 : index
    %c0_33 = arith.constant 0 : index
    %68 = vector.load %arg6[%c0_31, %c1, %c0_32, %c0_33] : memref<2x2x128x32xf32, #tpu.memory_space<vmem>>, vector<1x1x128x32xf32>
    %69 = vector.shape_cast %68 : vector<1x1x128x32xf32> to vector<128x32xf32>
    %cst_34 = arith.constant dense<0.000000e+00> : vector<16x32xf32>
    %70 = tpu.matmul %67, %69, %cst_34 {dimension_numbers = #tpu.dot_dimension_numbers<[1], [0], [0], [1], [0, 0, 1, 1], [], []>} : vector<16x128xf32>, vector<128x32xf32>, vector<16x32xf32> -> vector<16x32xf32>
    %71 = arith.addf %51, %70 : vector<16x32xf32>
    %c0_35 = arith.constant 0 : index
    %c0_36 = arith.constant 0 : index
    %c0_37 = arith.constant 0 : index
    %72 = vector.load %arg7[%c0_35, %c0_36, %c0_37] : memref<2x1x32xf32, #tpu.memory_space<vmem>>, vector<1x1x32xf32>
    %73 = vector.shape_cast %72 : vector<1x1x32xf32> to vector<1x32xf32>
    %74 = vector.broadcast %73 : vector<1x32xf32> to vector<16x32xf32>
    %75 = arith.addf %71, %74 : vector<16x32xf32>
    %76 = arith.addf %75, %24 : vector<16x32xf32>
    %c0_38 = arith.constant 0 : index
    %c0_39 = arith.constant 0 : index
    %c0_40 = arith.constant 0 : index
    %77 = vector.load %arg8[%c0_38, %c0_39, %c0_40] : memref<2x1x32xf32, #tpu.memory_space<vmem>>, vector<1x1x32xf32>
    %78 = vector.shape_cast %77 : vector<1x1x32xf32> to vector<1x32xf32>
    %c0_41 = arith.constant 0 : index
    %c0_42 = arith.constant 0 : index
    %c0_43 = arith.constant 0 : index
    %79 = vector.load %arg9[%c0_41, %c0_42, %c0_43] : memref<2x1x32xf32, #tpu.memory_space<vmem>>, vector<1x1x32xf32>
    %80 = vector.shape_cast %79 : vector<1x1x32xf32> to vector<1x32xf32>
    %cst_44 = arith.constant dense<0.000000e+00> : vector<16xf32>
    %81 = vector.multi_reduction <add>, %76, %cst_44 [1] : vector<16x32xf32> to vector<16xf32>
    %82 = vector.shape_cast %81 : vector<16xf32> to vector<16x1xf32>
    %cst_45 = arith.constant 3.200000e+01 : f32
    %83 = vector.broadcast %cst_45 : f32 to vector<16x1xf32>
    %84 = arith.divf %82, %83 : vector<16x1xf32>
    %85 = vector.broadcast %84 : vector<16x1xf32> to vector<16x32xf32>
    %86 = arith.subf %76, %85 : vector<16x32xf32>
    %87 = arith.mulf %86, %86 : vector<16x32xf32>
    %cst_46 = arith.constant dense<0.000000e+00> : vector<16xf32>
    %88 = vector.multi_reduction <add>, %87, %cst_46 [1] : vector<16x32xf32> to vector<16xf32>
    %89 = vector.shape_cast %88 : vector<16xf32> to vector<16x1xf32>
    %cst_47 = arith.constant 3.200000e+01 : f32
    %90 = vector.broadcast %cst_47 : f32 to vector<16x1xf32>
    %91 = arith.divf %89, %90 : vector<16x1xf32>
    %92 = vector.broadcast %84 : vector<16x1xf32> to vector<16x32xf32>
    %93 = arith.subf %76, %92 : vector<16x32xf32>
    %cst_48 = arith.constant 9.99999996E-13 : f32
    %94 = vector.broadcast %cst_48 : f32 to vector<16x1xf32>
    %95 = arith.addf %91, %94 : vector<16x1xf32>
    %96 = math.rsqrt %95 : vector<16x1xf32>
    %97 = vector.broadcast %96 : vector<16x1xf32> to vector<16x32xf32>
    %98 = arith.mulf %93, %97 : vector<16x32xf32>
    %99 = vector.broadcast %78 : vector<1x32xf32> to vector<16x32xf32>
    %100 = arith.mulf %98, %99 : vector<16x32xf32>
    %101 = vector.broadcast %80 : vector<1x32xf32> to vector<16x32xf32>
    %102 = arith.addf %100, %101 : vector<16x32xf32>
    %c0_49 = arith.constant 0 : index
    %c0_50 = arith.constant 0 : index
    %c0_51 = arith.constant 0 : index
    %103 = vector.load %arg10[%c0_49, %c0_50, %c0_51] : memref<2x32x64xf32, #tpu.memory_space<vmem>>, vector<1x32x64xf32>
    %104 = vector.shape_cast %103 : vector<1x32x64xf32> to vector<32x64xf32>
    %cst_52 = arith.constant dense<0.000000e+00> : vector<16x64xf32>
    %105 = tpu.matmul %102, %104, %cst_52 {dimension_numbers = #tpu.dot_dimension_numbers<[1], [0], [0], [1], [0, 0, 1, 1], [], []>} : vector<16x32xf32>, vector<32x64xf32>, vector<16x64xf32> -> vector<16x64xf32>
    %c0_53 = arith.constant 0 : index
    %c0_54 = arith.constant 0 : index
    %c0_55 = arith.constant 0 : index
    %106 = vector.load %arg11[%c0_53, %c0_54, %c0_55] : memref<2x1x64xf32, #tpu.memory_space<vmem>>, vector<1x1x64xf32>
    %107 = vector.shape_cast %106 : vector<1x1x64xf32> to vector<1x64xf32>
    %108 = vector.broadcast %107 : vector<1x64xf32> to vector<16x64xf32>
    %109 = arith.addf %105, %108 : vector<16x64xf32>
    %cst_56 = arith.constant 5.000000e-01 : f32
    %110 = vector.broadcast %cst_56 : f32 to vector<16x64xf32>
    %111 = arith.mulf %110, %109 : vector<16x64xf32>
    %cst_57 = arith.constant 4.471500e-02 : f32
    %112 = vector.broadcast %cst_57 : f32 to vector<16x64xf32>
    %113 = arith.mulf %112, %109 : vector<16x64xf32>
    %114 = arith.mulf %113, %109 : vector<16x64xf32>
    %115 = arith.mulf %114, %109 : vector<16x64xf32>
    %116 = arith.addf %109, %115 : vector<16x64xf32>
    %cst_58 = arith.constant 0.797884583 : f32
    %117 = vector.broadcast %cst_58 : f32 to vector<16x64xf32>
    %118 = arith.mulf %117, %116 : vector<16x64xf32>
    %119 = math.tanh %118 : vector<16x64xf32>
    %cst_59 = arith.constant 1.000000e+00 : f32
    %120 = vector.broadcast %cst_59 : f32 to vector<16x64xf32>
    %121 = arith.addf %120, %119 : vector<16x64xf32>
    %122 = arith.mulf %111, %121 : vector<16x64xf32>
    %c0_60 = arith.constant 0 : index
    %c0_61 = arith.constant 0 : index
    %c0_62 = arith.constant 0 : index
    %123 = vector.load %arg12[%c0_60, %c0_61, %c0_62] : memref<2x64x32xf32, #tpu.memory_space<vmem>>, vector<1x64x32xf32>
    %124 = vector.shape_cast %123 : vector<1x64x32xf32> to vector<64x32xf32>
    %cst_63 = arith.constant dense<0.000000e+00> : vector<16x32xf32>
    %125 = tpu.matmul %122, %124, %cst_63 {dimension_numbers = #tpu.dot_dimension_numbers<[1], [0], [0], [1], [0, 0, 1, 1], [], []>} : vector<16x64xf32>, vector<64x32xf32>, vector<16x32xf32> -> vector<16x32xf32>
    %c0_64 = arith.constant 0 : index
    %c0_65 = arith.constant 0 : index
    %c0_66 = arith.constant 0 : index
    %126 = vector.load %arg13[%c0_64, %c0_65, %c0_66] : memref<2x1x32xf32, #tpu.memory_space<vmem>>, vector<1x1x32xf32>
    %127 = vector.shape_cast %126 : vector<1x1x32xf32> to vector<1x32xf32>
    %128 = vector.broadcast %127 : vector<1x32xf32> to vector<16x32xf32>
    %129 = arith.addf %125, %128 : vector<16x32xf32>
    %130 = arith.addf %129, %102 : vector<16x32xf32>
    %c0_67 = arith.constant 0 : index
    %c0_68 = arith.constant 0 : index
    %c0_69 = arith.constant 0 : index
    %131 = vector.load %arg14[%c0_67, %c0_68, %c0_69] : memref<2x1x32xf32, #tpu.memory_space<vmem>>, vector<1x1x32xf32>
    %132 = vector.shape_cast %131 : vector<1x1x32xf32> to vector<1x32xf32>
    %c0_70 = arith.constant 0 : index
    %c0_71 = arith.constant 0 : index
    %c0_72 = arith.constant 0 : index
    %133 = vector.load %arg15[%c0_70, %c0_71, %c0_72] : memref<2x1x32xf32, #tpu.memory_space<vmem>>, vector<1x1x32xf32>
    %134 = vector.shape_cast %133 : vector<1x1x32xf32> to vector<1x32xf32>
    %cst_73 = arith.constant dense<0.000000e+00> : vector<16xf32>
    %135 = vector.multi_reduction <add>, %130, %cst_73 [1] : vector<16x32xf32> to vector<16xf32>
    %136 = vector.shape_cast %135 : vector<16xf32> to vector<16x1xf32>
    %cst_74 = arith.constant 3.200000e+01 : f32
    %137 = vector.broadcast %cst_74 : f32 to vector<16x1xf32>
    %138 = arith.divf %136, %137 : vector<16x1xf32>
    %139 = vector.broadcast %138 : vector<16x1xf32> to vector<16x32xf32>
    %140 = arith.subf %130, %139 : vector<16x32xf32>
    %141 = arith.mulf %140, %140 : vector<16x32xf32>
    %cst_75 = arith.constant dense<0.000000e+00> : vector<16xf32>
    %142 = vector.multi_reduction <add>, %141, %cst_75 [1] : vector<16x32xf32> to vector<16xf32>
    %143 = vector.shape_cast %142 : vector<16xf32> to vector<16x1xf32>
    %cst_76 = arith.constant 3.200000e+01 : f32
    %144 = vector.broadcast %cst_76 : f32 to vector<16x1xf32>
    %145 = arith.divf %143, %144 : vector<16x1xf32>
    %146 = vector.broadcast %138 : vector<16x1xf32> to vector<16x32xf32>
    %147 = arith.subf %130, %146 : vector<16x32xf32>
    %cst_77 = arith.constant 9.99999996E-13 : f32
    %148 = vector.broadcast %cst_77 : f32 to vector<16x1xf32>
    %149 = arith.addf %145, %148 : vector<16x1xf32>
    %150 = math.rsqrt %149 : vector<16x1xf32>
    %151 = vector.broadcast %150 : vector<16x1xf32> to vector<16x32xf32>
    %152 = arith.mulf %147, %151 : vector<16x32xf32>
    %153 = vector.broadcast %132 : vector<1x32xf32> to vector<16x32xf32>
    %154 = arith.mulf %152, %153 : vector<16x32xf32>
    %155 = vector.broadcast %134 : vector<1x32xf32> to vector<16x32xf32>
    %156 = arith.addf %154, %155 : vector<16x32xf32>
    %c1_78 = arith.constant 1 : index
    %c0_79 = arith.constant 0 : index
    %c0_80 = arith.constant 0 : index
    %157 = vector.load %arg4[%c1_78, %c0_79, %c0_80] : memref<2x32x768xf32, #tpu.memory_space<vmem>>, vector<1x32x768xf32>
    %158 = vector.shape_cast %157 : vector<1x32x768xf32> to vector<32x768xf32>
    %cst_81 = arith.constant dense<0.000000e+00> : vector<16x768xf32>
    %159 = tpu.matmul %156, %158, %cst_81 {dimension_numbers = #tpu.dot_dimension_numbers<[1], [0], [0], [1], [0, 0, 1, 1], [], []>} : vector<16x32xf32>, vector<32x768xf32>, vector<16x768xf32> -> vector<16x768xf32>
    %c1_82 = arith.constant 1 : index
    %c0_83 = arith.constant 0 : index
    %c0_84 = arith.constant 0 : index
    %160 = vector.load %arg5[%c1_82, %c0_83, %c0_84] : memref<2x1x768xf32, #tpu.memory_space<vmem>>, vector<1x1x768xf32>
    %161 = vector.shape_cast %160 : vector<1x1x768xf32> to vector<1x768xf32>
    %162 = vector.broadcast %161 : vector<1x768xf32> to vector<16x768xf32>
    %163 = arith.addf %159, %162 : vector<16x768xf32>
    %164 = vector.extract_strided_slice %163 {offsets = [0, 0], sizes = [16, 128], strides = [1, 1]} : vector<16x768xf32> to vector<16x128xf32>
    %165 = vector.extract_strided_slice %163 {offsets = [0, 128], sizes = [16, 128], strides = [1, 1]} : vector<16x768xf32> to vector<16x128xf32>
    %166 = vector.extract_strided_slice %163 {offsets = [0, 256], sizes = [16, 128], strides = [1, 1]} : vector<16x768xf32> to vector<16x128xf32>
    %cst_85 = arith.constant dense<0.000000e+00> : vector<16x16xf32>
    %167 = tpu.matmul %164, %165, %cst_85 {dimension_numbers = #tpu.dot_dimension_numbers<[1], [1], [0], [0], [0, 0, 1, 0], [], []>} : vector<16x128xf32>, vector<16x128xf32>, vector<16x16xf32> -> vector<16x16xf32>
    %168 = arith.addf %167, %25 : vector<16x16xf32>
    %cst_86 = arith.constant dense<0xFF800000> : vector<16xf32>
    %169 = vector.multi_reduction <maximumf>, %168, %cst_86 [1] : vector<16x16xf32> to vector<16xf32>
    %170 = vector.shape_cast %169 : vector<16xf32> to vector<16x1xf32>
    %171 = vector.broadcast %170 : vector<16x1xf32> to vector<16x16xf32>
    %172 = arith.subf %168, %171 : vector<16x16xf32>
    %173 = math.exp %172 : vector<16x16xf32>
    %cst_87 = arith.constant dense<0.000000e+00> : vector<16xf32>
    %174 = vector.multi_reduction <add>, %173, %cst_87 [1] : vector<16x16xf32> to vector<16xf32>
    %175 = vector.shape_cast %174 : vector<16xf32> to vector<16x1xf32>
    %176 = tpu.reciprocal %175 : vector<16x1xf32> -> vector<16x1xf32>
    %177 = vector.broadcast %176 : vector<16x1xf32> to vector<16x16xf32>
    %178 = arith.mulf %173, %177 : vector<16x16xf32>
    %cst_88 = arith.constant dense<0.000000e+00> : vector<16x128xf32>
    %179 = tpu.matmul %178, %166, %cst_88 {dimension_numbers = #tpu.dot_dimension_numbers<[1], [0], [0], [1], [0, 0, 1, 1], [], []>} : vector<16x16xf32>, vector<16x128xf32>, vector<16x128xf32> -> vector<16x128xf32>
    %c1_89 = arith.constant 1 : index
    %c0_90 = arith.constant 0 : index
    %c0_91 = arith.constant 0 : index
    %c0_92 = arith.constant 0 : index
    %180 = vector.load %arg6[%c1_89, %c0_90, %c0_91, %c0_92] : memref<2x2x128x32xf32, #tpu.memory_space<vmem>>, vector<1x1x128x32xf32>
    %181 = vector.shape_cast %180 : vector<1x1x128x32xf32> to vector<128x32xf32>
    %cst_93 = arith.constant dense<0.000000e+00> : vector<16x32xf32>
    %182 = tpu.matmul %179, %181, %cst_93 {dimension_numbers = #tpu.dot_dimension_numbers<[1], [0], [0], [1], [0, 0, 1, 1], [], []>} : vector<16x128xf32>, vector<128x32xf32>, vector<16x32xf32> -> vector<16x32xf32>
    %183 = vector.extract_strided_slice %163 {offsets = [0, 384], sizes = [16, 128], strides = [1, 1]} : vector<16x768xf32> to vector<16x128xf32>
    %184 = vector.extract_strided_slice %163 {offsets = [0, 512], sizes = [16, 128], strides = [1, 1]} : vector<16x768xf32> to vector<16x128xf32>
    %185 = vector.extract_strided_slice %163 {offsets = [0, 640], sizes = [16, 128], strides = [1, 1]} : vector<16x768xf32> to vector<16x128xf32>
    %cst_94 = arith.constant dense<0.000000e+00> : vector<16x16xf32>
    %186 = tpu.matmul %183, %184, %cst_94 {dimension_numbers = #tpu.dot_dimension_numbers<[1], [1], [0], [0], [0, 0, 1, 0], [], []>} : vector<16x128xf32>, vector<16x128xf32>, vector<16x16xf32> -> vector<16x16xf32>
    %187 = arith.addf %186, %25 : vector<16x16xf32>
    %cst_95 = arith.constant dense<0xFF800000> : vector<16xf32>
    %188 = vector.multi_reduction <maximumf>, %187, %cst_95 [1] : vector<16x16xf32> to vector<16xf32>
    %189 = vector.shape_cast %188 : vector<16xf32> to vector<16x1xf32>
    %190 = vector.broadcast %189 : vector<16x1xf32> to vector<16x16xf32>
    %191 = arith.subf %187, %190 : vector<16x16xf32>
    %192 = math.exp %191 : vector<16x16xf32>
    %cst_96 = arith.constant dense<0.000000e+00> : vector<16xf32>
    %193 = vector.multi_reduction <add>, %192, %cst_96 [1] : vector<16x16xf32> to vector<16xf32>
    %194 = vector.shape_cast %193 : vector<16xf32> to vector<16x1xf32>
    %195 = tpu.reciprocal %194 : vector<16x1xf32> -> vector<16x1xf32>
    %196 = vector.broadcast %195 : vector<16x1xf32> to vector<16x16xf32>
    %197 = arith.mulf %192, %196 : vector<16x16xf32>
    %cst_97 = arith.constant dense<0.000000e+00> : vector<16x128xf32>
    %198 = tpu.matmul %197, %185, %cst_97 {dimension_numbers = #tpu.dot_dimension_numbers<[1], [0], [0], [1], [0, 0, 1, 1], [], []>} : vector<16x16xf32>, vector<16x128xf32>, vector<16x128xf32> -> vector<16x128xf32>
    %c1_98 = arith.constant 1 : index
    %c1_99 = arith.constant 1 : index
    %c0_100 = arith.constant 0 : index
    %c0_101 = arith.constant 0 : index
    %199 = vector.load %arg6[%c1_98, %c1_99, %c0_100, %c0_101] : memref<2x2x128x32xf32, #tpu.memory_space<vmem>>, vector<1x1x128x32xf32>
    %200 = vector.shape_cast %199 : vector<1x1x128x32xf32> to vector<128x32xf32>
    %cst_102 = arith.constant dense<0.000000e+00> : vector<16x32xf32>
    %201 = tpu.matmul %198, %200, %cst_102 {dimension_numbers = #tpu.dot_dimension_numbers<[1], [0], [0], [1], [0, 0, 1, 1], [], []>} : vector<16x128xf32>, vector<128x32xf32>, vector<16x32xf32> -> vector<16x32xf32>
    %202 = arith.addf %182, %201 : vector<16x32xf32>
    %c1_103 = arith.constant 1 : index
    %c0_104 = arith.constant 0 : index
    %c0_105 = arith.constant 0 : index
    %203 = vector.load %arg7[%c1_103, %c0_104, %c0_105] : memref<2x1x32xf32, #tpu.memory_space<vmem>>, vector<1x1x32xf32>
    %204 = vector.shape_cast %203 : vector<1x1x32xf32> to vector<1x32xf32>
    %205 = vector.broadcast %204 : vector<1x32xf32> to vector<16x32xf32>
    %206 = arith.addf %202, %205 : vector<16x32xf32>
    %207 = arith.addf %206, %156 : vector<16x32xf32>
    %c1_106 = arith.constant 1 : index
    %c0_107 = arith.constant 0 : index
    %c0_108 = arith.constant 0 : index
    %208 = vector.load %arg8[%c1_106, %c0_107, %c0_108] : memref<2x1x32xf32, #tpu.memory_space<vmem>>, vector<1x1x32xf32>
    %209 = vector.shape_cast %208 : vector<1x1x32xf32> to vector<1x32xf32>
    %c1_109 = arith.constant 1 : index
    %c0_110 = arith.constant 0 : index
    %c0_111 = arith.constant 0 : index
    %210 = vector.load %arg9[%c1_109, %c0_110, %c0_111] : memref<2x1x32xf32, #tpu.memory_space<vmem>>, vector<1x1x32xf32>
    %211 = vector.shape_cast %210 : vector<1x1x32xf32> to vector<1x32xf32>
    %cst_112 = arith.constant dense<0.000000e+00> : vector<16xf32>
    %212 = vector.multi_reduction <add>, %207, %cst_112 [1] : vector<16x32xf32> to vector<16xf32>
    %213 = vector.shape_cast %212 : vector<16xf32> to vector<16x1xf32>
    %cst_113 = arith.constant 3.200000e+01 : f32
    %214 = vector.broadcast %cst_113 : f32 to vector<16x1xf32>
    %215 = arith.divf %213, %214 : vector<16x1xf32>
    %216 = vector.broadcast %215 : vector<16x1xf32> to vector<16x32xf32>
    %217 = arith.subf %207, %216 : vector<16x32xf32>
    %218 = arith.mulf %217, %217 : vector<16x32xf32>
    %cst_114 = arith.constant dense<0.000000e+00> : vector<16xf32>
    %219 = vector.multi_reduction <add>, %218, %cst_114 [1] : vector<16x32xf32> to vector<16xf32>
    %220 = vector.shape_cast %219 : vector<16xf32> to vector<16x1xf32>
    %cst_115 = arith.constant 3.200000e+01 : f32
    %221 = vector.broadcast %cst_115 : f32 to vector<16x1xf32>
    %222 = arith.divf %220, %221 : vector<16x1xf32>
    %223 = vector.broadcast %215 : vector<16x1xf32> to vector<16x32xf32>
    %224 = arith.subf %207, %223 : vector<16x32xf32>
    %cst_116 = arith.constant 9.99999996E-13 : f32
    %225 = vector.broadcast %cst_116 : f32 to vector<16x1xf32>
    %226 = arith.addf %222, %225 : vector<16x1xf32>
    %227 = math.rsqrt %226 : vector<16x1xf32>
    %228 = vector.broadcast %227 : vector<16x1xf32> to vector<16x32xf32>
    %229 = arith.mulf %224, %228 : vector<16x32xf32>
    %230 = vector.broadcast %209 : vector<1x32xf32> to vector<16x32xf32>
    %231 = arith.mulf %229, %230 : vector<16x32xf32>
    %232 = vector.broadcast %211 : vector<1x32xf32> to vector<16x32xf32>
    %233 = arith.addf %231, %232 : vector<16x32xf32>
    %c1_117 = arith.constant 1 : index
    %c0_118 = arith.constant 0 : index
    %c0_119 = arith.constant 0 : index
    %234 = vector.load %arg10[%c1_117, %c0_118, %c0_119] : memref<2x32x64xf32, #tpu.memory_space<vmem>>, vector<1x32x64xf32>
    %235 = vector.shape_cast %234 : vector<1x32x64xf32> to vector<32x64xf32>
    %cst_120 = arith.constant dense<0.000000e+00> : vector<16x64xf32>
    %236 = tpu.matmul %233, %235, %cst_120 {dimension_numbers = #tpu.dot_dimension_numbers<[1], [0], [0], [1], [0, 0, 1, 1], [], []>} : vector<16x32xf32>, vector<32x64xf32>, vector<16x64xf32> -> vector<16x64xf32>
    %c1_121 = arith.constant 1 : index
    %c0_122 = arith.constant 0 : index
    %c0_123 = arith.constant 0 : index
    %237 = vector.load %arg11[%c1_121, %c0_122, %c0_123] : memref<2x1x64xf32, #tpu.memory_space<vmem>>, vector<1x1x64xf32>
    %238 = vector.shape_cast %237 : vector<1x1x64xf32> to vector<1x64xf32>
    %239 = vector.broadcast %238 : vector<1x64xf32> to vector<16x64xf32>
    %240 = arith.addf %236, %239 : vector<16x64xf32>
    %cst_124 = arith.constant 5.000000e-01 : f32
    %241 = vector.broadcast %cst_124 : f32 to vector<16x64xf32>
    %242 = arith.mulf %241, %240 : vector<16x64xf32>
    %cst_125 = arith.constant 4.471500e-02 : f32
    %243 = vector.broadcast %cst_125 : f32 to vector<16x64xf32>
    %244 = arith.mulf %243, %240 : vector<16x64xf32>
    %245 = arith.mulf %244, %240 : vector<16x64xf32>
    %246 = arith.mulf %245, %240 : vector<16x64xf32>
    %247 = arith.addf %240, %246 : vector<16x64xf32>
    %cst_126 = arith.constant 0.797884583 : f32
    %248 = vector.broadcast %cst_126 : f32 to vector<16x64xf32>
    %249 = arith.mulf %248, %247 : vector<16x64xf32>
    %250 = math.tanh %249 : vector<16x64xf32>
    %cst_127 = arith.constant 1.000000e+00 : f32
    %251 = vector.broadcast %cst_127 : f32 to vector<16x64xf32>
    %252 = arith.addf %251, %250 : vector<16x64xf32>
    %253 = arith.mulf %242, %252 : vector<16x64xf32>
    %c1_128 = arith.constant 1 : index
    %c0_129 = arith.constant 0 : index
    %c0_130 = arith.constant 0 : index
    %254 = vector.load %arg12[%c1_128, %c0_129, %c0_130] : memref<2x64x32xf32, #tpu.memory_space<vmem>>, vector<1x64x32xf32>
    %255 = vector.shape_cast %254 : vector<1x64x32xf32> to vector<64x32xf32>
    %cst_131 = arith.constant dense<0.000000e+00> : vector<16x32xf32>
    %256 = tpu.matmul %253, %255, %cst_131 {dimension_numbers = #tpu.dot_dimension_numbers<[1], [0], [0], [1], [0, 0, 1, 1], [], []>} : vector<16x64xf32>, vector<64x32xf32>, vector<16x32xf32> -> vector<16x32xf32>
    %c1_132 = arith.constant 1 : index
    %c0_133 = arith.constant 0 : index
    %c0_134 = arith.constant 0 : index
    %257 = vector.load %arg13[%c1_132, %c0_133, %c0_134] : memref<2x1x32xf32, #tpu.memory_space<vmem>>, vector<1x1x32xf32>
    %258 = vector.shape_cast %257 : vector<1x1x32xf32> to vector<1x32xf32>
    %259 = vector.broadcast %258 : vector<1x32xf32> to vector<16x32xf32>
    %260 = arith.addf %256, %259 : vector<16x32xf32>
    %261 = arith.addf %260, %233 : vector<16x32xf32>
    %c1_135 = arith.constant 1 : index
    %c0_136 = arith.constant 0 : index
    %c0_137 = arith.constant 0 : index
    %262 = vector.load %arg14[%c1_135, %c0_136, %c0_137] : memref<2x1x32xf32, #tpu.memory_space<vmem>>, vector<1x1x32xf32>
    %263 = vector.shape_cast %262 : vector<1x1x32xf32> to vector<1x32xf32>
    %c1_138 = arith.constant 1 : index
    %c0_139 = arith.constant 0 : index
    %c0_140 = arith.constant 0 : index
    %264 = vector.load %arg15[%c1_138, %c0_139, %c0_140] : memref<2x1x32xf32, #tpu.memory_space<vmem>>, vector<1x1x32xf32>
    %265 = vector.shape_cast %264 : vector<1x1x32xf32> to vector<1x32xf32>
    %cst_141 = arith.constant dense<0.000000e+00> : vector<16xf32>
    %266 = vector.multi_reduction <add>, %261, %cst_141 [1] : vector<16x32xf32> to vector<16xf32>
    %267 = vector.shape_cast %266 : vector<16xf32> to vector<16x1xf32>
    %cst_142 = arith.constant 3.200000e+01 : f32
    %268 = vector.broadcast %cst_142 : f32 to vector<16x1xf32>
    %269 = arith.divf %267, %268 : vector<16x1xf32>
    %270 = vector.broadcast %269 : vector<16x1xf32> to vector<16x32xf32>
    %271 = arith.subf %261, %270 : vector<16x32xf32>
    %272 = arith.mulf %271, %271 : vector<16x32xf32>
    %cst_143 = arith.constant dense<0.000000e+00> : vector<16xf32>
    %273 = vector.multi_reduction <add>, %272, %cst_143 [1] : vector<16x32xf32> to vector<16xf32>
    %274 = vector.shape_cast %273 : vector<16xf32> to vector<16x1xf32>
    %cst_144 = arith.constant 3.200000e+01 : f32
    %275 = vector.broadcast %cst_144 : f32 to vector<16x1xf32>
    %276 = arith.divf %274, %275 : vector<16x1xf32>
    %277 = vector.broadcast %269 : vector<16x1xf32> to vector<16x32xf32>
    %278 = arith.subf %261, %277 : vector<16x32xf32>
    %cst_145 = arith.constant 9.99999996E-13 : f32
    %279 = vector.broadcast %cst_145 : f32 to vector<16x1xf32>
    %280 = arith.addf %276, %279 : vector<16x1xf32>
    %281 = math.rsqrt %280 : vector<16x1xf32>
    %282 = vector.broadcast %281 : vector<16x1xf32> to vector<16x32xf32>
    %283 = arith.mulf %278, %282 : vector<16x32xf32>
    %284 = vector.broadcast %263 : vector<1x32xf32> to vector<16x32xf32>
    %285 = arith.mulf %283, %284 : vector<16x32xf32>
    %286 = vector.broadcast %265 : vector<1x32xf32> to vector<16x32xf32>
    %287 = arith.addf %285, %286 : vector<16x32xf32>
    %c0_146 = arith.constant 0 : index
    %c0_147 = arith.constant 0 : index
    %288 = vector.load %arg16[%c0_146, %c0_147] : memref<32x32xf32, #tpu.memory_space<vmem>>, vector<32x32xf32>
    %cst_148 = arith.constant dense<0.000000e+00> : vector<16x32xf32>
    %289 = tpu.matmul %287, %288, %cst_148 {dimension_numbers = #tpu.dot_dimension_numbers<[1], [0], [0], [1], [0, 0, 1, 1], [], []>} : vector<16x32xf32>, vector<32x32xf32>, vector<16x32xf32> -> vector<16x32xf32>
    %c0_149 = arith.constant 0 : index
    %c0_150 = arith.constant 0 : index
    %290 = vector.load %arg17[%c0_149, %c0_150] : memref<1x32xf32, #tpu.memory_space<vmem>>, vector<1x32xf32>
    %291 = vector.broadcast %290 : vector<1x32xf32> to vector<16x32xf32>
    %292 = arith.addf %289, %291 : vector<16x32xf32>
    %293 = math.tanh %292 : vector<16x32xf32>
    %c0_151 = arith.constant 0 : index
    %c0_152 = arith.constant 0 : index
    %294 = vector.load %arg18[%c0_151, %c0_152] : memref<32x128xf32, #tpu.memory_space<vmem>>, vector<32x128xf32>
    %cst_153 = arith.constant dense<0.000000e+00> : vector<16x128xf32>
    %295 = tpu.matmul %293, %294, %cst_153 {dimension_numbers = #tpu.dot_dimension_numbers<[1], [0], [0], [1], [0, 0, 1, 1], [], []>} : vector<16x32xf32>, vector<32x128xf32>, vector<16x128xf32> -> vector<16x128xf32>
    %c0_154 = arith.constant 0 : index
    %c0_155 = arith.constant 0 : index
    %296 = vector.load %arg19[%c0_154, %c0_155] : memref<1x128xf32, #tpu.memory_space<vmem>>, vector<1x128xf32>
    %297 = vector.broadcast %296 : vector<1x128xf32> to vector<16x128xf32>
    %298 = arith.addf %295, %297 : vector<16x128xf32>
    %c0_156 = arith.constant 0 : index
    %c0_157 = arith.constant 0 : index
    %299 = vector.load %arg20[%c0_156, %c0_157] : memref<16x128xf32, #tpu.memory_space<vmem>>, vector<16x128xf32>
    tpu.vector_store %arg20[%c0_156, %c0_157], %298 {strides = array<i32>} : memref<16x128xf32, #tpu.memory_space<vmem>>, vector<16x128xf32>,
    return
  }
}

</mosaic_0001>

<llo_original>
// kernel: tpu_custom_call.1
$region0: #{tpu_custom_call.1}
  #allocation0 [shape = 'u32[]', space=smem, size = 0x4, offset = 0x4, fixed_abs, tag = 'smem constant byte address 0x4 - core index']
  #allocation1 [shape = 'u32[144,128]{1,0:T(1,128)}', space=vmem, size = 0x12000, scoped, tag = 'internal scratch']
  %s0 = inlined_call_operand.vmem [shape: f32[16,32], index: 0, kind: input, shape index: {}]
  %s1 = inlined_call_operand.vmem [shape: f32[16,16], index: 1, kind: input, shape index: {}]
  %s2 = inlined_call_operand.vmem [shape: f32[1,32], index: 2, kind: input, shape index: {}]
  %s3 = inlined_call_operand.vmem [shape: f32[1,32], index: 3, kind: input, shape index: {}]
  %s4 = inlined_call_operand.vmem [shape: f32[2,32,768], index: 4, kind: input, shape index: {}]
  %s5 = inlined_call_operand.vmem [shape: f32[2,1,768], index: 5, kind: input, shape index: {}]
  %s6 = inlined_call_operand.vmem [shape: f32[2,2,128,32], index: 6, kind: input, shape index: {}]
  %s7 = inlined_call_operand.vmem [shape: f32[2,1,32], index: 7, kind: input, shape index: {}]
  %s8 = inlined_call_operand.vmem [shape: f32[2,1,32], index: 8, kind: input, shape index: {}]
  %s9 = inlined_call_operand.vmem [shape: f32[2,1,32], index: 9, kind: input, shape index: {}]
  %s10 = inlined_call_operand.vmem [shape: f32[2,32,64], index: 10, kind: input, shape index: {}]
  %s11 = inlined_call_operand.vmem [shape: f32[2,1,64], index: 11, kind: input, shape index: {}]
  %s12 = inlined_call_operand.vmem [shape: f32[2,64,32], index: 12, kind: input, shape index: {}]
  %s13 = inlined_call_operand.vmem [shape: f32[2,1,32], index: 13, kind: input, shape index: {}]
  %s14 = inlined_call_operand.vmem [shape: f32[2,1,32], index: 14, kind: input, shape index: {}]
  %s15 = inlined_call_operand.vmem [shape: f32[2,1,32], index: 15, kind: input, shape index: {}]
  %s16 = inlined_call_operand.vmem [shape: f32[32,32], index: 16, kind: input, shape index: {}]
  %s17 = inlined_call_operand.vmem [shape: f32[1,32], index: 17, kind: input, shape index: {}]
  %s18 = inlined_call_operand.vmem [shape: f32[32,128], index: 18, kind: input, shape index: {}]
  %s19 = inlined_call_operand.vmem [shape: f32[1,128], index: 19, kind: input, shape index: {}]
  %s20 = inlined_call_operand.hbm [shape: f32[16,128], index: 20, kind: output, shape index: {}]
  %s21 = sld [smem:[#allocation0]]
  $region90: #{tpu_custom_call.1} parent=0
    _
  %s23 = ssub.s32 1, %s21
  %s24 = scalar_select 0, %s23, %s21
  $region1: #{tpu_custom_call.1} parent=0
    #allocation2 [shape = 'u8[8192]{0}', space=vmem, size = 0x2000, scoped, tag = 'output window, operand 0, single buffered']
    #allocation3 [shape = 's32[1]{0}', space=sflag, size = 0x4, scoped, tag = 'scoped memory for tpu_custom_call.1']
    %25 = vsyncpa [#allocation3], 0
    // Predicated region
    $region2: #{tpu_custom_call.1} parent=1 // pred_check
      _
    $region3: #{tpu_custom_call.1} parent=1 // pred_check_branch
      %27 = sbr.rel (0) target = $region5
    $region4: #{tpu_custom_call.1} parent=1 // pred_region
      _
    $region5: #{tpu_custom_call.1} parent=1 // pred_fallthru
      _
    // Predicated region
    $region6: #{tpu_custom_call.1} parent=1 // pred_check
      _
    $region7: #{tpu_custom_call.1} parent=1 // pred_check_branch
      %29 = sbr.rel (0) target = $region9
    $region8: #{tpu_custom_call.1} parent=1 // pred_region
      _
    $region9: #{tpu_custom_call.1} parent=1 // pred_fallthru
      _
    // Predicated region
    $region10: #{tpu_custom_call.1} parent=1 // pred_check
      _
    $region11: #{tpu_custom_call.1} parent=1 // pred_check_branch
      %31 = sbr.rel (0) target = $region13
    $region12: #{tpu_custom_call.1} parent=1 // pred_region
      _
    $region13: #{tpu_custom_call.1} parent=1 // pred_fallthru
      _
    // Predicated region
    $region14: #{tpu_custom_call.1} parent=1 // pred_check
      _
    $region15: #{tpu_custom_call.1} parent=1 // pred_check_branch
      %33 = sbr.rel (0) target = $region17
    $region16: #{tpu_custom_call.1} parent=1 // pred_region
      _
    $region17: #{tpu_custom_call.1} parent=1 // pred_fallthru
      _
    // Predicated region
    $region18: #{tpu_custom_call.1} parent=1 // pred_check
      _
    $region19: #{tpu_custom_call.1} parent=1 // pred_check_branch
      %35 = sbr.rel (0) target = $region21
    $region20: #{tpu_custom_call.1} parent=1 // pred_region
      _
    $region21: #{tpu_custom_call.1} parent=1 // pred_fallthru
      _
    // Predicated region
    $region22: #{tpu_custom_call.1} parent=1 // pred_check
      _
    $region23: #{tpu_custom_call.1} parent=1 // pred_check_branch
      %37 = sbr.rel (0) target = $region25
    $region24: #{tpu_custom_call.1} parent=1 // pred_region
      _
    $region25: #{tpu_custom_call.1} parent=1 // pred_fallthru
      _
    // Predicated region
    $region26: #{tpu_custom_call.1} parent=1 // pred_check
      _
    $region27: #{tpu_custom_call.1} parent=1 // pred_check_branch
      %39 = sbr.rel (0) target = $region29
    $region28: #{tpu_custom_call.1} parent=1 // pred_region
      _
    $region29: #{tpu_custom_call.1} parent=1 // pred_fallthru
      _
    // Predicated region
    $region30: #{tpu_custom_call.1} parent=1 // pred_check
      _
    $region31: #{tpu_custom_call.1} parent=1 // pred_check_branch
      %41 = sbr.rel (0) target = $region33
    $region32: #{tpu_custom_call.1} parent=1 // pred_region
      _
    $region33: #{tpu_custom_call.1} parent=1 // pred_fallthru
      _
    // Predicated region
    $region34: #{tpu_custom_call.1} parent=1 // pred_check
      _
    $region35: #{tpu_custom_call.1} parent=1 // pred_check_branch
      %43 = sbr.rel (0) target = $region37
    $region36: #{tpu_custom_call.1} parent=1 // pred_region
      _
    $region37: #{tpu_custom_call.1} parent=1 // pred_fallthru
      _
    // Predicated region
    $region38: #{tpu_custom_call.1} parent=1 // pred_check
      _
    $region39: #{tpu_custom_call.1} parent=1 // pred_check_branch
      %45 = sbr.rel (0) target = $region41
    $region40: #{tpu_custom_call.1} parent=1 // pred_region
      _
    $region41: #{tpu_custom_call.1} parent=1 // pred_fallthru
      _
    // Predicated region
    $region42: #{tpu_custom_call.1} parent=1 // pred_check
      _
    $region43: #{tpu_custom_call.1} parent=1 // pred_check_branch
      %47 = sbr.rel (0) target = $region45
    $region44: #{tpu_custom_call.1} parent=1 // pred_region
      _
    $region45: #{tpu_custom_call.1} parent=1 // pred_fallthru
      _
    // Predicated region
    $region46: #{tpu_custom_call.1} parent=1 // pred_check
      _
    $region47: #{tpu_custom_call.1} parent=1 // pred_check_branch
      %49 = sbr.rel (0) target = $region49
    $region48: #{tpu_custom_call.1} parent=1 // pred_region
      _
    $region49: #{tpu_custom_call.1} parent=1 // pred_fallthru
      _
    // Predicated region
    $region50: #{tpu_custom_call.1} parent=1 // pred_check
      _
    $region51: #{tpu_custom_call.1} parent=1 // pred_check_branch
      %51 = sbr.rel (0) target = $region53
    $region52: #{tpu_custom_call.1} parent=1 // pred_region
      _
    $region53: #{tpu_custom_call.1} parent=1 // pred_fallthru
      _
    // Predicated region
    $region54: #{tpu_custom_call.1} parent=1 // pred_check
      _
    $region55: #{tpu_custom_call.1} parent=1 // pred_check_branch
      %53 = sbr.rel (0) target = $region57
    $region56: #{tpu_custom_call.1} parent=1 // pred_region
      _
    $region57: #{tpu_custom_call.1} parent=1 // pred_fallthru
      _
    // Predicated region
    $region58: #{tpu_custom_call.1} parent=1 // pred_check
      _
    $region59: #{tpu_custom_call.1} parent=1 // pred_check_branch
      %55 = sbr.rel (0) target = $region61
    $region60: #{tpu_custom_call.1} parent=1 // pred_region
      _
    $region61: #{tpu_custom_call.1} parent=1 // pred_fallthru
      _
    // Predicated region
    $region62: #{tpu_custom_call.1} parent=1 // pred_check
      _
    $region63: #{tpu_custom_call.1} parent=1 // pred_check_branch
      %57 = sbr.rel (0) target = $region65
    $region64: #{tpu_custom_call.1} parent=1 // pred_region
      _
    $region65: #{tpu_custom_call.1} parent=1 // pred_fallthru
      _
    // Predicated region
    $region66: #{tpu_custom_call.1} parent=1 // pred_check
      _
    $region67: #{tpu_custom_call.1} parent=1 // pred_check_branch
      %59 = sbr.rel (0) target = $region69
    $region68: #{tpu_custom_call.1} parent=1 // pred_region
      _
    $region69: #{tpu_custom_call.1} parent=1 // pred_fallthru
      _
    // Predicated region
    $region70: #{tpu_custom_call.1} parent=1 // pred_check
      _
    $region71: #{tpu_custom_call.1} parent=1 // pred_check_branch
      %61 = sbr.rel (0) target = $region73
    $region72: #{tpu_custom_call.1} parent=1 // pred_region
      _
    $region73: #{tpu_custom_call.1} parent=1 // pred_fallthru
      _
    // Predicated region
    $region74: #{tpu_custom_call.1} parent=1 // pred_check
      _
    $region75: #{tpu_custom_call.1} parent=1 // pred_check_branch
      %63 = sbr.rel (0) target = $region77
    $region76: #{tpu_custom_call.1} parent=1 // pred_region
      _
    $region77: #{tpu_custom_call.1} parent=1 // pred_fallthru
      _
    // Predicated region
    $region78: #{tpu_custom_call.1} parent=1 // pred_check
      _
    $region79: #{tpu_custom_call.1} parent=1 // pred_check_branch
      %65 = sbr.rel (0) target = $region81
    $region80: #{tpu_custom_call.1} parent=1 // pred_region
      _
    $region81: #{tpu_custom_call.1} parent=1 // pred_fallthru
      _
    %v66 = vld [vmem:[%s0] sm:$0xff]
    %v67 = vld [vmem:[%s0 + $0x8] sm:$0xff]
    %v68 = vld [vmem:[%s2] sm:$0x1]
    %v69 = vld [vmem:[%s3] sm:$0x1]
    %vm70 = vcmask 261120
    %v71 = vsel %vm70, %v66, 0.0
    %72 = vadd.xlane.f32.xlu0 %v71
    %v73 = vpop.xlane.xlu0 %72
    %v74 = vsel %vm70, %v67, 0.0
    %75 = vadd.xlane.f32.xlu0 %v74
    %v76 = vpop.xlane.xlu0 %75
    %v77 = vrcp.pop 32.0
    %v78 = vmul.f32 %v73, %v77
    %v79 = vmul.f32 %v76, %v77
    %v80 = vsub.f32 %v66, %v78
    %v81 = vsub.f32 %v67, %v79
    %v82 = vmul.f32 %v80, %v80
    %v83 = vmul.f32 %v81, %v81
    %v84 = vsel %vm70, %v82, 0.0
    %85 = vadd.xlane.f32.xlu0 %v84
    %v86 = vpop.xlane.xlu0 %85
    %v87 = vsel %vm70, %v83, 0.0
    %88 = vadd.xlane.f32.xlu0 %v87
    %v89 = vpop.xlane.xlu0 %88
    %v90 = vmul.f32 %v86, %v77
    %v91 = vmul.f32 %v89, %v77
    %v92 = vadd.f32 %v90, 1e-12
    %v93 = vadd.f32 %v91, 1e-12
    %v94 = vrsqrt.pop %v92
    %v95 = vrsqrt.pop %v93
    %v96 = vmul.f32 %v80, %v94
    %v97 = vmul.f32 %v81, %v95
    %v99 = vlaneseq
    %v100 = vshrl.u32 %v99, 7
    %v101 = vsub.s32 0, %v100
    %v102 = vrot.slane %v68, %v101
    %v104 = vmul.f32 %v96, %v102
    %v105 = vmul.f32 %v97, %v102
    %v107 = vlaneseq
    %v108 = vshrl.u32 %v107, 7
    %v109 = vsub.s32 0, %v108
    %v110 = vrot.slane %v69, %v109
    %v112 = vadd.f32 %v104, %v110
    %v113 = vadd.f32 %v105, %v110
    %v114 = vld [vmem:[%s1] sm:$0xff]
    %v115 = vld [vmem:[%s1 + $0x8] sm:$0xff]
    %v116 = vld [vmem:[%s4] sm:$0xff]
    %v117 = vld [vmem:[%s4 + $0x8] sm:$0xff]
    %v118 = vld [vmem:[%s4 + $0x10] sm:$0xff]
    %v119 = vld [vmem:[%s4 + $0x18] sm:$0xff]
    %v120 = vld [vmem:[%s4 + $0x20] sm:$0xff]
    %v121 = vld [vmem:[%s4 + $0x28] sm:$0xff]
    %v122 = vld [vmem:[%s4 + $0x30] sm:$0xff]
    %v123 = vld [vmem:[%s4 + $0x38] sm:$0xff]
    %v124 = vld [vmem:[%s4 + $0x40] sm:$0xff]
    %v125 = vld [vmem:[%s4 + $0x48] sm:$0xff]
    %v126 = vld [vmem:[%s4 + $0x50] sm:$0xff]
    %v127 = vld [vmem:[%s4 + $0x58] sm:$0xff]
    %v128 = vld [vmem:[%s4 + $0x60] sm:$0xff]
    %v129 = vld [vmem:[%s4 + $0x68] sm:$0xff]
    %v130 = vld [vmem:[%s4 + $0x70] sm:$0xff]
    %v131 = vld [vmem:[%s4 + $0x78] sm:$0xff]
    %v132 = vld [vmem:[%s4 + $0x80] sm:$0xff]
    %v133 = vld [vmem:[%s4 + $0x88] sm:$0xff]
    %v134 = vld [vmem:[%s4 + $0x90] sm:$0xff]
    %v135 = vld [vmem:[%s4 + $0x98] sm:$0xff]
    %v136 = vld [vmem:[%s4 + $0xa0] sm:$0xff]
    %v137 = vld [vmem:[%s4 + $0xa8] sm:$0xff]
    %v138 = vld [vmem:[%s4 + $0xb0] sm:$0xff]
    %v139 = vld [vmem:[%s4 + $0xb8] sm:$0xff]
    %v140 = vld [vmem:[%s5] sm:$0x3f]
    %v142 = vlaneseq
    %v143 = vshrl.u32 %v142, 7
    %v144 = vsub.s32 0, %v143
    %v145 = vrot.slane %v140, %v144
    %v146 = vlaneseq
    %v147 = vshrl.u32 %v146, 7
    %v148 = vsub.s32 1, %v147
    %v149 = vrot.slane %v140, %v148
    %v150 = vlaneseq
    %v151 = vshrl.u32 %v150, 7
    %v152 = vsub.s32 2, %v151
    %v153 = vrot.slane %v140, %v152
    %v154 = vlaneseq
    %v155 = vshrl.u32 %v154, 7
    %v156 = vsub.s32 3, %v155
    %v157 = vrot.slane %v140, %v156
    %v158 = vlaneseq
    %v159 = vshrl.u32 %v158, 7
    %v160 = vsub.s32 4, %v159
    %v161 = vrot.slane %v140, %v160
    %v162 = vlaneseq
    %v163 = vshrl.u32 %v162, 7
    %v164 = vsub.s32 5, %v163
    %v165 = vrot.slane %v140, %v164
    %v173 = vsel %vm70, %v112, 0
    %v176 = vsel %vm70, %v113, 0
    %178 = vmatprep.subr.mxu0 %v117
    %179 = vmatpush1.msra.mxu0 %v116
    %180 = vmatprep.subr.mxu0 %v123
    %181 = vmatpush1.msra.mxu0 %v122
    %182 = vmatprep.subr.mxu0 %v129
    %183 = vmatpush1.msra.mxu0 %v128
    %184 = vmatprep.subr.mxu0 %v135
    %185 = vmatpush1.msra.mxu0 %v134
    %186 = vmatprep.subr.mxu0 0.0
    %187 = vmatpush1.msra.mxu0 0.0
    %188 = vmatprep.subr.mxu0 0.0
    %189 = vmatpush1.msra.mxu0 0.0
    %190 = vmatprep.subr.mxu0 0.0
    %191 = vmatpush1.msra.mxu0 0.0
    %192 = vmatprep.subr.mxu0 0.0
    %193 = vmatpush1.msra.mxu0 0.0
    %194 = vmatprep.subr.mxu0 0.0
    %195 = vmatpush1.msra.mxu0 0.0
    %196 = vmatprep.subr.mxu0 0.0
    %197 = vmatpush1.msra.mxu0 0.0
    %198 = vmatprep.subr.mxu0 0.0
    %199 = vmatpush1.msra.mxu0 0.0
    %200 = vmatprep.subr.mxu0 0.0
    %201 = vmatpush1.msra.mxu0 0.0
    %202 = vmatprep.subr.mxu0 0.0
    %203 = vmatpush1.msra.mxu0 0.0
    %204 = vmatprep.subr.mxu0 0.0
    %205 = vmatpush1.msra.mxu0 0.0
    %206 = vmatprep.subr.mxu0 0.0
    %207 = vmatpush1.msra.mxu0 0.0
    %208 = vmatprep.subr.mxu0 0.0
    %209 = vmatpush1.msra.mxu0 0.0
    %210 = vmatprep.subr.mxu0 0.0
    %211 = vmatpush1.msra.mxu0 0.0
    %212 = vmatprep.subr.mxu0 0.0
    %213 = vmatpush1.msra.mxu0 0.0
    %214 = vmatprep.subr.mxu0 0.0
    %215 = vmatpush1.msra.mxu0 0.0
    %216 = vmatprep.subr.mxu0 0.0
    %217 = vmatpush1.msra.mxu0 0.0
    %218 = vmatprep.subr.mxu0 0.0
    %219 = vmatpush1.msra.mxu0 0.0
    %220 = vmatprep.subr.mxu0 0.0
    %221 = vmatpush1.msra.mxu0 0.0
    %222 = vmatprep.subr.mxu0 0.0
    %223 = vmatpush1.msra.mxu0 0.0
    %224 = vmatprep.subr.mxu0 0.0
    %225 = vmatpush1.msra.mxu0 0.0
    %226 = vmatprep.subr.mxu0 0.0
    %227 = vmatpush1.msra.mxu0 0.0
    %228 = vmatprep.subr.mxu0 0.0
    %229 = vmatpush1.msra.mxu0 0.0
    %230 = vmatprep.subr.mxu0 0.0
    %231 = vmatpush1.msra.mxu0 0.0
    %232 = vmatprep.subr.mxu0 0.0
    %233 = vmatpush1.msra.mxu0 0.0
    %234 = vmatprep.subr.mxu0 0.0
    %235 = vmatpush1.msra.mxu0 0.0
    %236 = vmatprep.subr.mxu0 0.0
    %237 = vmatpush1.msra.mxu0 0.0
    %238 = vmatprep.subr.mxu0 0.0
    %239 = vmatpush1.msra.mxu0 0.0
    %240 = vmatprep.subr.mxu0 0.0
    %241 = vmatpush1.msra.mxu0 0.0
    %242 = vmatprep.mubr.f32.mxu0 0.0
    %243 = vmatmul.mubr.f32.gmra.mrb[0].mxu0 %v173
    %v244 = vpop.f32.mrb[0].mxu0
    %v245 = vadd.f32 %v145, %v244
    %v246 = vpop.f32.mrb[0].mxu0
    %v247 = vadd.f32 %v149, %v246
    %248 = vmatprep.mubr.f32.mxu0 0.0
    %249 = vmatmul.mubr.f32.gmra.mrb[0].mxu0 %v176
    %v250 = vpop.f32.mrb[0].mxu0
    %v251 = vadd.f32 %v145, %v250
    %v252 = vpop.f32.mrb[0].mxu0
    %v253 = vadd.f32 %v149, %v252
    %254 = vdwg.mxu0
    %255 = vmatprep.subr.mxu0 %v119
    %256 = vmatpush1.msra.mxu0 %v118
    %257 = vmatprep.subr.mxu0 %v125
    %258 = vmatpush1.msra.mxu0 %v124
    %259 = vmatprep.subr.mxu0 %v131
    %260 = vmatpush1.msra.mxu0 %v130
    %261 = vmatprep.subr.mxu0 %v137
    %262 = vmatpush1.msra.mxu0 %v136
    %263 = vmatprep.subr.mxu0 0.0
    %264 = vmatpush1.msra.mxu0 0.0
    %265 = vmatprep.subr.mxu0 0.0
    %266 = vmatpush1.msra.mxu0 0.0
    %267 = vmatprep.subr.mxu0 0.0
    %268 = vmatpush1.msra.mxu0 0.0
    %269 = vmatprep.subr.mxu0 0.0
    %270 = vmatpush1.msra.mxu0 0.0
    %271 = vmatprep.subr.mxu0 0.0
    %272 = vmatpush1.msra.mxu0 0.0
    %273 = vmatprep.subr.mxu0 0.0
    %274 = vmatpush1.msra.mxu0 0.0
    %275 = vmatprep.subr.mxu0 0.0
    %276 = vmatpush1.msra.mxu0 0.0
    %277 = vmatprep.subr.mxu0 0.0
    %278 = vmatpush1.msra.mxu0 0.0
    %279 = vmatprep.subr.mxu0 0.0
    %280 = vmatpush1.msra.mxu0 0.0
    %281 = vmatprep.subr.mxu0 0.0
    %282 = vmatpush1.msra.mxu0 0.0
    %283 = vmatprep.subr.mxu0 0.0
    %284 = vmatpush1.msra.mxu0 0.0
    %285 = vmatprep.subr.mxu0 0.0
    %286 = vmatpush1.msra.mxu0 0.0
    %287 = vmatprep.subr.mxu0 0.0
    %288 = vmatpush1.msra.mxu0 0.0
    %289 = vmatprep.subr.mxu0 0.0
    %290 = vmatpush1.msra.mxu0 0.0
    %291 = vmatprep.subr.mxu0 0.0
    %292 = vmatpush1.msra.mxu0 0.0
    %293 = vmatprep.subr.mxu0 0.0
    %294 = vmatpush1.msra.mxu0 0.0
    %295 = vmatprep.subr.mxu0 0.0
    %296 = vmatpush1.msra.mxu0 0.0
    %297 = vmatprep.subr.mxu0 0.0
    %298 = vmatpush1.msra.mxu0 0.0
    %299 = vmatprep.subr.mxu0 0.0
    %300 = vmatpush1.msra.mxu0 0.0
    %301 = vmatprep.subr.mxu0 0.0
    %302 = vmatpush1.msra.mxu0 0.0
    %303 = vmatprep.subr.mxu0 0.0
    %304 = vmatpush1.msra.mxu0 0.0
    %305 = vmatprep.subr.mxu0 0.0
    %306 = vmatpush1.msra.mxu0 0.0
    %307 = vmatprep.subr.mxu0 0.0
    %308 = vmatpush1.msra.mxu0 0.0
    %309 = vmatprep.subr.mxu0 0.0
    %310 = vmatpush1.msra.mxu0 0.0
    %311 = vmatprep.subr.mxu0 0.0
    %312 = vmatpush1.msra.mxu0 0.0
    %313 = vmatprep.subr.mxu0 0.0
    %314 = vmatpush1.msra.mxu0 0.0
    %315 = vmatprep.subr.mxu0 0.0
    %316 = vmatpush1.msra.mxu0 0.0
    %317 = vmatprep.subr.mxu0 0.0
    %318 = vmatpush1.msra.mxu0 0.0
    %319 = vmatprep.mubr.f32.mxu0 0.0
    %320 = vmatmul.mubr.f32.gmra.mrb[0].mxu0 %v173
    %v321 = vpop.f32.mrb[0].mxu0
    %v322 = vadd.f32 %v153, %v321
    %v323 = vpop.f32.mrb[0].mxu0
    %v324 = vadd.f32 %v157, %v323
    %325 = vmatprep.mubr.f32.mxu0 0.0
    %326 = vmatmul.mubr.f32.gmra.mrb[0].mxu0 %v176
    %v327 = vpop.f32.mrb[0].mxu0
    %v328 = vadd.f32 %v153, %v327
    %v329 = vpop.f32.mrb[0].mxu0
    %v330 = vadd.f32 %v157, %v329
    %331 = vdwg.mxu0
    %332 = vmatprep.subr.mxu0 %v121
    %333 = vmatpush1.msra.mxu0 %v120
    %334 = vmatprep.subr.mxu0 %v127
    %335 = vmatpush1.msra.mxu0 %v126
    %336 = vmatprep.subr.mxu0 %v133
    %337 = vmatpush1.msra.mxu0 %v132
    %338 = vmatprep.subr.mxu0 %v139
    %339 = vmatpush1.msra.mxu0 %v138
    %340 = vmatprep.subr.mxu0 0.0
    %341 = vmatpush1.msra.mxu0 0.0
    %342 = vmatprep.subr.mxu0 0.0
    %343 = vmatpush1.msra.mxu0 0.0
    %344 = vmatprep.subr.mxu0 0.0
    %345 = vmatpush1.msra.mxu0 0.0
    %346 = vmatprep.subr.mxu0 0.0
    %347 = vmatpush1.msra.mxu0 0.0
    %348 = vmatprep.subr.mxu0 0.0
    %349 = vmatpush1.msra.mxu0 0.0
    %350 = vmatprep.subr.mxu0 0.0
    %351 = vmatpush1.msra.mxu0 0.0
    %352 = vmatprep.subr.mxu0 0.0
    %353 = vmatpush1.msra.mxu0 0.0
    %354 = vmatprep.subr.mxu0 0.0
    %355 = vmatpush1.msra.mxu0 0.0
    %356 = vmatprep.subr.mxu0 0.0
    %357 = vmatpush1.msra.mxu0 0.0
    %358 = vmatprep.subr.mxu0 0.0
    %359 = vmatpush1.msra.mxu0 0.0
    %360 = vmatprep.subr.mxu0 0.0
    %361 = vmatpush1.msra.mxu0 0.0
    %362 = vmatprep.subr.mxu0 0.0
    %363 = vmatpush1.msra.mxu0 0.0
    %364 = vmatprep.subr.mxu0 0.0
    %365 = vmatpush1.msra.mxu0 0.0
    %366 = vmatprep.subr.mxu0 0.0
    %367 = vmatpush1.msra.mxu0 0.0
    %368 = vmatprep.subr.mxu0 0.0
    %369 = vmatpush1.msra.mxu0 0.0
    %370 = vmatprep.subr.mxu0 0.0
    %371 = vmatpush1.msra.mxu0 0.0
    %372 = vmatprep.subr.mxu0 0.0
    %373 = vmatpush1.msra.mxu0 0.0
    %374 = vmatprep.subr.mxu0 0.0
    %375 = vmatpush1.msra.mxu0 0.0
    %376 = vmatprep.subr.mxu0 0.0
    %377 = vmatpush1.msra.mxu0 0.0
    %378 = vmatprep.subr.mxu0 0.0
    %379 = vmatpush1.msra.mxu0 0.0
    %380 = vmatprep.subr.mxu0 0.0
    %381 = vmatpush1.msra.mxu0 0.0
    %382 = vmatprep.subr.mxu0 0.0
    %383 = vmatpush1.msra.mxu0 0.0
    %384 = vmatprep.subr.mxu0 0.0
    %385 = vmatpush1.msra.mxu0 0.0
    %386 = vmatprep.subr.mxu0 0.0
    %387 = vmatpush1.msra.mxu0 0.0
    %388 = vmatprep.subr.mxu0 0.0
    %389 = vmatpush1.msra.mxu0 0.0
    %390 = vmatprep.subr.mxu0 0.0
    %391 = vmatpush1.msra.mxu0 0.0
    %392 = vmatprep.subr.mxu0 0.0
    %393 = vmatpush1.msra.mxu0 0.0
    %394 = vmatprep.subr.mxu0 0.0
    %395 = vmatpush1.msra.mxu0 0.0
    %396 = vmatprep.mubr.f32.mxu0 0.0
    %397 = vmatmul.mubr.f32.gmra.mrb[0].mxu0 %v173
    %v398 = vpop.f32.mrb[0].mxu0
    %v399 = vadd.f32 %v161, %v398
    %v400 = vpop.f32.mrb[0].mxu0
    %v401 = vadd.f32 %v165, %v400
    %402 = vmatprep.mubr.f32.mxu0 0.0
    %403 = vmatmul.mubr.f32.gmra.mrb[0].mxu0 %v176
    %v404 = vpop.f32.mrb[0].mxu0
    %v405 = vadd.f32 %v161, %v404
    %v406 = vpop.f32.mrb[0].mxu0
    %v407 = vadd.f32 %v165, %v406
    %408 = vdwg.mxu0
    %409 = vmatprep.subr.mxu0 0.0
    %410 = vmatpush1.xpose.msra.mxu0 %v247
    %411 = vmatprep.subr.mxu0 0.0
    %412 = vmatpush1.xpose.msra.mxu0 %v253
    %413 = vmatprep.subr.mxu0 0.0
    %414 = vmatpush1.xpose.msra.mxu0 0.0
    %415 = vmatprep.subr.mxu0 0.0
    %416 = vmatpush1.xpose.msra.mxu0 0.0
    %417 = vmatprep.subr.mxu0 0.0
    %418 = vmatpush1.xpose.msra.mxu0 0.0
    %419 = vmatprep.subr.mxu0 0.0
    %420 = vmatpush1.xpose.msra.mxu0 0.0
    %421 = vmatprep.subr.mxu0 0.0
    %422 = vmatpush1.xpose.msra.mxu0 0.0
    %423 = vmatprep.subr.mxu0 0.0
    %424 = vmatpush1.xpose.msra.mxu0 0.0
    %425 = vmatprep.subr.mxu0 0.0
    %426 = vmatpush1.xpose.msra.mxu0 0.0
    %427 = vmatprep.subr.mxu0 0.0
    %428 = vmatpush1.xpose.msra.mxu0 0.0
    %429 = vmatprep.subr.mxu0 0.0
    %430 = vmatpush1.xpose.msra.mxu0 0.0
    %431 = vmatprep.subr.mxu0 0.0
    %432 = vmatpush1.xpose.msra.mxu0 0.0
    %433 = vmatprep.subr.mxu0 0.0
    %434 = vmatpush1.xpose.msra.mxu0 0.0
    %435 = vmatprep.subr.mxu0 0.0
    %436 = vmatpush1.xpose.msra.mxu0 0.0
    %437 = vmatprep.subr.mxu0 0.0
    %438 = vmatpush1.xpose.msra.mxu0 0.0
    %439 = vmatprep.subr.mxu0 0.0
    %440 = vmatpush1.xpose.msra.mxu0 0.0
    %441 = vmatprep.subr.mxu0 0.0
    %442 = vmatpush1.xpose.msra.mxu0 0.0
    %443 = vmatprep.subr.mxu0 0.0
    %444 = vmatpush1.xpose.msra.mxu0 0.0
    %445 = vmatprep.subr.mxu0 0.0
    %446 = vmatpush1.xpose.msra.mxu0 0.0
    %447 = vmatprep.subr.mxu0 0.0
    %448 = vmatpush1.xpose.msra.mxu0 0.0
    %449 = vmatprep.subr.mxu0 0.0
    %450 = vmatpush1.xpose.msra.mxu0 0.0
    %451 = vmatprep.subr.mxu0 0.0
    %452 = vmatpush1.xpose.msra.mxu0 0.0
    %453 = vmatprep.subr.mxu0 0.0
    %454 = vmatpush1.xpose.msra.mxu0 0.0
    %455 = vmatprep.subr.mxu0 0.0
    %456 = vmatpush1.xpose.msra.mxu0 0.0
    %457 = vmatprep.subr.mxu0 0.0
    %458 = vmatpush1.xpose.msra.mxu0 0.0
    %459 = vmatprep.subr.mxu0 0.0
    %460 = vmatpush1.xpose.msra.mxu0 0.0
    %461 = vmatprep.subr.mxu0 0.0
    %462 = vmatpush1.xpose.msra.mxu0 0.0
    %463 = vmatprep.subr.mxu0 0.0
    %464 = vmatpush1.xpose.msra.mxu0 0.0
    %465 = vmatprep.subr.mxu0 0.0
    %466 = vmatpush1.xpose.msra.mxu0 0.0
    %467 = vmatprep.subr.mxu0 0.0
    %468 = vmatpush1.xpose.msra.mxu0 0.0
    %469 = vmatprep.subr.mxu0 0.0
    %470 = vmatpush1.xpose.msra.mxu0 0.0
    %471 = vmatprep.subr.mxu0 0.0
    %472 = vmatpush1.xpose.msra.mxu0 0.0
    %473 = vmatprep.mubr.f32.mxu0 0.0
    %474 = vmatmul.mubr.f32.gmra.mrb[0].mxu0 %v245
    %v475 = vpop.f32.mrb[0].mxu0
    %v476 = vadd.f32 %v114, %v475
    %v477 = vpop.f32.mrb[0].mxu0
    %478 = vmatprep.mubr.f32.mxu0 0.0
    %479 = vmatmul.mubr.f32.gmra.mrb[0].mxu0 %v251
    %v480 = vpop.f32.mrb[0].mxu0
    %v481 = vadd.f32 %v115, %v480
    %v482 = vpop.f32.mrb[0].mxu0
    %483 = vdwg.mxu0
    %vm484 = vcmask 130048
    %v485 = vsel %vm484, %v476, -inf
    %486 = vmax.xlane.f32.xlu0 %v485
    %v487 = vpop.xlane.xlu0 %486
    %v488 = vsel %vm484, %v481, -inf
    %489 = vmax.xlane.f32.xlu0 %v488
    %v490 = vpop.xlane.xlu0 %489
    %v491 = vsub.f32 %v476, %v487
    %v492 = vsub.f32 %v481, %v490
    %v493 = vmul.f32 %v491, 1.442695
    %v494 = vpow.pop %v493
    %v495 = vmul.f32 %v492, 1.442695
    %v496 = vpow.pop %v495
    %v497 = vsel %vm484, %v494, 0.0
    %498 = vadd.xlane.f32.xlu0 %v497
    %v499 = vpop.xlane.xlu0 %498
    %v500 = vsel %vm484, %v496, 0.0
    %501 = vadd.xlane.f32.xlu0 %v500
    %v502 = vpop.xlane.xlu0 %501
    %v503 = vrcp.pop %v499
    %v504 = vrcp.pop %v502
    %v505 = vmul.f32 %v494, %v503
    %v506 = vmul.f32 %v496, %v504
    %v508 = vsel %vm484, %v505, 0
    %v511 = vsel %vm484, %v506, 0
    %513 = vmatprep.subr.mxu0 0.0
    %514 = vmatpush1.msra.mxu0 %v322
    %515 = vmatprep.subr.mxu0 0.0
    %516 = vmatpush1.msra.mxu0 %v328
    %517 = vmatprep.subr.mxu0 0.0
    %518 = vmatpush1.msra.mxu0 0.0
    %519 = vmatprep.subr.mxu0 0.0
    %520 = vmatpush1.msra.mxu0 0.0
    %521 = vmatprep.subr.mxu0 0.0
    %522 = vmatpush1.msra.mxu0 0.0
    %523 = vmatprep.subr.mxu0 0.0
    %524 = vmatpush1.msra.mxu0 0.0
    %525 = vmatprep.subr.mxu0 0.0
    %526 = vmatpush1.msra.mxu0 0.0
    %527 = vmatprep.subr.mxu0 0.0
    %528 = vmatpush1.msra.mxu0 0.0
    %529 = vmatprep.subr.mxu0 0.0
    %530 = vmatpush1.msra.mxu0 0.0
    %531 = vmatprep.subr.mxu0 0.0
    %532 = vmatpush1.msra.mxu0 0.0
    %533 = vmatprep.subr.mxu0 0.0
    %534 = vmatpush1.msra.mxu0 0.0
    %535 = vmatprep.subr.mxu0 0.0
    %536 = vmatpush1.msra.mxu0 0.0
    %537 = vmatprep.subr.mxu0 0.0
    %538 = vmatpush1.msra.mxu0 0.0
    %539 = vmatprep.subr.mxu0 0.0
    %540 = vmatpush1.msra.mxu0 0.0
    %541 = vmatprep.subr.mxu0 0.0
    %542 = vmatpush1.msra.mxu0 0.0
    %543 = vmatprep.subr.mxu0 0.0
    %544 = vmatpush1.msra.mxu0 0.0
    %545 = vmatprep.subr.mxu0 0.0
    %546 = vmatpush1.msra.mxu0 0.0
    %547 = vmatprep.subr.mxu0 0.0
    %548 = vmatpush1.msra.mxu0 0.0
    %549 = vmatprep.subr.mxu0 0.0
    %550 = vmatpush1.msra.mxu0 0.0
    %551 = vmatprep.subr.mxu0 0.0
    %552 = vmatpush1.msra.mxu0 0.0
    %553 = vmatprep.subr.mxu0 0.0
    %554 = vmatpush1.msra.mxu0 0.0
    %555 = vmatprep.subr.mxu0 0.0
    %556 = vmatpush1.msra.mxu0 0.0
    %557 = vmatprep.subr.mxu0 0.0
    %558 = vmatpush1.msra.mxu0 0.0
    %559 = vmatprep.subr.mxu0 0.0
    %560 = vmatpush1.msra.mxu0 0.0
    %561 = vmatprep.subr.mxu0 0.0
    %562 = vmatpush1.msra.mxu0 0.0
    %563 = vmatprep.subr.mxu0 0.0
    %564 = vmatpush1.msra.mxu0 0.0
    %565 = vmatprep.subr.mxu0 0.0
    %566 = vmatpush1.msra.mxu0 0.0
    %567 = vmatprep.subr.mxu0 0.0
    %568 = vmatpush1.msra.mxu0 0.0
    %569 = vmatprep.subr.mxu0 0.0
    %570 = vmatpush1.msra.mxu0 0.0
    %571 = vmatprep.subr.mxu0 0.0
    %572 = vmatpush1.msra.mxu0 0.0
    %573 = vmatprep.subr.mxu0 0.0
    %574 = vmatpush1.msra.mxu0 0.0
    %575 = vmatprep.subr.mxu0 0.0
    %576 = vmatpush1.msra.mxu0 0.0
    %577 = vmatprep.mubr.f32.mxu0 0.0
    %578 = vmatmul.mubr.f32.gmra.mrb[0].mxu0 %v508
    %v579 = vpop.f32.mrb[0].mxu0
    %v580 = vadd.f32 0.0, %v579
    %v581 = vpop.f32.mrb[0].mxu0
    %582 = vmatprep.mubr.f32.mxu0 0.0
    %583 = vmatmul.mubr.f32.gmra.mrb[0].mxu0 %v511
    %v584 = vpop.f32.mrb[0].mxu0
    %v585 = vadd.f32 0.0, %v584
    %v586 = vpop.f32.mrb[0].mxu0
    %587 = vdwg.mxu0
    %v588 = vld [vmem:[%s6] sm:$0xff]
    %v589 = vld [vmem:[%s6 + $0x8] sm:$0xff]
    %v590 = vld [vmem:[%s6 + $0x10] sm:$0xff]
    %v591 = vld [vmem:[%s6 + $0x18] sm:$0xff]
    %v592 = vld [vmem:[%s6 + $0x20] sm:$0xff]
    %v593 = vld [vmem:[%s6 + $0x28] sm:$0xff]
    %v594 = vld [vmem:[%s6 + $0x30] sm:$0xff]
    %v595 = vld [vmem:[%s6 + $0x38] sm:$0xff]
    %v596 = vld [vmem:[%s6 + $0x40] sm:$0xff]
    %v597 = vld [vmem:[%s6 + $0x48] sm:$0xff]
    %v598 = vld [vmem:[%s6 + $0x50] sm:$0xff]
    %v599 = vld [vmem:[%s6 + $0x58] sm:$0xff]
    %v600 = vld [vmem:[%s6 + $0x60] sm:$0xff]
    %v601 = vld [vmem:[%s6 + $0x68] sm:$0xff]
    %v602 = vld [vmem:[%s6 + $0x70] sm:$0xff]
    %v603 = vld [vmem:[%s6 + $0x78] sm:$0xff]
    %604 = vmatprep.subr.mxu0 0.0
    %605 = vmatpush1.xpose.msra.mxu0 %v399
    %606 = vmatprep.subr.mxu0 0.0
    %607 = vmatpush1.xpose.msra.mxu0 %v405
    %608 = vmatprep.subr.mxu0 0.0
    %609 = vmatpush1.xpose.msra.mxu0 0.0
    %610 = vmatprep.subr.mxu0 0.0
    %611 = vmatpush1.xpose.msra.mxu0 0.0
    %612 = vmatprep.subr.mxu0 0.0
    %613 = vmatpush1.xpose.msra.mxu0 0.0
    %614 = vmatprep.subr.mxu0 0.0
    %615 = vmatpush1.xpose.msra.mxu0 0.0
    %616 = vmatprep.subr.mxu0 0.0
    %617 = vmatpush1.xpose.msra.mxu0 0.0
    %618 = vmatprep.subr.mxu0 0.0
    %619 = vmatpush1.xpose.msra.mxu0 0.0
    %620 = vmatprep.subr.mxu0 0.0
    %621 = vmatpush1.xpose.msra.mxu0 0.0
    %622 = vmatprep.subr.mxu0 0.0
    %623 = vmatpush1.xpose.msra.mxu0 0.0
    %624 = vmatprep.subr.mxu0 0.0
    %625 = vmatpush1.xpose.msra.mxu0 0.0
    %626 = vmatprep.subr.mxu0 0.0
    %627 = vmatpush1.xpose.msra.mxu0 0.0
    %628 = vmatprep.subr.mxu0 0.0
    %629 = vmatpush1.xpose.msra.mxu0 0.0
    %630 = vmatprep.subr.mxu0 0.0
    %631 = vmatpush1.xpose.msra.mxu0 0.0
    %632 = vmatprep.subr.mxu0 0.0
    %633 = vmatpush1.xpose.msra.mxu0 0.0
    %634 = vmatprep.subr.mxu0 0.0
    %635 = vmatpush1.xpose.msra.mxu0 0.0
    %636 = vmatprep.subr.mxu0 0.0
    %637 = vmatpush1.xpose.msra.mxu0 0.0
    %638 = vmatprep.subr.mxu0 0.0
    %639 = vmatpush1.xpose.msra.mxu0 0.0
    %640 = vmatprep.subr.mxu0 0.0
    %641 = vmatpush1.xpose.msra.mxu0 0.0
    %642 = vmatprep.subr.mxu0 0.0
    %643 = vmatpush1.xpose.msra.mxu0 0.0
    %644 = vmatprep.subr.mxu0 0.0
    %645 = vmatpush1.xpose.msra.mxu0 0.0
    %646 = vmatprep.subr.mxu0 0.0
    %647 = vmatpush1.xpose.msra.mxu0 0.0
    %648 = vmatprep.subr.mxu0 0.0
    %649 = vmatpush1.xpose.msra.mxu0 0.0
    %650 = vmatprep.subr.mxu0 0.0
    %651 = vmatpush1.xpose.msra.mxu0 0.0
    %652 = vmatprep.subr.mxu0 0.0
    %653 = vmatpush1.xpose.msra.mxu0 0.0
    %654 = vmatprep.subr.mxu0 0.0
    %655 = vmatpush1.xpose.msra.mxu0 0.0
    %656 = vmatprep.subr.mxu0 0.0
    %657 = vmatpush1.xpose.msra.mxu0 0.0
    %658 = vmatprep.subr.mxu0 0.0
    %659 = vmatpush1.xpose.msra.mxu0 0.0
    %660 = vmatprep.subr.mxu0 0.0
    %661 = vmatpush1.xpose.msra.mxu0 0.0
    %662 = vmatprep.subr.mxu0 0.0
    %663 = vmatpush1.xpose.msra.mxu0 0.0
    %664 = vmatprep.subr.mxu0 0.0
    %665 = vmatpush1.xpose.msra.mxu0 0.0
    %666 = vmatprep.subr.mxu0 0.0
    %667 = vmatpush1.xpose.msra.mxu0 0.0
    %668 = vmatprep.mubr.f32.mxu0 0.0
    %669 = vmatmul.mubr.f32.gmra.mrb[0].mxu0 %v324
    %v670 = vpop.f32.mrb[0].mxu0
    %v671 = vadd.f32 %v114, %v670
    %v672 = vpop.f32.mrb[0].mxu0
    %673 = vmatprep.mubr.f32.mxu0 0.0
    %674 = vmatmul.mubr.f32.gmra.mrb[0].mxu0 %v330
    %v675 = vpop.f32.mrb[0].mxu0
    %v676 = vadd.f32 %v115, %v675
    %v677 = vpop.f32.mrb[0].mxu0
    %678 = vdwg.mxu0
    %v679 = vsel %vm484, %v671, -inf
    %680 = vmax.xlane.f32.xlu0 %v679
    %v681 = vpop.xlane.xlu0 %680
    %v682 = vsel %vm484, %v676, -inf
    %683 = vmax.xlane.f32.xlu0 %v682
    %v684 = vpop.xlane.xlu0 %683
    %v685 = vsub.f32 %v671, %v681
    %v686 = vsub.f32 %v676, %v684
    %v687 = vmul.f32 %v685, 1.442695
    %v688 = vpow.pop %v687
    %v689 = vmul.f32 %v686, 1.442695
    %v690 = vpow.pop %v689
    %v691 = vsel %vm484, %v688, 0.0
    %692 = vadd.xlane.f32.xlu0 %v691
    %v693 = vpop.xlane.xlu0 %692
    %v694 = vsel %vm484, %v690, 0.0
    %695 = vadd.xlane.f32.xlu0 %v694
    %v696 = vpop.xlane.xlu0 %695
    %v697 = vrcp.pop %v693
    %v698 = vrcp.pop %v696
    %v699 = vmul.f32 %v688, %v697
    %v700 = vmul.f32 %v690, %v698
    %v702 = vsel %vm484, %v699, 0
    %v705 = vsel %vm484, %v700, 0
    %707 = vmatprep.subr.mxu0 0.0
    %708 = vmatpush1.msra.mxu0 %v401
    %709 = vmatprep.subr.mxu0 0.0
    %710 = vmatpush1.msra.mxu0 %v407
    %711 = vmatprep.subr.mxu0 0.0
    %712 = vmatpush1.msra.mxu0 0.0
    %713 = vmatprep.subr.mxu0 0.0
    %714 = vmatpush1.msra.mxu0 0.0
    %715 = vmatprep.subr.mxu0 0.0
    %716 = vmatpush1.msra.mxu0 0.0
    %717 = vmatprep.subr.mxu0 0.0
    %718 = vmatpush1.msra.mxu0 0.0
    %719 = vmatprep.subr.mxu0 0.0
    %720 = vmatpush1.msra.mxu0 0.0
    %721 = vmatprep.subr.mxu0 0.0
    %722 = vmatpush1.msra.mxu0 0.0
    %723 = vmatprep.subr.mxu0 0.0
    %724 = vmatpush1.msra.mxu0 0.0
    %725 = vmatprep.subr.mxu0 0.0
    %726 = vmatpush1.msra.mxu0 0.0
    %727 = vmatprep.subr.mxu0 0.0
    %728 = vmatpush1.msra.mxu0 0.0
    %729 = vmatprep.subr.mxu0 0.0
    %730 = vmatpush1.msra.mxu0 0.0
    %731 = vmatprep.subr.mxu0 0.0
    %732 = vmatpush1.msra.mxu0 0.0
    %733 = vmatprep.subr.mxu0 0.0
    %734 = vmatpush1.msra.mxu0 0.0
    %735 = vmatprep.subr.mxu0 0.0
    %736 = vmatpush1.msra.mxu0 0.0
    %737 = vmatprep.subr.mxu0 0.0
    %738 = vmatpush1.msra.mxu0 0.0
    %739 = vmatprep.subr.mxu0 0.0
    %740 = vmatpush1.msra.mxu0 0.0
    %741 = vmatprep.subr.mxu0 0.0
    %742 = vmatpush1.msra.mxu0 0.0
    %743 = vmatprep.subr.mxu0 0.0
    %744 = vmatpush1.msra.mxu0 0.0
    %745 = vmatprep.subr.mxu0 0.0
    %746 = vmatpush1.msra.mxu0 0.0
    %747 = vmatprep.subr.mxu0 0.0
    %748 = vmatpush1.msra.mxu0 0.0
    %749 = vmatprep.subr.mxu0 0.0
    %750 = vmatpush1.msra.mxu0 0.0
    %751 = vmatprep.subr.mxu0 0.0
    %752 = vmatpush1.msra.mxu0 0.0
    %753 = vmatprep.subr.mxu0 0.0
    %754 = vmatpush1.msra.mxu0 0.0
    %755 = vmatprep.subr.mxu0 0.0
    %756 = vmatpush1.msra.mxu0 0.0
    %757 = vmatprep.subr.mxu0 0.0
    %758 = vmatpush1.msra.mxu0 0.0
    %759 = vmatprep.subr.mxu0 0.0
    %760 = vmatpush1.msra.mxu0 0.0
    %761 = vmatprep.subr.mxu0 0.0
    %762 = vmatpush1.msra.mxu0 0.0
    %763 = vmatprep.subr.mxu0 0.0
    %764 = vmatpush1.msra.mxu0 0.0
    %765 = vmatprep.subr.mxu0 0.0
    %766 = vmatpush1.msra.mxu0 0.0
    %767 = vmatprep.subr.mxu0 0.0
    %768 = vmatpush1.msra.mxu0 0.0
    %769 = vmatprep.subr.mxu0 0.0
    %770 = vmatpush1.msra.mxu0 0.0
    %771 = vmatprep.mubr.f32.mxu0 0.0
    %772 = vmatmul.mubr.f32.gmra.mrb[0].mxu0 %v702
    %v773 = vpop.f32.mrb[0].mxu0
    %v774 = vadd.f32 0.0, %v773
    %v775 = vpop.f32.mrb[0].mxu0
    %776 = vmatprep.mubr.f32.mxu0 0.0
    %777 = vmatmul.mubr.f32.gmra.mrb[0].mxu0 %v705
    %v778 = vpop.f32.mrb[0].mxu0
    %v779 = vadd.f32 0.0, %v778
    %v780 = vpop.f32.mrb[0].mxu0
    %781 = vdwg.mxu0
    %s782 = scalar_lea.vmem %s6, 128
    %v783 = vld [vmem:[%s782] sm:$0xff]
    %v784 = vld [vmem:[%s782 + $0x8] sm:$0xff]
    %v785 = vld [vmem:[%s782 + $0x10] sm:$0xff]
    %v786 = vld [vmem:[%s782 + $0x18] sm:$0xff]
    %v787 = vld [vmem:[%s782 + $0x20] sm:$0xff]
    %v788 = vld [vmem:[%s782 + $0x28] sm:$0xff]
    %v789 = vld [vmem:[%s782 + $0x30] sm:$0xff]
    %v790 = vld [vmem:[%s782 + $0x38] sm:$0xff]
    %v791 = vld [vmem:[%s782 + $0x40] sm:$0xff]
    %v792 = vld [vmem:[%s782 + $0x48] sm:$0xff]
    %v793 = vld [vmem:[%s782 + $0x50] sm:$0xff]
    %v794 = vld [vmem:[%s782 + $0x58] sm:$0xff]
    %v795 = vld [vmem:[%s782 + $0x60] sm:$0xff]
    %v796 = vld [vmem:[%s782 + $0x68] sm:$0xff]
    %v797 = vld [vmem:[%s782 + $0x70] sm:$0xff]
    %v798 = vld [vmem:[%s782 + $0x78] sm:$0xff]
    %799 = vmatprep.subr.mxu0 0.0
    %800 = vmatpush1.msra.mxu0 %v783
    %801 = vmatprep.subr.mxu0 0.0
    %802 = vmatpush1.msra.mxu0 %v784
    %803 = vmatprep.subr.mxu0 0.0
    %804 = vmatpush1.msra.mxu0 %v785
    %805 = vmatprep.subr.mxu0 0.0
    %806 = vmatpush1.msra.mxu0 %v786
    %807 = vmatprep.subr.mxu0 0.0
    %808 = vmatpush1.msra.mxu0 %v787
    %809 = vmatprep.subr.mxu0 0.0
    %810 = vmatpush1.msra.mxu0 %v788
    %811 = vmatprep.subr.mxu0 0.0
    %812 = vmatpush1.msra.mxu0 %v789
    %813 = vmatprep.subr.mxu0 0.0
    %814 = vmatpush1.msra.mxu0 %v790
    %815 = vmatprep.subr.mxu0 0.0
    %816 = vmatpush1.msra.mxu0 %v791
    %817 = vmatprep.subr.mxu0 0.0
    %818 = vmatpush1.msra.mxu0 %v792
    %819 = vmatprep.subr.mxu0 0.0
    %820 = vmatpush1.msra.mxu0 %v793
    %821 = vmatprep.subr.mxu0 0.0
    %822 = vmatpush1.msra.mxu0 %v794
    %823 = vmatprep.subr.mxu0 0.0
    %824 = vmatpush1.msra.mxu0 %v795
    %825 = vmatprep.subr.mxu0 0.0
    %826 = vmatpush1.msra.mxu0 %v796
    %827 = vmatprep.subr.mxu0 0.0
    %828 = vmatpush1.msra.mxu0 %v797
    %829 = vmatprep.subr.mxu0 0.0
    %830 = vmatpush1.msra.mxu0 %v798
    %831 = vmatprep.subr.mxu0 0.0
    %832 = vmatpush1.msra.mxu0 0.0
    %833 = vmatprep.subr.mxu0 0.0
    %834 = vmatpush1.msra.mxu0 0.0
    %835 = vmatprep.subr.mxu0 0.0
    %836 = vmatpush1.msra.mxu0 0.0
    %837 = vmatprep.subr.mxu0 0.0
    %838 = vmatpush1.msra.mxu0 0.0
    %839 = vmatprep.subr.mxu0 0.0
    %840 = vmatpush1.msra.mxu0 0.0
    %841 = vmatprep.subr.mxu0 0.0
    %842 = vmatpush1.msra.mxu0 0.0
    %843 = vmatprep.subr.mxu0 0.0
    %844 = vmatpush1.msra.mxu0 0.0
    %845 = vmatprep.subr.mxu0 0.0
    %846 = vmatpush1.msra.mxu0 0.0
    %847 = vmatprep.subr.mxu0 0.0
    %848 = vmatpush1.msra.mxu0 0.0
    %849 = vmatprep.subr.mxu0 0.0
    %850 = vmatpush1.msra.mxu0 0.0
    %851 = vmatprep.subr.mxu0 0.0
    %852 = vmatpush1.msra.mxu0 0.0
    %853 = vmatprep.subr.mxu0 0.0
    %854 = vmatpush1.msra.mxu0 0.0
    %855 = vmatprep.subr.mxu0 0.0
    %856 = vmatpush1.msra.mxu0 0.0
    %857 = vmatprep.subr.mxu0 0.0
    %858 = vmatpush1.msra.mxu0 0.0
    %859 = vmatprep.subr.mxu0 0.0
    %860 = vmatpush1.msra.mxu0 0.0
    %861 = vmatprep.subr.mxu0 0.0
    %862 = vmatpush1.msra.mxu0 0.0
    %863 = vmatprep.mubr.f32.mxu0 0.0
    %864 = vmatmul.mubr.f32.gmra.mrb[0].mxu0 %v774
    %v865 = vpop.f32.mrb[0].mxu0
    %v866 = vadd.f32 0.0, %v865
    %v867 = vpop.f32.mrb[0].mxu0
    %868 = vmatprep.mubr.f32.mxu0 0.0
    %869 = vmatmul.mubr.f32.gmra.mrb[0].mxu0 %v779
    %v870 = vpop.f32.mrb[0].mxu0
    %v871 = vadd.f32 0.0, %v870
    %v872 = vpop.f32.mrb[0].mxu0
    %873 = vdwg.mxu0
    %874 = vmatprep.subr.mxu0 0.0
    %875 = vmatpush1.msra.mxu0 %v588
    %876 = vmatprep.subr.mxu0 0.0
    %877 = vmatpush1.msra.mxu0 %v589
    %878 = vmatprep.subr.mxu0 0.0
    %879 = vmatpush1.msra.mxu0 %v590
    %880 = vmatprep.subr.mxu0 0.0
    %881 = vmatpush1.msra.mxu0 %v591
    %882 = vmatprep.subr.mxu0 0.0
    %883 = vmatpush1.msra.mxu0 %v592
    %884 = vmatprep.subr.mxu0 0.0
    %885 = vmatpush1.msra.mxu0 %v593
    %886 = vmatprep.subr.mxu0 0.0
    %887 = vmatpush1.msra.mxu0 %v594
    %888 = vmatprep.subr.mxu0 0.0
    %889 = vmatpush1.msra.mxu0 %v595
    %890 = vmatprep.subr.mxu0 0.0
    %891 = vmatpush1.msra.mxu0 %v596
    %892 = vmatprep.subr.mxu0 0.0
    %893 = vmatpush1.msra.mxu0 %v597
    %894 = vmatprep.subr.mxu0 0.0
    %895 = vmatpush1.msra.mxu0 %v598
    %896 = vmatprep.subr.mxu0 0.0
    %897 = vmatpush1.msra.mxu0 %v599
    %898 = vmatprep.subr.mxu0 0.0
    %899 = vmatpush1.msra.mxu0 %v600
    %900 = vmatprep.subr.mxu0 0.0
    %901 = vmatpush1.msra.mxu0 %v601
    %902 = vmatprep.subr.mxu0 0.0
    %903 = vmatpush1.msra.mxu0 %v602
    %904 = vmatprep.subr.mxu0 0.0
    %905 = vmatpush1.msra.mxu0 %v603
    %906 = vmatprep.subr.mxu0 0.0
    %907 = vmatpush1.msra.mxu0 0.0
    %908 = vmatprep.subr.mxu0 0.0
    %909 = vmatpush1.msra.mxu0 0.0
    %910 = vmatprep.subr.mxu0 0.0
    %911 = vmatpush1.msra.mxu0 0.0
    %912 = vmatprep.subr.mxu0 0.0
    %913 = vmatpush1.msra.mxu0 0.0
    %914 = vmatprep.subr.mxu0 0.0
    %915 = vmatpush1.msra.mxu0 0.0
    %916 = vmatprep.subr.mxu0 0.0
    %917 = vmatpush1.msra.mxu0 0.0
    %918 = vmatprep.subr.mxu0 0.0
    %919 = vmatpush1.msra.mxu0 0.0
    %920 = vmatprep.subr.mxu0 0.0
    %921 = vmatpush1.msra.mxu0 0.0
    %922 = vmatprep.subr.mxu0 0.0
    %923 = vmatpush1.msra.mxu0 0.0
    %924 = vmatprep.subr.mxu0 0.0
    %925 = vmatpush1.msra.mxu0 0.0
    %926 = vmatprep.subr.mxu0 0.0
    %927 = vmatpush1.msra.mxu0 0.0
    %928 = vmatprep.subr.mxu0 0.0
    %929 = vmatpush1.msra.mxu0 0.0
    %930 = vmatprep.subr.mxu0 0.0
    %931 = vmatpush1.msra.mxu0 0.0
    %932 = vmatprep.subr.mxu0 0.0
    %933 = vmatpush1.msra.mxu0 0.0
    %934 = vmatprep.subr.mxu0 0.0
    %935 = vmatpush1.msra.mxu0 0.0
    %936 = vmatprep.subr.mxu0 0.0
    %937 = vmatpush1.msra.mxu0 0.0
    %938 = vmatprep.mubr.f32.mxu0 0.0
    %939 = vmatmul.mubr.f32.gmra.mrb[0].mxu0 %v580
    %v940 = vpop.f32.mrb[0].mxu0
    %v941 = vadd.f32 %v866, %v940
    %v942 = vpop.f32.mrb[0].mxu0
    %943 = vmatprep.mubr.f32.mxu0 0.0
    %944 = vmatmul.mubr.f32.gmra.mrb[0].mxu0 %v585
    %v945 = vpop.f32.mrb[0].mxu0
    %v946 = vadd.f32 %v871, %v945
    %v947 = vpop.f32.mrb[0].mxu0
    %948 = vdwg.mxu0
    %v949 = vld [vmem:[%s7] sm:$0x1]
    %v951 = vlaneseq
    %v952 = vshrl.u32 %v951, 7
    %v953 = vsub.s32 0, %v952
    %v954 = vrot.slane %v949, %v953
    %v956 = vadd.f32 %v941, %v954
    %v957 = vadd.f32 %v946, %v954
    %v958 = vadd.f32 %v956, %v112
    %v959 = vadd.f32 %v957, %v113
    %v960 = vld [vmem:[%s8] sm:$0x1]
    %v961 = vld [vmem:[%s9] sm:$0x1]
    %v962 = vsel %vm70, %v958, 0.0
    %963 = vadd.xlane.f32.xlu0 %v962
    %v964 = vpop.xlane.xlu0 %963
    %v965 = vsel %vm70, %v959, 0.0
    %966 = vadd.xlane.f32.xlu0 %v965
    %v967 = vpop.xlane.xlu0 %966
    %v968 = vmul.f32 %v964, %v77
    %v969 = vmul.f32 %v967, %v77
    %v970 = vsub.f32 %v958, %v968
    %v971 = vsub.f32 %v959, %v969
    %v972 = vmul.f32 %v970, %v970
    %v973 = vmul.f32 %v971, %v971
    %v974 = vsel %vm70, %v972, 0.0
    %975 = vadd.xlane.f32.xlu0 %v974
    %v976 = vpop.xlane.xlu0 %975
    %v977 = vsel %vm70, %v973, 0.0
    %978 = vadd.xlane.f32.xlu0 %v977
    %v979 = vpop.xlane.xlu0 %978
    %v980 = vmul.f32 %v976, %v77
    %v981 = vmul.f32 %v979, %v77
    %v982 = vadd.f32 %v980, 1e-12
    %v983 = vadd.f32 %v981, 1e-12
    %v984 = vrsqrt.pop %v982
    %v985 = vrsqrt.pop %v983
    %v986 = vmul.f32 %v970, %v984
    %v987 = vmul.f32 %v971, %v985
    %v989 = vlaneseq
    %v990 = vshrl.u32 %v989, 7
    %v991 = vsub.s32 0, %v990
    %v992 = vrot.slane %v960, %v991
    %v994 = vmul.f32 %v986, %v992
    %v995 = vmul.f32 %v987, %v992
    %v997 = vlaneseq
    %v998 = vshrl.u32 %v997, 7
    %v999 = vsub.s32 0, %v998
    %v1000 = vrot.slane %v961, %v999
    %v1002 = vadd.f32 %v994, %v1000
    %v1003 = vadd.f32 %v995, %v1000
    %v1004 = vld [vmem:[%s10] sm:$0xff]
    %v1005 = vld [vmem:[%s10 + $0x8] sm:$0xff]
    %v1006 = vld [vmem:[%s10 + $0x10] sm:$0xff]
    %v1007 = vld [vmem:[%s10 + $0x18] sm:$0xff]
    %v1008 = vld [vmem:[%s11] sm:$0x1]
    %v1010 = vlaneseq
    %v1011 = vshrl.u32 %v1010, 7
    %v1012 = vsub.s32 0, %v1011
    %v1013 = vrot.slane %v1008, %v1012
    %v1016 = vsel %vm70, %v1002, 0
    %v1019 = vsel %vm70, %v1003, 0
    %1021 = vmatprep.subr.mxu0 0.0
    %1022 = vmatpush1.msra.mxu0 %v1004
    %1023 = vmatprep.subr.mxu0 0.0
    %1024 = vmatpush1.msra.mxu0 %v1005
    %1025 = vmatprep.subr.mxu0 0.0
    %1026 = vmatpush1.msra.mxu0 %v1006
    %1027 = vmatprep.subr.mxu0 0.0
    %1028 = vmatpush1.msra.mxu0 %v1007
    %1029 = vmatprep.subr.mxu0 0.0
    %1030 = vmatpush1.msra.mxu0 0.0
    %1031 = vmatprep.subr.mxu0 0.0
    %1032 = vmatpush1.msra.mxu0 0.0
    %1033 = vmatprep.subr.mxu0 0.0
    %1034 = vmatpush1.msra.mxu0 0.0
    %1035 = vmatprep.subr.mxu0 0.0
    %1036 = vmatpush1.msra.mxu0 0.0
    %1037 = vmatprep.subr.mxu0 0.0
    %1038 = vmatpush1.msra.mxu0 0.0
    %1039 = vmatprep.subr.mxu0 0.0
    %1040 = vmatpush1.msra.mxu0 0.0
    %1041 = vmatprep.subr.mxu0 0.0
    %1042 = vmatpush1.msra.mxu0 0.0
    %1043 = vmatprep.subr.mxu0 0.0
    %1044 = vmatpush1.msra.mxu0 0.0
    %1045 = vmatprep.subr.mxu0 0.0
    %1046 = vmatpush1.msra.mxu0 0.0
    %1047 = vmatprep.subr.mxu0 0.0
    %1048 = vmatpush1.msra.mxu0 0.0
    %1049 = vmatprep.subr.mxu0 0.0
    %1050 = vmatpush1.msra.mxu0 0.0
    %1051 = vmatprep.subr.mxu0 0.0
    %1052 = vmatpush1.msra.mxu0 0.0
    %1053 = vmatprep.subr.mxu0 0.0
    %1054 = vmatpush1.msra.mxu0 0.0
    %1055 = vmatprep.subr.mxu0 0.0
    %1056 = vmatpush1.msra.mxu0 0.0
    %1057 = vmatprep.subr.mxu0 0.0
    %1058 = vmatpush1.msra.mxu0 0.0
    %1059 = vmatprep.subr.mxu0 0.0
    %1060 = vmatpush1.msra.mxu0 0.0
    %1061 = vmatprep.subr.mxu0 0.0
    %1062 = vmatpush1.msra.mxu0 0.0
    %1063 = vmatprep.subr.mxu0 0.0
    %1064 = vmatpush1.msra.mxu0 0.0
    %1065 = vmatprep.subr.mxu0 0.0
    %1066 = vmatpush1.msra.mxu0 0.0
    %1067 = vmatprep.subr.mxu0 0.0
    %1068 = vmatpush1.msra.mxu0 0.0
    %1069 = vmatprep.subr.mxu0 0.0
    %1070 = vmatpush1.msra.mxu0 0.0
    %1071 = vmatprep.subr.mxu0 0.0
    %1072 = vmatpush1.msra.mxu0 0.0
    %1073 = vmatprep.subr.mxu0 0.0
    %1074 = vmatpush1.msra.mxu0 0.0
    %1075 = vmatprep.subr.mxu0 0.0
    %1076 = vmatpush1.msra.mxu0 0.0
    %1077 = vmatprep.subr.mxu0 0.0
    %1078 = vmatpush1.msra.mxu0 0.0
    %1079 = vmatprep.subr.mxu0 0.0
    %1080 = vmatpush1.msra.mxu0 0.0
    %1081 = vmatprep.subr.mxu0 0.0
    %1082 = vmatpush1.msra.mxu0 0.0
    %1083 = vmatprep.subr.mxu0 0.0
    %1084 = vmatpush1.msra.mxu0 0.0
    %1085 = vmatprep.mubr.f32.mxu0 0.0
    %1086 = vmatmul.mubr.f32.gmra.mrb[0].mxu0 %v1016
    %v1087 = vpop.f32.mrb[0].mxu0
    %v1088 = vadd.f32 %v1013, %v1087
    %v1089 = vpop.f32.mrb[0].mxu0
    %1090 = vmatprep.mubr.f32.mxu0 0.0
    %1091 = vmatmul.mubr.f32.gmra.mrb[0].mxu0 %v1019
    %v1092 = vpop.f32.mrb[0].mxu0
    %v1093 = vadd.f32 %v1013, %v1092
    %v1094 = vpop.f32.mrb[0].mxu0
    %1095 = vdwg.mxu0
    %v1096 = vmul.f32 %v1088, 0.5
    %v1097 = vmul.f32 %v1093, 0.5
    %v1098 = vmul.f32 %v1088, 0.044715
    %v1099 = vmul.f32 %v1093, 0.044715
    %v1100 = vmul.f32 %v1098, %v1088
    %v1101 = vmul.f32 %v1099, %v1093
    %v1102 = vmul.f32 %v1100, %v1088
    %v1103 = vmul.f32 %v1101, %v1093
    %v1104 = vadd.f32 %v1088, %v1102
    %v1105 = vadd.f32 %v1093, %v1103
    %v1106 = vmul.f32 %v1104, 0.7978846
    %v1107 = vmul.f32 %v1105, 0.7978846
    %v1108 = vtanh.pop %v1106
    %v1109 = vtanh.pop %v1107
    %v1110 = vadd.f32 %v1108, 1.0
    %v1111 = vadd.f32 %v1109, 1.0
    %v1112 = vmul.f32 %v1096, %v1110
    %v1113 = vmul.f32 %v1097, %v1111
    %v1114 = vld [vmem:[%s12] sm:$0xff]
    %v1115 = vld [vmem:[%s12 + $0x8] sm:$0xff]
    %v1116 = vld [vmem:[%s12 + $0x10] sm:$0xff]
    %v1117 = vld [vmem:[%s12 + $0x18] sm:$0xff]
    %v1118 = vld [vmem:[%s12 + $0x20] sm:$0xff]
    %v1119 = vld [vmem:[%s12 + $0x28] sm:$0xff]
    %v1120 = vld [vmem:[%s12 + $0x30] sm:$0xff]
    %v1121 = vld [vmem:[%s12 + $0x38] sm:$0xff]
    %v1122 = vld [vmem:[%s13] sm:$0x1]
    %v1124 = vlaneseq
    %v1125 = vshrl.u32 %v1124, 7
    %v1126 = vsub.s32 0, %v1125
    %v1127 = vrot.slane %v1122, %v1126
    %vm1129 = vcmask 523264
    %v1131 = vsel %vm1129, %v1112, 0
    %v1134 = vsel %vm1129, %v1113, 0
    %1136 = vmatprep.subr.mxu0 0.0
    %1137 = vmatpush1.msra.mxu0 %v1114
    %1138 = vmatprep.subr.mxu0 0.0
    %1139 = vmatpush1.msra.mxu0 %v1115
    %1140 = vmatprep.subr.mxu0 0.0
    %1141 = vmatpush1.msra.mxu0 %v1116
    %1142 = vmatprep.subr.mxu0 0.0
    %1143 = vmatpush1.msra.mxu0 %v1117
    %1144 = vmatprep.subr.mxu0 0.0
    %1145 = vmatpush1.msra.mxu0 %v1118
    %1146 = vmatprep.subr.mxu0 0.0
    %1147 = vmatpush1.msra.mxu0 %v1119
    %1148 = vmatprep.subr.mxu0 0.0
    %1149 = vmatpush1.msra.mxu0 %v1120
    %1150 = vmatprep.subr.mxu0 0.0
    %1151 = vmatpush1.msra.mxu0 %v1121
    %1152 = vmatprep.subr.mxu0 0.0
    %1153 = vmatpush1.msra.mxu0 0.0
    %1154 = vmatprep.subr.mxu0 0.0
    %1155 = vmatpush1.msra.mxu0 0.0
    %1156 = vmatprep.subr.mxu0 0.0
    %1157 = vmatpush1.msra.mxu0 0.0
    %1158 = vmatprep.subr.mxu0 0.0
    %1159 = vmatpush1.msra.mxu0 0.0
    %1160 = vmatprep.subr.mxu0 0.0
    %1161 = vmatpush1.msra.mxu0 0.0
    %1162 = vmatprep.subr.mxu0 0.0
    %1163 = vmatpush1.msra.mxu0 0.0
    %1164 = vmatprep.subr.mxu0 0.0
    %1165 = vmatpush1.msra.mxu0 0.0
    %1166 = vmatprep.subr.mxu0 0.0
    %1167 = vmatpush1.msra.mxu0 0.0
    %1168 = vmatprep.subr.mxu0 0.0
    %1169 = vmatpush1.msra.mxu0 0.0
    %1170 = vmatprep.subr.mxu0 0.0
    %1171 = vmatpush1.msra.mxu0 0.0
    %1172 = vmatprep.subr.mxu0 0.0
    %1173 = vmatpush1.msra.mxu0 0.0
    %1174 = vmatprep.subr.mxu0 0.0
    %1175 = vmatpush1.msra.mxu0 0.0
    %1176 = vmatprep.subr.mxu0 0.0
    %1177 = vmatpush1.msra.mxu0 0.0
    %1178 = vmatprep.subr.mxu0 0.0
    %1179 = vmatpush1.msra.mxu0 0.0
    %1180 = vmatprep.subr.mxu0 0.0
    %1181 = vmatpush1.msra.mxu0 0.0
    %1182 = vmatprep.subr.mxu0 0.0
    %1183 = vmatpush1.msra.mxu0 0.0
    %1184 = vmatprep.subr.mxu0 0.0
    %1185 = vmatpush1.msra.mxu0 0.0
    %1186 = vmatprep.subr.mxu0 0.0
    %1187 = vmatpush1.msra.mxu0 0.0
    %1188 = vmatprep.subr.mxu0 0.0
    %1189 = vmatpush1.msra.mxu0 0.0
    %1190 = vmatprep.subr.mxu0 0.0
    %1191 = vmatpush1.msra.mxu0 0.0
    %1192 = vmatprep.subr.mxu0 0.0
    %1193 = vmatpush1.msra.mxu0 0.0
    %1194 = vmatprep.subr.mxu0 0.0
    %1195 = vmatpush1.msra.mxu0 0.0
    %1196 = vmatprep.subr.mxu0 0.0
    %1197 = vmatpush1.msra.mxu0 0.0
    %1198 = vmatprep.subr.mxu0 0.0
    %1199 = vmatpush1.msra.mxu0 0.0
    %1200 = vmatprep.mubr.f32.mxu0 0.0
    %1201 = vmatmul.mubr.f32.gmra.mrb[0].mxu0 %v1131
    %v1202 = vpop.f32.mrb[0].mxu0
    %v1203 = vadd.f32 %v1127, %v1202
    %v1204 = vpop.f32.mrb[0].mxu0
    %1205 = vmatprep.mubr.f32.mxu0 0.0
    %1206 = vmatmul.mubr.f32.gmra.mrb[0].mxu0 %v1134
    %v1207 = vpop.f32.mrb[0].mxu0
    %v1208 = vadd.f32 %v1127, %v1207
    %v1209 = vpop.f32.mrb[0].mxu0
    %1210 = vdwg.mxu0
    %v1211 = vadd.f32 %v1203, %v1002
    %v1212 = vadd.f32 %v1208, %v1003
    %v1213 = vld [vmem:[%s14] sm:$0x1]
    %v1214 = vld [vmem:[%s15] sm:$0x1]
    %v1215 = vsel %vm70, %v1211, 0.0
    %1216 = vadd.xlane.f32.xlu0 %v1215
    %v1217 = vpop.xlane.xlu0 %1216
    %v1218 = vsel %vm70, %v1212, 0.0
    %1219 = vadd.xlane.f32.xlu0 %v1218
    %v1220 = vpop.xlane.xlu0 %1219
    %v1221 = vmul.f32 %v1217, %v77
    %v1222 = vmul.f32 %v1220, %v77
    %v1223 = vsub.f32 %v1211, %v1221
    %v1224 = vsub.f32 %v1212, %v1222
    %v1225 = vmul.f32 %v1223, %v1223
    %v1226 = vmul.f32 %v1224, %v1224
    %v1227 = vsel %vm70, %v1225, 0.0
    %1228 = vadd.xlane.f32.xlu0 %v1227
    %v1229 = vpop.xlane.xlu0 %1228
    %v1230 = vsel %vm70, %v1226, 0.0
    %1231 = vadd.xlane.f32.xlu0 %v1230
    %v1232 = vpop.xlane.xlu0 %1231
    %v1233 = vmul.f32 %v1229, %v77
    %v1234 = vmul.f32 %v1232, %v77
    %v1235 = vadd.f32 %v1233, 1e-12
    %v1236 = vadd.f32 %v1234, 1e-12
    %v1237 = vrsqrt.pop %v1235
    %v1238 = vrsqrt.pop %v1236
    %v1239 = vmul.f32 %v1223, %v1237
    %v1240 = vmul.f32 %v1224, %v1238
    %v1242 = vlaneseq
    %v1243 = vshrl.u32 %v1242, 7
    %v1244 = vsub.s32 0, %v1243
    %v1245 = vrot.slane %v1213, %v1244
    %v1247 = vmul.f32 %v1239, %v1245
    %v1248 = vmul.f32 %v1240, %v1245
    %v1250 = vlaneseq
    %v1251 = vshrl.u32 %v1250, 7
    %v1252 = vsub.s32 0, %v1251
    %v1253 = vrot.slane %v1214, %v1252
    %v1255 = vadd.f32 %v1247, %v1253
    %v1256 = vadd.f32 %v1248, %v1253
    %s1257 = scalar_lea.vmem %s4, 192
    %v1258 = vld [vmem:[%s1257] sm:$0xff]
    %v1259 = vld [vmem:[%s1257 + $0x8] sm:$0xff]
    %v1260 = vld [vmem:[%s1257 + $0x10] sm:$0xff]
    %v1261 = vld [vmem:[%s1257 + $0x18] sm:$0xff]
    %v1262 = vld [vmem:[%s1257 + $0x20] sm:$0xff]
    %v1263 = vld [vmem:[%s1257 + $0x28] sm:$0xff]
    %v1264 = vld [vmem:[%s1257 + $0x30] sm:$0xff]
    %v1265 = vld [vmem:[%s1257 + $0x38] sm:$0xff]
    %v1266 = vld [vmem:[%s1257 + $0x40] sm:$0xff]
    %v1267 = vld [vmem:[%s1257 + $0x48] sm:$0xff]
    %v1268 = vld [vmem:[%s1257 + $0x50] sm:$0xff]
    %v1269 = vld [vmem:[%s1257 + $0x58] sm:$0xff]
    %v1270 = vld [vmem:[%s1257 + $0x60] sm:$0xff]
    %v1271 = vld [vmem:[%s1257 + $0x68] sm:$0xff]
    %v1272 = vld [vmem:[%s1257 + $0x70] sm:$0xff]
    %v1273 = vld [vmem:[%s1257 + $0x78] sm:$0xff]
    %v1274 = vld [vmem:[%s1257 + $0x80] sm:$0xff]
    %v1275 = vld [vmem:[%s1257 + $0x88] sm:$0xff]
    %v1276 = vld [vmem:[%s1257 + $0x90] sm:$0xff]
    %v1277 = vld [vmem:[%s1257 + $0x98] sm:$0xff]
    %v1278 = vld [vmem:[%s1257 + $0xa0] sm:$0xff]
    %v1279 = vld [vmem:[%s1257 + $0xa8] sm:$0xff]
    %v1280 = vld [vmem:[%s1257 + $0xb0] sm:$0xff]
    %v1281 = vld [vmem:[%s1257 + $0xb8] sm:$0xff]
    %s1282 = scalar_lea.vmem %s5, 6
    %v1283 = vld [vmem:[%s1282] sm:$0x3f]
    %v1285 = vlaneseq
    %v1286 = vshrl.u32 %v1285, 7
    %v1287 = vsub.s32 0, %v1286
    %v1288 = vrot.slane %v1283, %v1287
    %v1289 = vlaneseq
    %v1290 = vshrl.u32 %v1289, 7
    %v1291 = vsub.s32 1, %v1290
    %v1292 = vrot.slane %v1283, %v1291
    %v1293 = vlaneseq
    %v1294 = vshrl.u32 %v1293, 7
    %v1295 = vsub.s32 2, %v1294
    %v1296 = vrot.slane %v1283, %v1295
    %v1297 = vlaneseq
    %v1298 = vshrl.u32 %v1297, 7
    %v1299 = vsub.s32 3, %v1298
    %v1300 = vrot.slane %v1283, %v1299
    %v1301 = vlaneseq
    %v1302 = vshrl.u32 %v1301, 7
    %v1303 = vsub.s32 4, %v1302
    %v1304 = vrot.slane %v1283, %v1303
    %v1305 = vlaneseq
    %v1306 = vshrl.u32 %v1305, 7
    %v1307 = vsub.s32 5, %v1306
    %v1308 = vrot.slane %v1283, %v1307
    %v1316 = vsel %vm70, %v1255, 0
    %v1319 = vsel %vm70, %v1256, 0
    %1321 = vmatprep.subr.mxu0 %v1259
    %1322 = vmatpush1.msra.mxu0 %v1258
    %1323 = vmatprep.subr.mxu0 %v1265
    %1324 = vmatpush1.msra.mxu0 %v1264
    %1325 = vmatprep.subr.mxu0 %v1271
    %1326 = vmatpush1.msra.mxu0 %v1270
    %1327 = vmatprep.subr.mxu0 %v1277
    %1328 = vmatpush1.msra.mxu0 %v1276
    %1329 = vmatprep.subr.mxu0 0.0
    %1330 = vmatpush1.msra.mxu0 0.0
    %1331 = vmatprep.subr.mxu0 0.0
    %1332 = vmatpush1.msra.mxu0 0.0
    %1333 = vmatprep.subr.mxu0 0.0
    %1334 = vmatpush1.msra.mxu0 0.0
    %1335 = vmatprep.subr.mxu0 0.0
    %1336 = vmatpush1.msra.mxu0 0.0
    %1337 = vmatprep.subr.mxu0 0.0
    %1338 = vmatpush1.msra.mxu0 0.0
    %1339 = vmatprep.subr.mxu0 0.0
    %1340 = vmatpush1.msra.mxu0 0.0
    %1341 = vmatprep.subr.mxu0 0.0
    %1342 = vmatpush1.msra.mxu0 0.0
    %1343 = vmatprep.subr.mxu0 0.0
    %1344 = vmatpush1.msra.mxu0 0.0
    %1345 = vmatprep.subr.mxu0 0.0
    %1346 = vmatpush1.msra.mxu0 0.0
    %1347 = vmatprep.subr.mxu0 0.0
    %1348 = vmatpush1.msra.mxu0 0.0
    %1349 = vmatprep.subr.mxu0 0.0
    %1350 = vmatpush1.msra.mxu0 0.0
    %1351 = vmatprep.subr.mxu0 0.0
    %1352 = vmatpush1.msra.mxu0 0.0
    %1353 = vmatprep.subr.mxu0 0.0
    %1354 = vmatpush1.msra.mxu0 0.0
    %1355 = vmatprep.subr.mxu0 0.0
    %1356 = vmatpush1.msra.mxu0 0.0
    %1357 = vmatprep.subr.mxu0 0.0
    %1358 = vmatpush1.msra.mxu0 0.0
    %1359 = vmatprep.subr.mxu0 0.0
    %1360 = vmatpush1.msra.mxu0 0.0
    %1361 = vmatprep.subr.mxu0 0.0
    %1362 = vmatpush1.msra.mxu0 0.0
    %1363 = vmatprep.subr.mxu0 0.0
    %1364 = vmatpush1.msra.mxu0 0.0
    %1365 = vmatprep.subr.mxu0 0.0
    %1366 = vmatpush1.msra.mxu0 0.0
    %1367 = vmatprep.subr.mxu0 0.0
    %1368 = vmatpush1.msra.mxu0 0.0
    %1369 = vmatprep.subr.mxu0 0.0
    %1370 = vmatpush1.msra.mxu0 0.0
    %1371 = vmatprep.subr.mxu0 0.0
    %1372 = vmatpush1.msra.mxu0 0.0
    %1373 = vmatprep.subr.mxu0 0.0
    %1374 = vmatpush1.msra.mxu0 0.0
    %1375 = vmatprep.subr.mxu0 0.0
    %1376 = vmatpush1.msra.mxu0 0.0
    %1377 = vmatprep.subr.mxu0 0.0
    %1378 = vmatpush1.msra.mxu0 0.0
    %1379 = vmatprep.subr.mxu0 0.0
    %1380 = vmatpush1.msra.mxu0 0.0
    %1381 = vmatprep.subr.mxu0 0.0
    %1382 = vmatpush1.msra.mxu0 0.0
    %1383 = vmatprep.subr.mxu0 0.0
    %1384 = vmatpush1.msra.mxu0 0.0
    %1385 = vmatprep.mubr.f32.mxu0 0.0
    %1386 = vmatmul.mubr.f32.gmra.mrb[0].mxu0 %v1316
    %v1387 = vpop.f32.mrb[0].mxu0
    %v1388 = vadd.f32 %v1288, %v1387
    %v1389 = vpop.f32.mrb[0].mxu0
    %v1390 = vadd.f32 %v1292, %v1389
    %1391 = vmatprep.mubr.f32.mxu0 0.0
    %1392 = vmatmul.mubr.f32.gmra.mrb[0].mxu0 %v1319
    %v1393 = vpop.f32.mrb[0].mxu0
    %v1394 = vadd.f32 %v1288, %v1393
    %v1395 = vpop.f32.mrb[0].mxu0
    %v1396 = vadd.f32 %v1292, %v1395
    %1397 = vdwg.mxu0
    %1398 = vmatprep.subr.mxu0 %v1261
    %1399 = vmatpush1.msra.mxu0 %v1260
    %1400 = vmatprep.subr.mxu0 %v1267
    %1401 = vmatpush1.msra.mxu0 %v1266
    %1402 = vmatprep.subr.mxu0 %v1273
    %1403 = vmatpush1.msra.mxu0 %v1272
    %1404 = vmatprep.subr.mxu0 %v1279
    %1405 = vmatpush1.msra.mxu0 %v1278
    %1406 = vmatprep.subr.mxu0 0.0
    %1407 = vmatpush1.msra.mxu0 0.0
    %1408 = vmatprep.subr.mxu0 0.0
    %1409 = vmatpush1.msra.mxu0 0.0
    %1410 = vmatprep.subr.mxu0 0.0
    %1411 = vmatpush1.msra.mxu0 0.0
    %1412 = vmatprep.subr.mxu0 0.0
    %1413 = vmatpush1.msra.mxu0 0.0
    %1414 = vmatprep.subr.mxu0 0.0
    %1415 = vmatpush1.msra.mxu0 0.0
    %1416 = vmatprep.subr.mxu0 0.0
    %1417 = vmatpush1.msra.mxu0 0.0
    %1418 = vmatprep.subr.mxu0 0.0
    %1419 = vmatpush1.msra.mxu0 0.0
    %1420 = vmatprep.subr.mxu0 0.0
    %1421 = vmatpush1.msra.mxu0 0.0
    %1422 = vmatprep.subr.mxu0 0.0
    %1423 = vmatpush1.msra.mxu0 0.0
    %1424 = vmatprep.subr.mxu0 0.0
    %1425 = vmatpush1.msra.mxu0 0.0
    %1426 = vmatprep.subr.mxu0 0.0
    %1427 = vmatpush1.msra.mxu0 0.0
    %1428 = vmatprep.subr.mxu0 0.0
    %1429 = vmatpush1.msra.mxu0 0.0
    %1430 = vmatprep.subr.mxu0 0.0
    %1431 = vmatpush1.msra.mxu0 0.0
    %1432 = vmatprep.subr.mxu0 0.0
    %1433 = vmatpush1.msra.mxu0 0.0
    %1434 = vmatprep.subr.mxu0 0.0
    %1435 = vmatpush1.msra.mxu0 0.0
    %1436 = vmatprep.subr.mxu0 0.0
    %1437 = vmatpush1.msra.mxu0 0.0
    %1438 = vmatprep.subr.mxu0 0.0
    %1439 = vmatpush1.msra.mxu0 0.0
    %1440 = vmatprep.subr.mxu0 0.0
    %1441 = vmatpush1.msra.mxu0 0.0
    %1442 = vmatprep.subr.mxu0 0.0
    %1443 = vmatpush1.msra.mxu0 0.0
    %1444 = vmatprep.subr.mxu0 0.0
    %1445 = vmatpush1.msra.mxu0 0.0
    %1446 = vmatprep.subr.mxu0 0.0
    %1447 = vmatpush1.msra.mxu0 0.0
    %1448 = vmatprep.subr.mxu0 0.0
    %1449 = vmatpush1.msra.mxu0 0.0
    %1450 = vmatprep.subr.mxu0 0.0
    %1451 = vmatpush1.msra.mxu0 0.0
    %1452 = vmatprep.subr.mxu0 0.0
    %1453 = vmatpush1.msra.mxu0 0.0
    %1454 = vmatprep.subr.mxu0 0.0
    %1455 = vmatpush1.msra.mxu0 0.0
    %1456 = vmatprep.subr.mxu0 0.0
    %1457 = vmatpush1.msra.mxu0 0.0
    %1458 = vmatprep.subr.mxu0 0.0
    %1459 = vmatpush1.msra.mxu0 0.0
    %1460 = vmatprep.subr.mxu0 0.0
    %1461 = vmatpush1.msra.mxu0 0.0
    %1462 = vmatprep.mubr.f32.mxu0 0.0
    %1463 = vmatmul.mubr.f32.gmra.mrb[0].mxu0 %v1316
    %v1464 = vpop.f32.mrb[0].mxu0
    %v1465 = vadd.f32 %v1296, %v1464
    %v1466 = vpop.f32.mrb[0].mxu0
    %v1467 = vadd.f32 %v1300, %v1466
    %1468 = vmatprep.mubr.f32.mxu0 0.0
    %1469 = vmatmul.mubr.f32.gmra.mrb[0].mxu0 %v1319
    %v1470 = vpop.f32.mrb[0].mxu0
    %v1471 = vadd.f32 %v1296, %v1470
    %v1472 = vpop.f32.mrb[0].mxu0
    %v1473 = vadd.f32 %v1300, %v1472
    %1474 = vdwg.mxu0
    %1475 = vmatprep.subr.mxu0 %v1263
    %1476 = vmatpush1.msra.mxu0 %v1262
    %1477 = vmatprep.subr.mxu0 %v1269
    %1478 = vmatpush1.msra.mxu0 %v1268
    %1479 = vmatprep.subr.mxu0 %v1275
    %1480 = vmatpush1.msra.mxu0 %v1274
    %1481 = vmatprep.subr.mxu0 %v1281
    %1482 = vmatpush1.msra.mxu0 %v1280
    %1483 = vmatprep.subr.mxu0 0.0
    %1484 = vmatpush1.msra.mxu0 0.0
    %1485 = vmatprep.subr.mxu0 0.0
    %1486 = vmatpush1.msra.mxu0 0.0
    %1487 = vmatprep.subr.mxu0 0.0
    %1488 = vmatpush1.msra.mxu0 0.0
    %1489 = vmatprep.subr.mxu0 0.0
    %1490 = vmatpush1.msra.mxu0 0.0
    %1491 = vmatprep.subr.mxu0 0.0
    %1492 = vmatpush1.msra.mxu0 0.0
    %1493 = vmatprep.subr.mxu0 0.0
    %1494 = vmatpush1.msra.mxu0 0.0
    %1495 = vmatprep.subr.mxu0 0.0
    %1496 = vmatpush1.msra.mxu0 0.0
    %1497 = vmatprep.subr.mxu0 0.0
    %1498 = vmatpush1.msra.mxu0 0.0
    %1499 = vmatprep.subr.mxu0 0.0
    %1500 = vmatpush1.msra.mxu0 0.0
    %1501 = vmatprep.subr.mxu0 0.0
    %1502 = vmatpush1.msra.mxu0 0.0
    %1503 = vmatprep.subr.mxu0 0.0
    %1504 = vmatpush1.msra.mxu0 0.0
    %1505 = vmatprep.subr.mxu0 0.0
    %1506 = vmatpush1.msra.mxu0 0.0
    %1507 = vmatprep.subr.mxu0 0.0
    %1508 = vmatpush1.msra.mxu0 0.0
    %1509 = vmatprep.subr.mxu0 0.0
    %1510 = vmatpush1.msra.mxu0 0.0
    %1511 = vmatprep.subr.mxu0 0.0
    %1512 = vmatpush1.msra.mxu0 0.0
    %1513 = vmatprep.subr.mxu0 0.0
    %1514 = vmatpush1.msra.mxu0 0.0
    %1515 = vmatprep.subr.mxu0 0.0
    %1516 = vmatpush1.msra.mxu0 0.0
    %1517 = vmatprep.subr.mxu0 0.0
    %1518 = vmatpush1.msra.mxu0 0.0
    %1519 = vmatprep.subr.mxu0 0.0
    %1520 = vmatpush1.msra.mxu0 0.0
    %1521 = vmatprep.subr.mxu0 0.0
    %1522 = vmatpush1.msra.mxu0 0.0
    %1523 = vmatprep.subr.mxu0 0.0
    %1524 = vmatpush1.msra.mxu0 0.0
    %1525 = vmatprep.subr.mxu0 0.0
    %1526 = vmatpush1.msra.mxu0 0.0
    %1527 = vmatprep.subr.mxu0 0.0
    %1528 = vmatpush1.msra.mxu0 0.0
    %1529 = vmatprep.subr.mxu0 0.0
    %1530 = vmatpush1.msra.mxu0 0.0
    %1531 = vmatprep.subr.mxu0 0.0
    %1532 = vmatpush1.msra.mxu0 0.0
    %1533 = vmatprep.subr.mxu0 0.0
    %1534 = vmatpush1.msra.mxu0 0.0
    %1535 = vmatprep.subr.mxu0 0.0
    %1536 = vmatpush1.msra.mxu0 0.0
    %1537 = vmatprep.subr.mxu0 0.0
    %1538 = vmatpush1.msra.mxu0 0.0
    %1539 = vmatprep.mubr.f32.mxu0 0.0
    %1540 = vmatmul.mubr.f32.gmra.mrb[0].mxu0 %v1316
    %v1541 = vpop.f32.mrb[0].mxu0
    %v1542 = vadd.f32 %v1304, %v1541
    %v1543 = vpop.f32.mrb[0].mxu0
    %v1544 = vadd.f32 %v1308, %v1543
    %1545 = vmatprep.mubr.f32.mxu0 0.0
    %1546 = vmatmul.mubr.f32.gmra.mrb[0].mxu0 %v1319
    %v1547 = vpop.f32.mrb[0].mxu0
    %v1548 = vadd.f32 %v1304, %v1547
    %v1549 = vpop.f32.mrb[0].mxu0
    %v1550 = vadd.f32 %v1308, %v1549
    %1551 = vdwg.mxu0
    %1552 = vmatprep.subr.mxu0 0.0
    %1553 = vmatpush1.xpose.msra.mxu0 %v1390
    %1554 = vmatprep.subr.mxu0 0.0
    %1555 = vmatpush1.xpose.msra.mxu0 %v1396
    %1556 = vmatprep.subr.mxu0 0.0
    %1557 = vmatpush1.xpose.msra.mxu0 0.0
    %1558 = vmatprep.subr.mxu0 0.0
    %1559 = vmatpush1.xpose.msra.mxu0 0.0
    %1560 = vmatprep.subr.mxu0 0.0
    %1561 = vmatpush1.xpose.msra.mxu0 0.0
    %1562 = vmatprep.subr.mxu0 0.0
    %1563 = vmatpush1.xpose.msra.mxu0 0.0
    %1564 = vmatprep.subr.mxu0 0.0
    %1565 = vmatpush1.xpose.msra.mxu0 0.0
    %1566 = vmatprep.subr.mxu0 0.0
    %1567 = vmatpush1.xpose.msra.mxu0 0.0
    %1568 = vmatprep.subr.mxu0 0.0
    %1569 = vmatpush1.xpose.msra.mxu0 0.0
    %1570 = vmatprep.subr.mxu0 0.0
    %1571 = vmatpush1.xpose.msra.mxu0 0.0
    %1572 = vmatprep.subr.mxu0 0.0
    %1573 = vmatpush1.xpose.msra.mxu0 0.0
    %1574 = vmatprep.subr.mxu0 0.0
    %1575 = vmatpush1.xpose.msra.mxu0 0.0
    %1576 = vmatprep.subr.mxu0 0.0
    %1577 = vmatpush1.xpose.msra.mxu0 0.0
    %1578 = vmatprep.subr.mxu0 0.0
    %1579 = vmatpush1.xpose.msra.mxu0 0.0
    %1580 = vmatprep.subr.mxu0 0.0
    %1581 = vmatpush1.xpose.msra.mxu0 0.0
    %1582 = vmatprep.subr.mxu0 0.0
    %1583 = vmatpush1.xpose.msra.mxu0 0.0
    %1584 = vmatprep.subr.mxu0 0.0
    %1585 = vmatpush1.xpose.msra.mxu0 0.0
    %1586 = vmatprep.subr.mxu0 0.0
    %1587 = vmatpush1.xpose.msra.mxu0 0.0
    %1588 = vmatprep.subr.mxu0 0.0
    %1589 = vmatpush1.xpose.msra.mxu0 0.0
    %1590 = vmatprep.subr.mxu0 0.0
    %1591 = vmatpush1.xpose.msra.mxu0 0.0
    %1592 = vmatprep.subr.mxu0 0.0
    %1593 = vmatpush1.xpose.msra.mxu0 0.0
    %1594 = vmatprep.subr.mxu0 0.0
    %1595 = vmatpush1.xpose.msra.mxu0 0.0
    %1596 = vmatprep.subr.mxu0 0.0
    %1597 = vmatpush1.xpose.msra.mxu0 0.0
    %1598 = vmatprep.subr.mxu0 0.0
    %1599 = vmatpush1.xpose.msra.mxu0 0.0
    %1600 = vmatprep.subr.mxu0 0.0
    %1601 = vmatpush1.xpose.msra.mxu0 0.0
    %1602 = vmatprep.subr.mxu0 0.0
    %1603 = vmatpush1.xpose.msra.mxu0 0.0
    %1604 = vmatprep.subr.mxu0 0.0
    %1605 = vmatpush1.xpose.msra.mxu0 0.0
    %1606 = vmatprep.subr.mxu0 0.0
    %1607 = vmatpush1.xpose.msra.mxu0 0.0
    %1608 = vmatprep.subr.mxu0 0.0
    %1609 = vmatpush1.xpose.msra.mxu0 0.0
    %1610 = vmatprep.subr.mxu0 0.0
    %1611 = vmatpush1.xpose.msra.mxu0 0.0
    %1612 = vmatprep.subr.mxu0 0.0
    %1613 = vmatpush1.xpose.msra.mxu0 0.0
    %1614 = vmatprep.subr.mxu0 0.0
    %1615 = vmatpush1.xpose.msra.mxu0 0.0
    %1616 = vmatprep.mubr.f32.mxu0 0.0
    %1617 = vmatmul.mubr.f32.gmra.mrb[0].mxu0 %v1388
    %v1618 = vpop.f32.mrb[0].mxu0
    %v1619 = vadd.f32 %v114, %v1618
    %v1620 = vpop.f32.mrb[0].mxu0
    %1621 = vmatprep.mubr.f32.mxu0 0.0
    %1622 = vmatmul.mubr.f32.gmra.mrb[0].mxu0 %v1394
    %v1623 = vpop.f32.mrb[0].mxu0
    %v1624 = vadd.f32 %v115, %v1623
    %v1625 = vpop.f32.mrb[0].mxu0
    %1626 = vdwg.mxu0
    %v1627 = vsel %vm484, %v1619, -inf
    %1628 = vmax.xlane.f32.xlu0 %v1627
    %v1629 = vpop.xlane.xlu0 %1628
    %v1630 = vsel %vm484, %v1624, -inf
    %1631 = vmax.xlane.f32.xlu0 %v1630
    %v1632 = vpop.xlane.xlu0 %1631
    %v1633 = vsub.f32 %v1619, %v1629
    %v1634 = vsub.f32 %v1624, %v1632
    %v1635 = vmul.f32 %v1633, 1.442695
    %v1636 = vpow.pop %v1635
    %v1637 = vmul.f32 %v1634, 1.442695
    %v1638 = vpow.pop %v1637
    %v1639 = vsel %vm484, %v1636, 0.0
    %1640 = vadd.xlane.f32.xlu0 %v1639
    %v1641 = vpop.xlane.xlu0 %1640
    %v1642 = vsel %vm484, %v1638, 0.0
    %1643 = vadd.xlane.f32.xlu0 %v1642
    %v1644 = vpop.xlane.xlu0 %1643
    %v1645 = vrcp.pop %v1641
    %v1646 = vrcp.pop %v1644
    %v1647 = vmul.f32 %v1636, %v1645
    %v1648 = vmul.f32 %v1638, %v1646
    %v1650 = vsel %vm484, %v1647, 0
    %v1653 = vsel %vm484, %v1648, 0
    %1655 = vmatprep.subr.mxu0 0.0
    %1656 = vmatpush1.msra.mxu0 %v1465
    %1657 = vmatprep.subr.mxu0 0.0
    %1658 = vmatpush1.msra.mxu0 %v1471
    %1659 = vmatprep.subr.mxu0 0.0
    %1660 = vmatpush1.msra.mxu0 0.0
    %1661 = vmatprep.subr.mxu0 0.0
    %1662 = vmatpush1.msra.mxu0 0.0
    %1663 = vmatprep.subr.mxu0 0.0
    %1664 = vmatpush1.msra.mxu0 0.0
    %1665 = vmatprep.subr.mxu0 0.0
    %1666 = vmatpush1.msra.mxu0 0.0
    %1667 = vmatprep.subr.mxu0 0.0
    %1668 = vmatpush1.msra.mxu0 0.0
    %1669 = vmatprep.subr.mxu0 0.0
    %1670 = vmatpush1.msra.mxu0 0.0
    %1671 = vmatprep.subr.mxu0 0.0
    %1672 = vmatpush1.msra.mxu0 0.0
    %1673 = vmatprep.subr.mxu0 0.0
    %1674 = vmatpush1.msra.mxu0 0.0
    %1675 = vmatprep.subr.mxu0 0.0
    %1676 = vmatpush1.msra.mxu0 0.0
    %1677 = vmatprep.subr.mxu0 0.0
    %1678 = vmatpush1.msra.mxu0 0.0
    %1679 = vmatprep.subr.mxu0 0.0
    %1680 = vmatpush1.msra.mxu0 0.0
    %1681 = vmatprep.subr.mxu0 0.0
    %1682 = vmatpush1.msra.mxu0 0.0
    %1683 = vmatprep.subr.mxu0 0.0
    %1684 = vmatpush1.msra.mxu0 0.0
    %1685 = vmatprep.subr.mxu0 0.0
    %1686 = vmatpush1.msra.mxu0 0.0
    %1687 = vmatprep.subr.mxu0 0.0
    %1688 = vmatpush1.msra.mxu0 0.0
    %1689 = vmatprep.subr.mxu0 0.0
    %1690 = vmatpush1.msra.mxu0 0.0
    %1691 = vmatprep.subr.mxu0 0.0
    %1692 = vmatpush1.msra.mxu0 0.0
    %1693 = vmatprep.subr.mxu0 0.0
    %1694 = vmatpush1.msra.mxu0 0.0
    %1695 = vmatprep.subr.mxu0 0.0
    %1696 = vmatpush1.msra.mxu0 0.0
    %1697 = vmatprep.subr.mxu0 0.0
    %1698 = vmatpush1.msra.mxu0 0.0
    %1699 = vmatprep.subr.mxu0 0.0
    %1700 = vmatpush1.msra.mxu0 0.0
    %1701 = vmatprep.subr.mxu0 0.0
    %1702 = vmatpush1.msra.mxu0 0.0
    %1703 = vmatprep.subr.mxu0 0.0
    %1704 = vmatpush1.msra.mxu0 0.0
    %1705 = vmatprep.subr.mxu0 0.0
    %1706 = vmatpush1.msra.mxu0 0.0
    %1707 = vmatprep.subr.mxu0 0.0
    %1708 = vmatpush1.msra.mxu0 0.0
    %1709 = vmatprep.subr.mxu0 0.0
    %1710 = vmatpush1.msra.mxu0 0.0
    %1711 = vmatprep.subr.mxu0 0.0
    %1712 = vmatpush1.msra.mxu0 0.0
    %1713 = vmatprep.subr.mxu0 0.0
    %1714 = vmatpush1.msra.mxu0 0.0
    %1715 = vmatprep.subr.mxu0 0.0
    %1716 = vmatpush1.msra.mxu0 0.0
    %1717 = vmatprep.subr.mxu0 0.0
    %1718 = vmatpush1.msra.mxu0 0.0
    %1719 = vmatprep.mubr.f32.mxu0 0.0
    %1720 = vmatmul.mubr.f32.gmra.mrb[0].mxu0 %v1650
    %v1721 = vpop.f32.mrb[0].mxu0
    %v1722 = vadd.f32 0.0, %v1721
    %v1723 = vpop.f32.mrb[0].mxu0
    %1724 = vmatprep.mubr.f32.mxu0 0.0
    %1725 = vmatmul.mubr.f32.gmra.mrb[0].mxu0 %v1653
    %v1726 = vpop.f32.mrb[0].mxu0
    %v1727 = vadd.f32 0.0, %v1726
    %v1728 = vpop.f32.mrb[0].mxu0
    %1729 = vdwg.mxu0
    %s1730 = scalar_lea.vmem %s6, 256
    %v1731 = vld [vmem:[%s1730] sm:$0xff]
    %v1732 = vld [vmem:[%s1730 + $0x8] sm:$0xff]
    %v1733 = vld [vmem:[%s1730 + $0x10] sm:$0xff]
    %v1734 = vld [vmem:[%s1730 + $0x18] sm:$0xff]
    %v1735 = vld [vmem:[%s1730 + $0x20] sm:$0xff]
    %v1736 = vld [vmem:[%s1730 + $0x28] sm:$0xff]
    %v1737 = vld [vmem:[%s1730 + $0x30] sm:$0xff]
    %v1738 = vld [vmem:[%s1730 + $0x38] sm:$0xff]
    %v1739 = vld [vmem:[%s1730 + $0x40] sm:$0xff]
    %v1740 = vld [vmem:[%s1730 + $0x48] sm:$0xff]
    %v1741 = vld [vmem:[%s1730 + $0x50] sm:$0xff]
    %v1742 = vld [vmem:[%s1730 + $0x58] sm:$0xff]
    %v1743 = vld [vmem:[%s1730 + $0x60] sm:$0xff]
    %v1744 = vld [vmem:[%s1730 + $0x68] sm:$0xff]
    %v1745 = vld [vmem:[%s1730 + $0x70] sm:$0xff]
    %v1746 = vld [vmem:[%s1730 + $0x78] sm:$0xff]
    %1747 = vmatprep.subr.mxu0 0.0
    %1748 = vmatpush1.xpose.msra.mxu0 %v1542
    %1749 = vmatprep.subr.mxu0 0.0
    %1750 = vmatpush1.xpose.msra.mxu0 %v1548
    %1751 = vmatprep.subr.mxu0 0.0
    %1752 = vmatpush1.xpose.msra.mxu0 0.0
    %1753 = vmatprep.subr.mxu0 0.0
    %1754 = vmatpush1.xpose.msra.mxu0 0.0
    %1755 = vmatprep.subr.mxu0 0.0
    %1756 = vmatpush1.xpose.msra.mxu0 0.0
    %1757 = vmatprep.subr.mxu0 0.0
    %1758 = vmatpush1.xpose.msra.mxu0 0.0
    %1759 = vmatprep.subr.mxu0 0.0
    %1760 = vmatpush1.xpose.msra.mxu0 0.0
    %1761 = vmatprep.subr.mxu0 0.0
    %1762 = vmatpush1.xpose.msra.mxu0 0.0
    %1763 = vmatprep.subr.mxu0 0.0
    %1764 = vmatpush1.xpose.msra.mxu0 0.0
    %1765 = vmatprep.subr.mxu0 0.0
    %1766 = vmatpush1.xpose.msra.mxu0 0.0
    %1767 = vmatprep.subr.mxu0 0.0
    %1768 = vmatpush1.xpose.msra.mxu0 0.0
    %1769 = vmatprep.subr.mxu0 0.0
    %1770 = vmatpush1.xpose.msra.mxu0 0.0
    %1771 = vmatprep.subr.mxu0 0.0
    %1772 = vmatpush1.xpose.msra.mxu0 0.0
    %1773 = vmatprep.subr.mxu0 0.0
    %1774 = vmatpush1.xpose.msra.mxu0 0.0
    %1775 = vmatprep.subr.mxu0 0.0
    %1776 = vmatpush1.xpose.msra.mxu0 0.0
    %1777 = vmatprep.subr.mxu0 0.0
    %1778 = vmatpush1.xpose.msra.mxu0 0.0
    %1779 = vmatprep.subr.mxu0 0.0
    %1780 = vmatpush1.xpose.msra.mxu0 0.0
    %1781 = vmatprep.subr.mxu0 0.0
    %1782 = vmatpush1.xpose.msra.mxu0 0.0
    %1783 = vmatprep.subr.mxu0 0.0
    %1784 = vmatpush1.xpose.msra.mxu0 0.0
    %1785 = vmatprep.subr.mxu0 0.0
    %1786 = vmatpush1.xpose.msra.mxu0 0.0
    %1787 = vmatprep.subr.mxu0 0.0
    %1788 = vmatpush1.xpose.msra.mxu0 0.0
    %1789 = vmatprep.subr.mxu0 0.0
    %1790 = vmatpush1.xpose.msra.mxu0 0.0
    %1791 = vmatprep.subr.mxu0 0.0
    %1792 = vmatpush1.xpose.msra.mxu0 0.0
    %1793 = vmatprep.subr.mxu0 0.0
    %1794 = vmatpush1.xpose.msra.mxu0 0.0
    %1795 = vmatprep.subr.mxu0 0.0
    %1796 = vmatpush1.xpose.msra.mxu0 0.0
    %1797 = vmatprep.subr.mxu0 0.0
    %1798 = vmatpush1.xpose.msra.mxu0 0.0
    %1799 = vmatprep.subr.mxu0 0.0
    %1800 = vmatpush1.xpose.msra.mxu0 0.0
    %1801 = vmatprep.subr.mxu0 0.0
    %1802 = vmatpush1.xpose.msra.mxu0 0.0
    %1803 = vmatprep.subr.mxu0 0.0
    %1804 = vmatpush1.xpose.msra.mxu0 0.0
    %1805 = vmatprep.subr.mxu0 0.0
    %1806 = vmatpush1.xpose.msra.mxu0 0.0
    %1807 = vmatprep.subr.mxu0 0.0
    %1808 = vmatpush1.xpose.msra.mxu0 0.0
    %1809 = vmatprep.subr.mxu0 0.0
    %1810 = vmatpush1.xpose.msra.mxu0 0.0
    %1811 = vmatprep.mubr.f32.mxu0 0.0
    %1812 = vmatmul.mubr.f32.gmra.mrb[0].mxu0 %v1467
    %v1813 = vpop.f32.mrb[0].mxu0
    %v1814 = vadd.f32 %v114, %v1813
    %v1815 = vpop.f32.mrb[0].mxu0
    %1816 = vmatprep.mubr.f32.mxu0 0.0
    %1817 = vmatmul.mubr.f32.gmra.mrb[0].mxu0 %v1473
    %v1818 = vpop.f32.mrb[0].mxu0
    %v1819 = vadd.f32 %v115, %v1818
    %v1820 = vpop.f32.mrb[0].mxu0
    %1821 = vdwg.mxu0
    %v1822 = vsel %vm484, %v1814, -inf
    %1823 = vmax.xlane.f32.xlu0 %v1822
    %v1824 = vpop.xlane.xlu0 %1823
    %v1825 = vsel %vm484, %v1819, -inf
    %1826 = vmax.xlane.f32.xlu0 %v1825
    %v1827 = vpop.xlane.xlu0 %1826
    %v1828 = vsub.f32 %v1814, %v1824
    %v1829 = vsub.f32 %v1819, %v1827
    %v1830 = vmul.f32 %v1828, 1.442695
    %v1831 = vpow.pop %v1830
    %v1832 = vmul.f32 %v1829, 1.442695
    %v1833 = vpow.pop %v1832
    %v1834 = vsel %vm484, %v1831, 0.0
    %1835 = vadd.xlane.f32.xlu0 %v1834
    %v1836 = vpop.xlane.xlu0 %1835
    %v1837 = vsel %vm484, %v1833, 0.0
    %1838 = vadd.xlane.f32.xlu0 %v1837
    %v1839 = vpop.xlane.xlu0 %1838
    %v1840 = vrcp.pop %v1836
    %v1841 = vrcp.pop %v1839
    %v1842 = vmul.f32 %v1831, %v1840
    %v1843 = vmul.f32 %v1833, %v1841
    %v1845 = vsel %vm484, %v1842, 0
    %v1848 = vsel %vm484, %v1843, 0
    %1850 = vmatprep.subr.mxu0 0.0
    %1851 = vmatpush1.msra.mxu0 %v1544
    %1852 = vmatprep.subr.mxu0 0.0
    %1853 = vmatpush1.msra.mxu0 %v1550
    %1854 = vmatprep.subr.mxu0 0.0
    %1855 = vmatpush1.msra.mxu0 0.0
    %1856 = vmatprep.subr.mxu0 0.0
    %1857 = vmatpush1.msra.mxu0 0.0
    %1858 = vmatprep.subr.mxu0 0.0
    %1859 = vmatpush1.msra.mxu0 0.0
    %1860 = vmatprep.subr.mxu0 0.0
    %1861 = vmatpush1.msra.mxu0 0.0
    %1862 = vmatprep.subr.mxu0 0.0
    %1863 = vmatpush1.msra.mxu0 0.0
    %1864 = vmatprep.subr.mxu0 0.0
    %1865 = vmatpush1.msra.mxu0 0.0
    %1866 = vmatprep.subr.mxu0 0.0
    %1867 = vmatpush1.msra.mxu0 0.0
    %1868 = vmatprep.subr.mxu0 0.0
    %1869 = vmatpush1.msra.mxu0 0.0
    %1870 = vmatprep.subr.mxu0 0.0
    %1871 = vmatpush1.msra.mxu0 0.0
    %1872 = vmatprep.subr.mxu0 0.0
    %1873 = vmatpush1.msra.mxu0 0.0
    %1874 = vmatprep.subr.mxu0 0.0
    %1875 = vmatpush1.msra.mxu0 0.0
    %1876 = vmatprep.subr.mxu0 0.0
    %1877 = vmatpush1.msra.mxu0 0.0
    %1878 = vmatprep.subr.mxu0 0.0
    %1879 = vmatpush1.msra.mxu0 0.0
    %1880 = vmatprep.subr.mxu0 0.0
    %1881 = vmatpush1.msra.mxu0 0.0
    %1882 = vmatprep.subr.mxu0 0.0
    %1883 = vmatpush1.msra.mxu0 0.0
    %1884 = vmatprep.subr.mxu0 0.0
    %1885 = vmatpush1.msra.mxu0 0.0
    %1886 = vmatprep.subr.mxu0 0.0
    %1887 = vmatpush1.msra.mxu0 0.0
    %1888 = vmatprep.subr.mxu0 0.0
    %1889 = vmatpush1.msra.mxu0 0.0
    %1890 = vmatprep.subr.mxu0 0.0
    %1891 = vmatpush1.msra.mxu0 0.0
    %1892 = vmatprep.subr.mxu0 0.0
    %1893 = vmatpush1.msra.mxu0 0.0
    %1894 = vmatprep.subr.mxu0 0.0
    %1895 = vmatpush1.msra.mxu0 0.0
    %1896 = vmatprep.subr.mxu0 0.0
    %1897 = vmatpush1.msra.mxu0 0.0
    %1898 = vmatprep.subr.mxu0 0.0
    %1899 = vmatpush1.msra.mxu0 0.0
    %1900 = vmatprep.subr.mxu0 0.0
    %1901 = vmatpush1.msra.mxu0 0.0
    %1902 = vmatprep.subr.mxu0 0.0
    %1903 = vmatpush1.msra.mxu0 0.0
    %1904 = vmatprep.subr.mxu0 0.0
    %1905 = vmatpush1.msra.mxu0 0.0
    %1906 = vmatprep.subr.mxu0 0.0
    %1907 = vmatpush1.msra.mxu0 0.0
    %1908 = vmatprep.subr.mxu0 0.0
    %1909 = vmatpush1.msra.mxu0 0.0
    %1910 = vmatprep.subr.mxu0 0.0
    %1911 = vmatpush1.msra.mxu0 0.0
    %1912 = vmatprep.subr.mxu0 0.0
    %1913 = vmatpush1.msra.mxu0 0.0
    %1914 = vmatprep.mubr.f32.mxu0 0.0
    %1915 = vmatmul.mubr.f32.gmra.mrb[0].mxu0 %v1845
    %v1916 = vpop.f32.mrb[0].mxu0
    %v1917 = vadd.f32 0.0, %v1916
    %v1918 = vpop.f32.mrb[0].mxu0
    %1919 = vmatprep.mubr.f32.mxu0 0.0
    %1920 = vmatmul.mubr.f32.gmra.mrb[0].mxu0 %v1848
    %v1921 = vpop.f32.mrb[0].mxu0
    %v1922 = vadd.f32 0.0, %v1921
    %v1923 = vpop.f32.mrb[0].mxu0
    %1924 = vdwg.mxu0
    %s1925 = scalar_lea.vmem %s6, 384
    %v1926 = vld [vmem:[%s1925] sm:$0xff]
    %v1927 = vld [vmem:[%s1925 + $0x8] sm:$0xff]
    %v1928 = vld [vmem:[%s1925 + $0x10] sm:$0xff]
    %v1929 = vld [vmem:[%s1925 + $0x18] sm:$0xff]
    %v1930 = vld [vmem:[%s1925 + $0x20] sm:$0xff]
    %v1931 = vld [vmem:[%s1925 + $0x28] sm:$0xff]
    %v1932 = vld [vmem:[%s1925 + $0x30] sm:$0xff]
    %v1933 = vld [vmem:[%s1925 + $0x38] sm:$0xff]
    %v1934 = vld [vmem:[%s1925 + $0x40] sm:$0xff]
    %v1935 = vld [vmem:[%s1925 + $0x48] sm:$0xff]
    %v1936 = vld [vmem:[%s1925 + $0x50] sm:$0xff]
    %v1937 = vld [vmem:[%s1925 + $0x58] sm:$0xff]
    %v1938 = vld [vmem:[%s1925 + $0x60] sm:$0xff]
    %v1939 = vld [vmem:[%s1925 + $0x68] sm:$0xff]
    %v1940 = vld [vmem:[%s1925 + $0x70] sm:$0xff]
    %v1941 = vld [vmem:[%s1925 + $0x78] sm:$0xff]
    %1942 = vmatprep.subr.mxu0 0.0
    %1943 = vmatpush1.msra.mxu0 %v1926
    %1944 = vmatprep.subr.mxu0 0.0
    %1945 = vmatpush1.msra.mxu0 %v1927
    %1946 = vmatprep.subr.mxu0 0.0
    %1947 = vmatpush1.msra.mxu0 %v1928
    %1948 = vmatprep.subr.mxu0 0.0
    %1949 = vmatpush1.msra.mxu0 %v1929
    %1950 = vmatprep.subr.mxu0 0.0
    %1951 = vmatpush1.msra.mxu0 %v1930
    %1952 = vmatprep.subr.mxu0 0.0
    %1953 = vmatpush1.msra.mxu0 %v1931
    %1954 = vmatprep.subr.mxu0 0.0
    %1955 = vmatpush1.msra.mxu0 %v1932
    %1956 = vmatprep.subr.mxu0 0.0
    %1957 = vmatpush1.msra.mxu0 %v1933
    %1958 = vmatprep.subr.mxu0 0.0
    %1959 = vmatpush1.msra.mxu0 %v1934
    %1960 = vmatprep.subr.mxu0 0.0
    %1961 = vmatpush1.msra.mxu0 %v1935
    %1962 = vmatprep.subr.mxu0 0.0
    %1963 = vmatpush1.msra.mxu0 %v1936
    %1964 = vmatprep.subr.mxu0 0.0
    %1965 = vmatpush1.msra.mxu0 %v1937
    %1966 = vmatprep.subr.mxu0 0.0
    %1967 = vmatpush1.msra.mxu0 %v1938
    %1968 = vmatprep.subr.mxu0 0.0
    %1969 = vmatpush1.msra.mxu0 %v1939
    %1970 = vmatprep.subr.mxu0 0.0
    %1971 = vmatpush1.msra.mxu0 %v1940
    %1972 = vmatprep.subr.mxu0 0.0
    %1973 = vmatpush1.msra.mxu0 %v1941
    %1974 = vmatprep.subr.mxu0 0.0
    %1975 = vmatpush1.msra.mxu0 0.0
    %1976 = vmatprep.subr.mxu0 0.0
    %1977 = vmatpush1.msra.mxu0 0.0
    %1978 = vmatprep.subr.mxu0 0.0
    %1979 = vmatpush1.msra.mxu0 0.0
    %1980 = vmatprep.subr.mxu0 0.0
    %1981 = vmatpush1.msra.mxu0 0.0
    %1982 = vmatprep.subr.mxu0 0.0
    %1983 = vmatpush1.msra.mxu0 0.0
    %1984 = vmatprep.subr.mxu0 0.0
    %1985 = vmatpush1.msra.mxu0 0.0
    %1986 = vmatprep.subr.mxu0 0.0
    %1987 = vmatpush1.msra.mxu0 0.0
    %1988 = vmatprep.subr.mxu0 0.0
    %1989 = vmatpush1.msra.mxu0 0.0
    %1990 = vmatprep.subr.mxu0 0.0
    %1991 = vmatpush1.msra.mxu0 0.0
    %1992 = vmatprep.subr.mxu0 0.0
    %1993 = vmatpush1.msra.mxu0 0.0
    %1994 = vmatprep.subr.mxu0 0.0
    %1995 = vmatpush1.msra.mxu0 0.0
    %1996 = vmatprep.subr.mxu0 0.0
    %1997 = vmatpush1.msra.mxu0 0.0
    %1998 = vmatprep.subr.mxu0 0.0
    %1999 = vmatpush1.msra.mxu0 0.0
    %2000 = vmatprep.subr.mxu0 0.0
    %2001 = vmatpush1.msra.mxu0 0.0
    %2002 = vmatprep.subr.mxu0 0.0
    %2003 = vmatpush1.msra.mxu0 0.0
    %2004 = vmatprep.subr.mxu0 0.0
    %2005 = vmatpush1.msra.mxu0 0.0
    %2006 = vmatprep.mubr.f32.mxu0 0.0
    %2007 = vmatmul.mubr.f32.gmra.mrb[0].mxu0 %v1917
    %v2008 = vpop.f32.mrb[0].mxu0
    %v2009 = vadd.f32 0.0, %v2008
    %v2010 = vpop.f32.mrb[0].mxu0
    %2011 = vmatprep.mubr.f32.mxu0 0.0
    %2012 = vmatmul.mubr.f32.gmra.mrb[0].mxu0 %v1922
    %v2013 = vpop.f32.mrb[0].mxu0
    %v2014 = vadd.f32 0.0, %v2013
    %v2015 = vpop.f32.mrb[0].mxu0
    %2016 = vdwg.mxu0
    %2017 = vmatprep.subr.mxu0 0.0
    %2018 = vmatpush1.msra.mxu0 %v1731
    %2019 = vmatprep.subr.mxu0 0.0
    %2020 = vmatpush1.msra.mxu0 %v1732
    %2021 = vmatprep.subr.mxu0 0.0
    %2022 = vmatpush1.msra.mxu0 %v1733
    %2023 = vmatprep.subr.mxu0 0.0
    %2024 = vmatpush1.msra.mxu0 %v1734
    %2025 = vmatprep.subr.mxu0 0.0
    %2026 = vmatpush1.msra.mxu0 %v1735
    %2027 = vmatprep.subr.mxu0 0.0
    %2028 = vmatpush1.msra.mxu0 %v1736
    %2029 = vmatprep.subr.mxu0 0.0
    %2030 = vmatpush1.msra.mxu0 %v1737
    %2031 = vmatprep.subr.mxu0 0.0
    %2032 = vmatpush1.msra.mxu0 %v1738
    %2033 = vmatprep.subr.mxu0 0.0
    %2034 = vmatpush1.msra.mxu0 %v1739
    %2035 = vmatprep.subr.mxu0 0.0
    %2036 = vmatpush1.msra.mxu0 %v1740
    %2037 = vmatprep.subr.mxu0 0.0
    %2038 = vmatpush1.msra.mxu0 %v1741
    %2039 = vmatprep.subr.mxu0 0.0
    %2040 = vmatpush1.msra.mxu0 %v1742
    %2041 = vmatprep.subr.mxu0 0.0
    %2042 = vmatpush1.msra.mxu0 %v1743
    %2043 = vmatprep.subr.mxu0 0.0
    %2044 = vmatpush1.msra.mxu0 %v1744
    %2045 = vmatprep.subr.mxu0 0.0
    %2046 = vmatpush1.msra.mxu0 %v1745
    %2047 = vmatprep.subr.mxu0 0.0
    %2048 = vmatpush1.msra.mxu0 %v1746
    %2049 = vmatprep.subr.mxu0 0.0
    %2050 = vmatpush1.msra.mxu0 0.0
    %2051 = vmatprep.subr.mxu0 0.0
    %2052 = vmatpush1.msra.mxu0 0.0
    %2053 = vmatprep.subr.mxu0 0.0
    %2054 = vmatpush1.msra.mxu0 0.0
    %2055 = vmatprep.subr.mxu0 0.0
    %2056 = vmatpush1.msra.mxu0 0.0
    %2057 = vmatprep.subr.mxu0 0.0
    %2058 = vmatpush1.msra.mxu0 0.0
    %2059 = vmatprep.subr.mxu0 0.0
    %2060 = vmatpush1.msra.mxu0 0.0
    %2061 = vmatprep.subr.mxu0 0.0
    %2062 = vmatpush1.msra.mxu0 0.0
    %2063 = vmatprep.subr.mxu0 0.0
    %2064 = vmatpush1.msra.mxu0 0.0
    %2065 = vmatprep.subr.mxu0 0.0
    %2066 = vmatpush1.msra.mxu0 0.0
    %2067 = vmatprep.subr.mxu0 0.0
    %2068 = vmatpush1.msra.mxu0 0.0
    %2069 = vmatprep.subr.mxu0 0.0
    %2070 = vmatpush1.msra.mxu0 0.0
    %2071 = vmatprep.subr.mxu0 0.0
    %2072 = vmatpush1.msra.mxu0 0.0
    %2073 = vmatprep.subr.mxu0 0.0
    %2074 = vmatpush1.msra.mxu0 0.0
    %2075 = vmatprep.subr.mxu0 0.0
    %2076 = vmatpush1.msra.mxu0 0.0
    %2077 = vmatprep.subr.mxu0 0.0
    %2078 = vmatpush1.msra.mxu0 0.0
    %2079 = vmatprep.subr.mxu0 0.0
    %2080 = vmatpush1.msra.mxu0 0.0
    %2081 = vmatprep.mubr.f32.mxu0 0.0
    %2082 = vmatmul.mubr.f32.gmra.mrb[0].mxu0 %v1722
    %v2083 = vpop.f32.mrb[0].mxu0
    %v2084 = vadd.f32 %v2009, %v2083
    %v2085 = vpop.f32.mrb[0].mxu0
    %2086 = vmatprep.mubr.f32.mxu0 0.0
    %2087 = vmatmul.mubr.f32.gmra.mrb[0].mxu0 %v1727
    %v2088 = vpop.f32.mrb[0].mxu0
    %v2089 = vadd.f32 %v2014, %v2088
    %v2090 = vpop.f32.mrb[0].mxu0
    %2091 = vdwg.mxu0
    %s2092 = scalar_lea.vmem %s7, 1
    %v2093 = vld [vmem:[%s2092] sm:$0x1]
    %v2095 = vlaneseq
    %v2096 = vshrl.u32 %v2095, 7
    %v2097 = vsub.s32 0, %v2096
    %v2098 = vrot.slane %v2093, %v2097
    %v2100 = vadd.f32 %v2084, %v2098
    %v2101 = vadd.f32 %v2089, %v2098
    %v2102 = vadd.f32 %v2100, %v1255
    %v2103 = vadd.f32 %v2101, %v1256
    %s2104 = scalar_lea.vmem %s8, 1
    %v2105 = vld [vmem:[%s2104] sm:$0x1]
    %s2106 = scalar_lea.vmem %s9, 1
    %v2107 = vld [vmem:[%s2106] sm:$0x1]
    %v2108 = vsel %vm70, %v2102, 0.0
    %2109 = vadd.xlane.f32.xlu0 %v2108
    %v2110 = vpop.xlane.xlu0 %2109
    %v2111 = vsel %vm70, %v2103, 0.0
    %2112 = vadd.xlane.f32.xlu0 %v2111
    %v2113 = vpop.xlane.xlu0 %2112
    %v2114 = vmul.f32 %v2110, %v77
    %v2115 = vmul.f32 %v2113, %v77
    %v2116 = vsub.f32 %v2102, %v2114
    %v2117 = vsub.f32 %v2103, %v2115
    %v2118 = vmul.f32 %v2116, %v2116
    %v2119 = vmul.f32 %v2117, %v2117
    %v2120 = vsel %vm70, %v2118, 0.0
    %2121 = vadd.xlane.f32.xlu0 %v2120
    %v2122 = vpop.xlane.xlu0 %2121
    %v2123 = vsel %vm70, %v2119, 0.0
    %2124 = vadd.xlane.f32.xlu0 %v2123
    %v2125 = vpop.xlane.xlu0 %2124
    %v2126 = vmul.f32 %v2122, %v77
    %v2127 = vmul.f32 %v2125, %v77
    %v2128 = vadd.f32 %v2126, 1e-12
    %v2129 = vadd.f32 %v2127, 1e-12
    %v2130 = vrsqrt.pop %v2128
    %v2131 = vrsqrt.pop %v2129
    %v2132 = vmul.f32 %v2116, %v2130
    %v2133 = vmul.f32 %v2117, %v2131
    %v2135 = vlaneseq
    %v2136 = vshrl.u32 %v2135, 7
    %v2137 = vsub.s32 0, %v2136
    %v2138 = vrot.slane %v2105, %v2137
    %v2140 = vmul.f32 %v2132, %v2138
    %v2141 = vmul.f32 %v2133, %v2138
    %v2143 = vlaneseq
    %v2144 = vshrl.u32 %v2143, 7
    %v2145 = vsub.s32 0, %v2144
    %v2146 = vrot.slane %v2107, %v2145
    %v2148 = vadd.f32 %v2140, %v2146
    %v2149 = vadd.f32 %v2141, %v2146
    %s2150 = scalar_lea.vmem %s10, 32
    %v2151 = vld [vmem:[%s2150] sm:$0xff]
    %v2152 = vld [vmem:[%s2150 + $0x8] sm:$0xff]
    %v2153 = vld [vmem:[%s2150 + $0x10] sm:$0xff]
    %v2154 = vld [vmem:[%s2150 + $0x18] sm:$0xff]
    %s2155 = scalar_lea.vmem %s11, 1
    %v2156 = vld [vmem:[%s2155] sm:$0x1]
    %v2158 = vlaneseq
    %v2159 = vshrl.u32 %v2158, 7
    %v2160 = vsub.s32 0, %v2159
    %v2161 = vrot.slane %v2156, %v2160
    %v2164 = vsel %vm70, %v2148, 0
    %v2167 = vsel %vm70, %v2149, 0
    %2169 = vmatprep.subr.mxu0 0.0
    %2170 = vmatpush1.msra.mxu0 %v2151
    %2171 = vmatprep.subr.mxu0 0.0
    %2172 = vmatpush1.msra.mxu0 %v2152
    %2173 = vmatprep.subr.mxu0 0.0
    %2174 = vmatpush1.msra.mxu0 %v2153
    %2175 = vmatprep.subr.mxu0 0.0
    %2176 = vmatpush1.msra.mxu0 %v2154
    %2177 = vmatprep.subr.mxu0 0.0
    %2178 = vmatpush1.msra.mxu0 0.0
    %2179 = vmatprep.subr.mxu0 0.0
    %2180 = vmatpush1.msra.mxu0 0.0
    %2181 = vmatprep.subr.mxu0 0.0
    %2182 = vmatpush1.msra.mxu0 0.0
    %2183 = vmatprep.subr.mxu0 0.0
    %2184 = vmatpush1.msra.mxu0 0.0
    %2185 = vmatprep.subr.mxu0 0.0
    %2186 = vmatpush1.msra.mxu0 0.0
    %2187 = vmatprep.subr.mxu0 0.0
    %2188 = vmatpush1.msra.mxu0 0.0
    %2189 = vmatprep.subr.mxu0 0.0
    %2190 = vmatpush1.msra.mxu0 0.0
    %2191 = vmatprep.subr.mxu0 0.0
    %2192 = vmatpush1.msra.mxu0 0.0
    %2193 = vmatprep.subr.mxu0 0.0
    %2194 = vmatpush1.msra.mxu0 0.0
    %2195 = vmatprep.subr.mxu0 0.0
    %2196 = vmatpush1.msra.mxu0 0.0
    %2197 = vmatprep.subr.mxu0 0.0
    %2198 = vmatpush1.msra.mxu0 0.0
    %2199 = vmatprep.subr.mxu0 0.0
    %2200 = vmatpush1.msra.mxu0 0.0
    %2201 = vmatprep.subr.mxu0 0.0
    %2202 = vmatpush1.msra.mxu0 0.0
    %2203 = vmatprep.subr.mxu0 0.0
    %2204 = vmatpush1.msra.mxu0 0.0
    %2205 = vmatprep.subr.mxu0 0.0
    %2206 = vmatpush1.msra.mxu0 0.0
    %2207 = vmatprep.subr.mxu0 0.0
    %2208 = vmatpush1.msra.mxu0 0.0
    %2209 = vmatprep.subr.mxu0 0.0
    %2210 = vmatpush1.msra.mxu0 0.0
    %2211 = vmatprep.subr.mxu0 0.0
    %2212 = vmatpush1.msra.mxu0 0.0
    %2213 = vmatprep.subr.mxu0 0.0
    %2214 = vmatpush1.msra.mxu0 0.0
    %2215 = vmatprep.subr.mxu0 0.0
    %2216 = vmatpush1.msra.mxu0 0.0
    %2217 = vmatprep.subr.mxu0 0.0
    %2218 = vmatpush1.msra.mxu0 0.0
    %2219 = vmatprep.subr.mxu0 0.0
    %2220 = vmatpush1.msra.mxu0 0.0
    %2221 = vmatprep.subr.mxu0 0.0
    %2222 = vmatpush1.msra.mxu0 0.0
    %2223 = vmatprep.subr.mxu0 0.0
    %2224 = vmatpush1.msra.mxu0 0.0
    %2225 = vmatprep.subr.mxu0 0.0
    %2226 = vmatpush1.msra.mxu0 0.0
    %2227 = vmatprep.subr.mxu0 0.0
    %2228 = vmatpush1.msra.mxu0 0.0
    %2229 = vmatprep.subr.mxu0 0.0
    %2230 = vmatpush1.msra.mxu0 0.0
    %2231 = vmatprep.subr.mxu0 0.0
    %2232 = vmatpush1.msra.mxu0 0.0
    %2233 = vmatprep.mubr.f32.mxu0 0.0
    %2234 = vmatmul.mubr.f32.gmra.mrb[0].mxu0 %v2164
    %v2235 = vpop.f32.mrb[0].mxu0
    %v2236 = vadd.f32 %v2161, %v2235
    %v2237 = vpop.f32.mrb[0].mxu0
    %2238 = vmatprep.mubr.f32.mxu0 0.0
    %2239 = vmatmul.mubr.f32.gmra.mrb[0].mxu0 %v2167
    %v2240 = vpop.f32.mrb[0].mxu0
    %v2241 = vadd.f32 %v2161, %v2240
    %v2242 = vpop.f32.mrb[0].mxu0
    %2243 = vdwg.mxu0
    %v2244 = vmul.f32 %v2236, 0.5
    %v2245 = vmul.f32 %v2241, 0.5
    %v2246 = vmul.f32 %v2236, 0.044715
    %v2247 = vmul.f32 %v2241, 0.044715
    %v2248 = vmul.f32 %v2246, %v2236
    %v2249 = vmul.f32 %v2247, %v2241
    %v2250 = vmul.f32 %v2248, %v2236
    %v2251 = vmul.f32 %v2249, %v2241
    %v2252 = vadd.f32 %v2236, %v2250
    %v2253 = vadd.f32 %v2241, %v2251
    %v2254 = vmul.f32 %v2252, 0.7978846
    %v2255 = vmul.f32 %v2253, 0.7978846
    %v2256 = vtanh.pop %v2254
    %v2257 = vtanh.pop %v2255
    %v2258 = vadd.f32 %v2256, 1.0
    %v2259 = vadd.f32 %v2257, 1.0
    %v2260 = vmul.f32 %v2244, %v2258
    %v2261 = vmul.f32 %v2245, %v2259
    %s2262 = scalar_lea.vmem %s12, 64
    %v2263 = vld [vmem:[%s2262] sm:$0xff]
    %v2264 = vld [vmem:[%s2262 + $0x8] sm:$0xff]
    %v2265 = vld [vmem:[%s2262 + $0x10] sm:$0xff]
    %v2266 = vld [vmem:[%s2262 + $0x18] sm:$0xff]
    %v2267 = vld [vmem:[%s2262 + $0x20] sm:$0xff]
    %v2268 = vld [vmem:[%s2262 + $0x28] sm:$0xff]
    %v2269 = vld [vmem:[%s2262 + $0x30] sm:$0xff]
    %v2270 = vld [vmem:[%s2262 + $0x38] sm:$0xff]
    %s2271 = scalar_lea.vmem %s13, 1
    %v2272 = vld [vmem:[%s2271] sm:$0x1]
    %v2274 = vlaneseq
    %v2275 = vshrl.u32 %v2274, 7
    %v2276 = vsub.s32 0, %v2275
    %v2277 = vrot.slane %v2272, %v2276
    %v2280 = vsel %vm1129, %v2260, 0
    %v2283 = vsel %vm1129, %v2261, 0
    %2285 = vmatprep.subr.mxu0 0.0
    %2286 = vmatpush1.msra.mxu0 %v2263
    %2287 = vmatprep.subr.mxu0 0.0
    %2288 = vmatpush1.msra.mxu0 %v2264
    %2289 = vmatprep.subr.mxu0 0.0
    %2290 = vmatpush1.msra.mxu0 %v2265
    %2291 = vmatprep.subr.mxu0 0.0
    %2292 = vmatpush1.msra.mxu0 %v2266
    %2293 = vmatprep.subr.mxu0 0.0
    %2294 = vmatpush1.msra.mxu0 %v2267
    %2295 = vmatprep.subr.mxu0 0.0
    %2296 = vmatpush1.msra.mxu0 %v2268
    %2297 = vmatprep.subr.mxu0 0.0
    %2298 = vmatpush1.msra.mxu0 %v2269
    %2299 = vmatprep.subr.mxu0 0.0
    %2300 = vmatpush1.msra.mxu0 %v2270
    %2301 = vmatprep.subr.mxu0 0.0
    %2302 = vmatpush1.msra.mxu0 0.0
    %2303 = vmatprep.subr.mxu0 0.0
    %2304 = vmatpush1.msra.mxu0 0.0
    %2305 = vmatprep.subr.mxu0 0.0
    %2306 = vmatpush1.msra.mxu0 0.0
    %2307 = vmatprep.subr.mxu0 0.0
    %2308 = vmatpush1.msra.mxu0 0.0
    %2309 = vmatprep.subr.mxu0 0.0
    %2310 = vmatpush1.msra.mxu0 0.0
    %2311 = vmatprep.subr.mxu0 0.0
    %2312 = vmatpush1.msra.mxu0 0.0
    %2313 = vmatprep.subr.mxu0 0.0
    %2314 = vmatpush1.msra.mxu0 0.0
    %2315 = vmatprep.subr.mxu0 0.0
    %2316 = vmatpush1.msra.mxu0 0.0
    %2317 = vmatprep.subr.mxu0 0.0
    %2318 = vmatpush1.msra.mxu0 0.0
    %2319 = vmatprep.subr.mxu0 0.0
    %2320 = vmatpush1.msra.mxu0 0.0
    %2321 = vmatprep.subr.mxu0 0.0
    %2322 = vmatpush1.msra.mxu0 0.0
    %2323 = vmatprep.subr.mxu0 0.0
    %2324 = vmatpush1.msra.mxu0 0.0
    %2325 = vmatprep.subr.mxu0 0.0
    %2326 = vmatpush1.msra.mxu0 0.0
    %2327 = vmatprep.subr.mxu0 0.0
    %2328 = vmatpush1.msra.mxu0 0.0
    %2329 = vmatprep.subr.mxu0 0.0
    %2330 = vmatpush1.msra.mxu0 0.0
    %2331 = vmatprep.subr.mxu0 0.0
    %2332 = vmatpush1.msra.mxu0 0.0
    %2333 = vmatprep.subr.mxu0 0.0
    %2334 = vmatpush1.msra.mxu0 0.0
    %2335 = vmatprep.subr.mxu0 0.0
    %2336 = vmatpush1.msra.mxu0 0.0
    %2337 = vmatprep.subr.mxu0 0.0
    %2338 = vmatpush1.msra.mxu0 0.0
    %2339 = vmatprep.subr.mxu0 0.0
    %2340 = vmatpush1.msra.mxu0 0.0
    %2341 = vmatprep.subr.mxu0 0.0
    %2342 = vmatpush1.msra.mxu0 0.0
    %2343 = vmatprep.subr.mxu0 0.0
    %2344 = vmatpush1.msra.mxu0 0.0
    %2345 = vmatprep.subr.mxu0 0.0
    %2346 = vmatpush1.msra.mxu0 0.0
    %2347 = vmatprep.subr.mxu0 0.0
    %2348 = vmatpush1.msra.mxu0 0.0
    %2349 = vmatprep.mubr.f32.mxu0 0.0
    %2350 = vmatmul.mubr.f32.gmra.mrb[0].mxu0 %v2280
    %v2351 = vpop.f32.mrb[0].mxu0
    %v2352 = vadd.f32 %v2277, %v2351
    %v2353 = vpop.f32.mrb[0].mxu0
    %2354 = vmatprep.mubr.f32.mxu0 0.0
    %2355 = vmatmul.mubr.f32.gmra.mrb[0].mxu0 %v2283
    %v2356 = vpop.f32.mrb[0].mxu0
    %v2357 = vadd.f32 %v2277, %v2356
    %v2358 = vpop.f32.mrb[0].mxu0
    %2359 = vdwg.mxu0
    %v2360 = vadd.f32 %v2352, %v2148
    %v2361 = vadd.f32 %v2357, %v2149
    %s2362 = scalar_lea.vmem %s14, 1
    %v2363 = vld [vmem:[%s2362] sm:$0x1]
    %s2364 = scalar_lea.vmem %s15, 1
    %v2365 = vld [vmem:[%s2364] sm:$0x1]
    %v2366 = vsel %vm70, %v2360, 0.0
    %2367 = vadd.xlane.f32.xlu0 %v2366
    %v2368 = vpop.xlane.xlu0 %2367
    %v2369 = vsel %vm70, %v2361, 0.0
    %2370 = vadd.xlane.f32.xlu0 %v2369
    %v2371 = vpop.xlane.xlu0 %2370
    %v2372 = vmul.f32 %v2368, %v77
    %v2373 = vmul.f32 %v2371, %v77
    %v2374 = vsub.f32 %v2360, %v2372
    %v2375 = vsub.f32 %v2361, %v2373
    %v2376 = vmul.f32 %v2374, %v2374
    %v2377 = vmul.f32 %v2375, %v2375
    %v2378 = vsel %vm70, %v2376, 0.0
    %2379 = vadd.xlane.f32.xlu0 %v2378
    %v2380 = vpop.xlane.xlu0 %2379
    %v2381 = vsel %vm70, %v2377, 0.0
    %2382 = vadd.xlane.f32.xlu0 %v2381
    %v2383 = vpop.xlane.xlu0 %2382
    %v2384 = vmul.f32 %v2380, %v77
    %v2385 = vmul.f32 %v2383, %v77
    %v2386 = vadd.f32 %v2384, 1e-12
    %v2387 = vadd.f32 %v2385, 1e-12
    %v2388 = vrsqrt.pop %v2386
    %v2389 = vrsqrt.pop %v2387
    %v2390 = vmul.f32 %v2374, %v2388
    %v2391 = vmul.f32 %v2375, %v2389
    %v2393 = vlaneseq
    %v2394 = vshrl.u32 %v2393, 7
    %v2395 = vsub.s32 0, %v2394
    %v2396 = vrot.slane %v2363, %v2395
    %v2398 = vmul.f32 %v2390, %v2396
    %v2399 = vmul.f32 %v2391, %v2396
    %v2401 = vlaneseq
    %v2402 = vshrl.u32 %v2401, 7
    %v2403 = vsub.s32 0, %v2402
    %v2404 = vrot.slane %v2365, %v2403
    %v2406 = vadd.f32 %v2398, %v2404
    %v2407 = vadd.f32 %v2399, %v2404
    %v2408 = vld [vmem:[%s16] sm:$0xff]
    %v2409 = vld [vmem:[%s16 + $0x8] sm:$0xff]
    %v2410 = vld [vmem:[%s16 + $0x10] sm:$0xff]
    %v2411 = vld [vmem:[%s16 + $0x18] sm:$0xff]
    %v2412 = vld [vmem:[%s17] sm:$0x1]
    %v2414 = vlaneseq
    %v2415 = vshrl.u32 %v2414, 7
    %v2416 = vsub.s32 0, %v2415
    %v2417 = vrot.slane %v2412, %v2416
    %v2420 = vsel %vm70, %v2406, 0
    %v2423 = vsel %vm70, %v2407, 0
    %2425 = vmatprep.subr.mxu0 0.0
    %2426 = vmatpush1.msra.mxu0 %v2408
    %2427 = vmatprep.subr.mxu0 0.0
    %2428 = vmatpush1.msra.mxu0 %v2409
    %2429 = vmatprep.subr.mxu0 0.0
    %2430 = vmatpush1.msra.mxu0 %v2410
    %2431 = vmatprep.subr.mxu0 0.0
    %2432 = vmatpush1.msra.mxu0 %v2411
    %2433 = vmatprep.subr.mxu0 0.0
    %2434 = vmatpush1.msra.mxu0 0.0
    %2435 = vmatprep.subr.mxu0 0.0
    %2436 = vmatpush1.msra.mxu0 0.0
    %2437 = vmatprep.subr.mxu0 0.0
    %2438 = vmatpush1.msra.mxu0 0.0
    %2439 = vmatprep.subr.mxu0 0.0
    %2440 = vmatpush1.msra.mxu0 0.0
    %2441 = vmatprep.subr.mxu0 0.0
    %2442 = vmatpush1.msra.mxu0 0.0
    %2443 = vmatprep.subr.mxu0 0.0
    %2444 = vmatpush1.msra.mxu0 0.0
    %2445 = vmatprep.subr.mxu0 0.0
    %2446 = vmatpush1.msra.mxu0 0.0
    %2447 = vmatprep.subr.mxu0 0.0
    %2448 = vmatpush1.msra.mxu0 0.0
    %2449 = vmatprep.subr.mxu0 0.0
    %2450 = vmatpush1.msra.mxu0 0.0
    %2451 = vmatprep.subr.mxu0 0.0
    %2452 = vmatpush1.msra.mxu0 0.0
    %2453 = vmatprep.subr.mxu0 0.0
    %2454 = vmatpush1.msra.mxu0 0.0
    %2455 = vmatprep.subr.mxu0 0.0
    %2456 = vmatpush1.msra.mxu0 0.0
    %2457 = vmatprep.subr.mxu0 0.0
    %2458 = vmatpush1.msra.mxu0 0.0
    %2459 = vmatprep.subr.mxu0 0.0
    %2460 = vmatpush1.msra.mxu0 0.0
    %2461 = vmatprep.subr.mxu0 0.0
    %2462 = vmatpush1.msra.mxu0 0.0
    %2463 = vmatprep.subr.mxu0 0.0
    %2464 = vmatpush1.msra.mxu0 0.0
    %2465 = vmatprep.subr.mxu0 0.0
    %2466 = vmatpush1.msra.mxu0 0.0
    %2467 = vmatprep.subr.mxu0 0.0
    %2468 = vmatpush1.msra.mxu0 0.0
    %2469 = vmatprep.subr.mxu0 0.0
    %2470 = vmatpush1.msra.mxu0 0.0
    %2471 = vmatprep.subr.mxu0 0.0
    %2472 = vmatpush1.msra.mxu0 0.0
    %2473 = vmatprep.subr.mxu0 0.0
    %2474 = vmatpush1.msra.mxu0 0.0
    %2475 = vmatprep.subr.mxu0 0.0
    %2476 = vmatpush1.msra.mxu0 0.0
    %2477 = vmatprep.subr.mxu0 0.0
    %2478 = vmatpush1.msra.mxu0 0.0
    %2479 = vmatprep.subr.mxu0 0.0
    %2480 = vmatpush1.msra.mxu0 0.0
    %2481 = vmatprep.subr.mxu0 0.0
    %2482 = vmatpush1.msra.mxu0 0.0
    %2483 = vmatprep.subr.mxu0 0.0
    %2484 = vmatpush1.msra.mxu0 0.0
    %2485 = vmatprep.subr.mxu0 0.0
    %2486 = vmatpush1.msra.mxu0 0.0
    %2487 = vmatprep.subr.mxu0 0.0
    %2488 = vmatpush1.msra.mxu0 0.0
    %2489 = vmatprep.mubr.f32.mxu0 0.0
    %2490 = vmatmul.mubr.f32.gmra.mrb[0].mxu0 %v2420
    %v2491 = vpop.f32.mrb[0].mxu0
    %v2492 = vadd.f32 %v2417, %v2491
    %v2493 = vpop.f32.mrb[0].mxu0
    %2494 = vmatprep.mubr.f32.mxu0 0.0
    %2495 = vmatmul.mubr.f32.gmra.mrb[0].mxu0 %v2423
    %v2496 = vpop.f32.mrb[0].mxu0
    %v2497 = vadd.f32 %v2417, %v2496
    %v2498 = vpop.f32.mrb[0].mxu0
    %2499 = vdwg.mxu0
    %v2500 = vtanh.pop %v2492
    %v2501 = vtanh.pop %v2497
    %v2502 = vld [vmem:[%s18] sm:$0xff]
    %v2503 = vld [vmem:[%s18 + $0x8] sm:$0xff]
    %v2504 = vld [vmem:[%s18 + $0x10] sm:$0xff]
    %v2505 = vld [vmem:[%s18 + $0x18] sm:$0xff]
    %v2506 = vld [vmem:[%s19] sm:$0x1]
    %v2508 = vlaneseq
    %v2509 = vshrl.u32 %v2508, 7
    %v2510 = vsub.s32 0, %v2509
    %v2511 = vrot.slane %v2506, %v2510
    %v2514 = vsel %vm70, %v2500, 0
    %v2517 = vsel %vm70, %v2501, 0
    %2519 = vmatprep.subr.mxu0 0.0
    %2520 = vmatpush1.msra.mxu0 %v2502
    %2521 = vmatprep.subr.mxu0 0.0
    %2522 = vmatpush1.msra.mxu0 %v2503
    %2523 = vmatprep.subr.mxu0 0.0
    %2524 = vmatpush1.msra.mxu0 %v2504
    %2525 = vmatprep.subr.mxu0 0.0
    %2526 = vmatpush1.msra.mxu0 %v2505
    %2527 = vmatprep.subr.mxu0 0.0
    %2528 = vmatpush1.msra.mxu0 0.0
    %2529 = vmatprep.subr.mxu0 0.0
    %2530 = vmatpush1.msra.mxu0 0.0
    %2531 = vmatprep.subr.mxu0 0.0
    %2532 = vmatpush1.msra.mxu0 0.0
    %2533 = vmatprep.subr.mxu0 0.0
    %2534 = vmatpush1.msra.mxu0 0.0
    %2535 = vmatprep.subr.mxu0 0.0
    %2536 = vmatpush1.msra.mxu0 0.0
    %2537 = vmatprep.subr.mxu0 0.0
    %2538 = vmatpush1.msra.mxu0 0.0
    %2539 = vmatprep.subr.mxu0 0.0
    %2540 = vmatpush1.msra.mxu0 0.0
    %2541 = vmatprep.subr.mxu0 0.0
    %2542 = vmatpush1.msra.mxu0 0.0
    %2543 = vmatprep.subr.mxu0 0.0
    %2544 = vmatpush1.msra.mxu0 0.0
    %2545 = vmatprep.subr.mxu0 0.0
    %2546 = vmatpush1.msra.mxu0 0.0
    %2547 = vmatprep.subr.mxu0 0.0
    %2548 = vmatpush1.msra.mxu0 0.0
    %2549 = vmatprep.subr.mxu0 0.0
    %2550 = vmatpush1.msra.mxu0 0.0
    %2551 = vmatprep.subr.mxu0 0.0
    %2552 = vmatpush1.msra.mxu0 0.0
    %2553 = vmatprep.subr.mxu0 0.0
    %2554 = vmatpush1.msra.mxu0 0.0
    %2555 = vmatprep.subr.mxu0 0.0
    %2556 = vmatpush1.msra.mxu0 0.0
    %2557 = vmatprep.subr.mxu0 0.0
    %2558 = vmatpush1.msra.mxu0 0.0
    %2559 = vmatprep.subr.mxu0 0.0
    %2560 = vmatpush1.msra.mxu0 0.0
    %2561 = vmatprep.subr.mxu0 0.0
    %2562 = vmatpush1.msra.mxu0 0.0
    %2563 = vmatprep.subr.mxu0 0.0
    %2564 = vmatpush1.msra.mxu0 0.0
    %2565 = vmatprep.subr.mxu0 0.0
    %2566 = vmatpush1.msra.mxu0 0.0
    %2567 = vmatprep.subr.mxu0 0.0
    %2568 = vmatpush1.msra.mxu0 0.0
    %2569 = vmatprep.subr.mxu0 0.0
    %2570 = vmatpush1.msra.mxu0 0.0
    %2571 = vmatprep.subr.mxu0 0.0
    %2572 = vmatpush1.msra.mxu0 0.0
    %2573 = vmatprep.subr.mxu0 0.0
    %2574 = vmatpush1.msra.mxu0 0.0
    %2575 = vmatprep.subr.mxu0 0.0
    %2576 = vmatpush1.msra.mxu0 0.0
    %2577 = vmatprep.subr.mxu0 0.0
    %2578 = vmatpush1.msra.mxu0 0.0
    %2579 = vmatprep.subr.mxu0 0.0
    %2580 = vmatpush1.msra.mxu0 0.0
    %2581 = vmatprep.subr.mxu0 0.0
    %2582 = vmatpush1.msra.mxu0 0.0
    %2583 = vmatprep.mubr.f32.mxu0 0.0
    %2584 = vmatmul.mubr.f32.gmra.mrb[0].mxu0 %v2514
    %v2585 = vpop.f32.mrb[0].mxu0
    %v2586 = vadd.f32 %v2511, %v2585
    %v2587 = vpop.f32.mrb[0].mxu0
    %2588 = vmatprep.mubr.f32.mxu0 0.0
    %2589 = vmatmul.mubr.f32.gmra.mrb[0].mxu0 %v2517
    %v2590 = vpop.f32.mrb[0].mxu0
    %v2591 = vadd.f32 %v2511, %v2590
    %v2592 = vpop.f32.mrb[0].mxu0
    %2593 = vdwg.mxu0
    %2594 = vst [vmem:[#allocation2] sm:$0xff] %v2586
    %2595 = vst [vmem:[#allocation2 + $0x8] sm:$0xff] %v2591
    // Predicated region
    $region82: #{tpu_custom_call.1} parent=1 // pred_check
      _
    $region83: #{tpu_custom_call.1} parent=1 // pred_check_branch
      %2597 = sbr.rel (0) target = $region85
    $region84: #{tpu_custom_call.1} parent=1 // pred_region
      %s2599 = ssub.s32 256, 256
      %2600 = vsyncadd [#allocation3], %s2599
      %s2601 = sshll.u32 [#allocation2], 4
      %s2602 = int_to_ptr.vmem [resolvable:$true] %s2601
      %2607 = dma.vmem_to_hbm [thread:$0]  %s2602, 256, %s20, [#allocation3], 128, 128, 8
    $region85: #{tpu_custom_call.1} parent=1 // pred_fallthru
      _
    // Predicated region
    $region86: #{tpu_custom_call.1} parent=1 // pred_check
      _
    $region87: #{tpu_custom_call.1} parent=1 // pred_check_branch
      %2609 = sbr.rel (0) target = $region89
    $region88: #{tpu_custom_call.1} parent=1 // pred_region
      %2610 = dma.done [#allocation3], 256
    $region89: #{tpu_custom_call.1} parent=1 // pred_fallthru
      _
    %2611 = vsyncpa [#allocation3], 1

</llo_original>
